<compile_context>
chip_gen: v6e
topology: v6e:2x2x1
jax: 0.10.0
libtpu: 0.0.40
codegen_flags: <defaults>
</compile_context>

<pallas_src>
import math

import jax
import jax.numpy as jnp
from jax import lax
from jax.experimental import pallas as pl
from jax.experimental.pallas import tpu as pltpu


# ----------------------------- model config ---------------------------------
VOCAB_SIZE = 1000          # demo-sized vocab (module default 50257; gather is glue, not the kernel)
HIDDEN = 128               # d_model
NHEAD = 8
HEAD_DIM = HIDDEN // NHEAD
FFN = HIDDEN * 2           # dim_feedforward
NUM_LAYERS = 6
NUM_CLASSES = 2
CLS_PAD = 128              # lane-dense classifier output width (sliced to NUM_CLASSES outside)
LN_EPS = 1e-5
NEG_INF = -1e30


def _layernorm(x, g, b, eps=LN_EPS):
    mu = jnp.mean(x, axis=-1, keepdims=True)
    var = jnp.mean((x - mu) ** 2, axis=-1, keepdims=True)
    return (x - mu) * lax.rsqrt(var + eps) * g + b


# ------------------- Pallas kernel: whole model, fused -----------------------
def _gpt_fused_kernel(x_ref, bias_ref, pool_ref,
                      wqkv_ref, bqkv_ref, wo_ref, w1_ref, b1_ref, w2_ref,
                      vecs_ref, lnf_ref, wc_ref, bc_ref,
                      o_ref):
    """6 post-norm encoder layers + final LN + masked mean pool + classifier.

    Per-grid-step views:
      x_ref    : (BT*S, D)  f32 token activations for BT sequences
      bias_ref : (BT, 1, S) f32 additive key-padding bias (0 valid / -1e30 pad)
      pool_ref : (BT, S)    f32 masked-mean weights (mask / clamped count)
      wqkv/wo/w1/w2 : (L, ...) bf16 stacked weights (Wq pre-scaled by 1/sqrt(Dh))
      bqkv/b1  : (L, 1, 3D) / (L, 1, FFN) f32 stacked biases
      vecs_ref : (L, 6, D) f32 slab: [bo, ln1_g, ln1_b, b2, ln2_g, ln2_b]
      lnf_ref  : (2, D) f32 final LayerNorm gamma/beta
      wc_ref   : (D, CLS_PAD) bf16 padded classifier weight; bc_ref: (1, CLS_PAD) f32
      o_ref    : (BT, CLS_PAD) f32 padded logits
    """
    BT, _, S = bias_ref.shape
    BS, D = x_ref.shape                         # BS == BT * S

    # Layer-invariant key-padding bias replicated per head -> (H*BT, 1, S).
    # Hoisted out of the layer loop (broadcast_in_dim is not CSE'd by JAX).
    bias_hb = jnp.broadcast_to(bias_ref[...][None, :, :, :],
                               (NHEAD, BT, 1, S)).reshape(NHEAD * BT, 1, S)

    def split_heads(m2d):
        # (BT*S, D) -> (NHEAD*BT, S, HEAD_DIM): aligned lane slices + leading
        # stack (no minor-dim transpose; same relayout a 4-D reshape needs).
        hs = [m2d[:, h * HEAD_DIM:(h + 1) * HEAD_DIM].reshape(BT, S, HEAD_DIM)
              for h in range(NHEAD)]
        return jnp.stack(hs, axis=0).reshape(NHEAD * BT, S, HEAD_DIM)

    def layer(l, x):                            # x: (BT*S, D) f32 carry
        vec = vecs_ref[l]                       # (6, D)
        bo, ln1g, ln1b = vec[0:1], vec[1:2], vec[2:3]
        b2, ln2g, ln2b = vec[3:4], vec[4:5], vec[5:6]

        # ---- fused QKV projection over all BT*S tokens (bf16 MXU, f32 acc) ----
        qkv = jnp.dot(x.astype(jnp.bfloat16), wqkv_ref[l],
                      preferred_element_type=jnp.float32) + bqkv_ref[l]   # (BS, 3D)

        # ---- head-batched multi-head self-attention ----
        # Q already scaled by 1/sqrt(head_dim) (folded into Wq/bq at pack time).
        q_b = split_heads(qkv[:, :D]).astype(jnp.bfloat16)        # (H*BT, S, Dh)
        k_b = split_heads(qkv[:, D:2 * D]).astype(jnp.bfloat16)
        v_b = split_heads(qkv[:, 2 * D:]).astype(jnp.bfloat16)

        # TODO(synk): for real sequence lengths, chunk keys (flash-style online
        # softmax) instead of materializing the full (H*BT, S, S) score tensor.
        s = jnp.einsum('bqd,bkd->bqk', q_b, k_b,
                       preferred_element_type=jnp.float32)        # (H*BT, S, S)
        s = s + bias_hb
        s = s - jnp.max(s, axis=-1, keepdims=True)
        p = jnp.exp(s)                                            # <= 1, bf16-safe
        denom = jnp.sum(p, axis=-1, keepdims=True)                # (H*BT, S, 1)
        o = jnp.einsum('bqk,bkd->bqd', p.astype(jnp.bfloat16), v_b,
                       preferred_element_type=jnp.float32)        # (H*BT, S, Dh)
        o = o * pl.reciprocal(denom, approx=True)                 # normalize after PV

        # merge heads back to (BS, D) with a single lane concat
        o4 = o.reshape(NHEAD, BT, S, HEAD_DIM)
        attn = jnp.concatenate(
            [o4[h].reshape(BS, HEAD_DIM) for h in range(NHEAD)], axis=-1)

        attn = jnp.dot(attn.astype(jnp.bfloat16), wo_ref[l],
                       preferred_element_type=jnp.float32) + bo
        x = _layernorm(x + attn, ln1g, ln1b)

        # ---- feed-forward block (ReLU, dim_feedforward = 2*D) ----
        h1 = jnp.maximum(
            jnp.dot(x.astype(jnp.bfloat16), w1_ref[l],
                    preferred_element_type=jnp.float32) + b1_ref[l], 0.0)
        ff = jnp.dot(h1.astype(jnp.bfloat16), w2_ref[l],
                     preferred_element_type=jnp.float32) + b2
        return _layernorm(x + ff, ln2g, ln2b)

    x = lax.fori_loop(0, NUM_LAYERS, layer, x_ref[...])

    # ---- final LN + masked mean pool (VPU multiply + sublane reduce) ----
    lnf = lnf_ref[...]                                            # (2, D)
    xf = _layernorm(x, lnf[0:1], lnf[1:2])
    pooled = jnp.sum(xf.reshape(BT, S, D) * pool_ref[...][:, :, None], axis=1)  # (BT, D)

    # ---- classifier (lane-dense padded logits) ----
    o_ref[...] = jnp.dot(pooled.astype(jnp.bfloat16), wc_ref[...],
                         preferred_element_type=jnp.float32) + bc_ref[...]


def _pick_batch_tile(B, S):
    """Batch tile: prefer the smallest divisor of B that is a multiple of 8 and
    gives >=256 token rows (fills the 256x256 MXU, shards across v7x's 2 TCs);
    fall back to the whole batch (grid of 1) for small/indivisible B."""
    cands = [bt for bt in range(8, B, 8) if B % bt == 0]
    good = [bt for bt in cands if bt * S >= 256]
    if good:
        return good[0]
    return B


def _fused_forward(x2d, attn_bias, pool_w, kp):
    B, _, S = attn_bias.shape
    BT = _pick_batch_tile(B, S)
    nb = B // BT

    def resident(arr):
        # whole-array block, constant index_map -> stays VMEM-resident across grid
        nd = arr.ndim
        return pl.BlockSpec(arr.shape, lambda b, _nd=nd: (0,) * _nd)

    in_specs = [
        pl.BlockSpec((BT * S, HIDDEN), lambda b: (b, 0)),      # x2d
        pl.BlockSpec((BT, 1, S), lambda b: (b, 0, 0)),         # attn bias
        pl.BlockSpec((BT, S), lambda b: (b, 0)),               # pool weights
        resident(kp["wqkv"]), resident(kp["bqkv"]), resident(kp["wo"]),
        resident(kp["w1"]), resident(kp["b1"]), resident(kp["w2"]),
        resident(kp["vecs"]), resident(kp["lnf"]),
        resident(kp["wc"]), resident(kp["bc"]),
    ]
    out_spec = pl.BlockSpec((BT, CLS_PAD), lambda b: (b, 0))

    return pl.pallas_call(
        _gpt_fused_kernel,
        out_shape=jax.ShapeDtypeStruct((B, CLS_PAD), jnp.float32),
        grid_spec=pltpu.PrefetchScalarGridSpec(
            num_scalar_prefetch=0,
            grid=(nb,),
            in_specs=in_specs,
            out_specs=out_spec),
        compiler_params=pltpu.CompilerParams(
            dimension_semantics=("parallel",),           # shard tiles across TCs (v7x)
            vmem_limit_bytes=48 * 1024 * 1024),          # stays within v7x's 64 MiB physical VMEM
    )(x2d, attn_bias, pool_w,
      kp["wqkv"], kp["bqkv"], kp["wo"], kp["w1"], kp["b1"], kp["w2"],
      kp["vecs"], kp["lnf"], kp["wc"], kp["bc"])


# ----------------------------- parameter init --------------------------------
def init_params(key):
    def nrm(k, shape, scale=0.02):
        return (scale * jax.random.normal(k, shape)).astype(jnp.float32)

    L = NUM_LAYERS
    keys = jax.random.split(key, 6)
    return {
        "embedding": nrm(keys[0], (VOCAB_SIZE, HIDDEN), 1.0),
        "lnf_g": jnp.ones((HIDDEN,), jnp.float32),
        "lnf_b": jnp.zeros((HIDDEN,), jnp.float32),
        "wc": nrm(keys[1], (HIDDEN, NUM_CLASSES)),
        "bc": jnp.zeros((NUM_CLASSES,), jnp.float32),
        # per-layer params stacked along a leading layer axis
        "wqkv": nrm(keys[2], (L, HIDDEN, 3 * HIDDEN)),
        "bqkv": jnp.zeros((L, 3 * HIDDEN), jnp.float32),
        "wo": nrm(keys[3], (L, HIDDEN, HIDDEN)),
        "bo": jnp.zeros((L, HIDDEN), jnp.float32),
        "ln1_g": jnp.ones((L, HIDDEN), jnp.float32),
        "ln1_b": jnp.zeros((L, HIDDEN), jnp.float32),
        "w1": nrm(keys[4], (L, HIDDEN, FFN)),
        "b1": jnp.zeros((L, FFN), jnp.float32),
        "w2": nrm(keys[5], (L, FFN, HIDDEN)),
        "b2": jnp.zeros((L, HIDDEN), jnp.float32),
        "ln2_g": jnp.ones((L, HIDDEN), jnp.float32),
        "ln2_b": jnp.zeros((L, HIDDEN), jnp.float32),
    }


def pack_params(p):
    """One-time prep: fold attention scale into Wq/bq, cast matmul weights to
    bf16, pack D-wide biases/LN params into a (L, 6, D) slab, lane-pad the
    classifier to CLS_PAD columns."""
    L = NUM_LAYERS
    scale = 1.0 / math.sqrt(HEAD_DIM)                 # 0.25: exact in bf16
    col_scale = jnp.concatenate([jnp.full((HIDDEN,), scale, jnp.float32),
                                 jnp.ones((2 * HIDDEN,), jnp.float32)])
    wqkv = p["wqkv"] * col_scale[None, None, :]
    bqkv = p["bqkv"] * col_scale[None, :]
    vecs = jnp.stack([p["bo"], p["ln1_g"], p["ln1_b"],
                      p["b2"], p["ln2_g"], p["ln2_b"]], axis=1)          # (L, 6, D)
    lnf = jnp.stack([p["lnf_g"], p["lnf_b"]], axis=0)                    # (2, D)
    wc = jnp.zeros((HIDDEN, CLS_PAD), jnp.float32).at[:, :NUM_CLASSES].set(p["wc"])
    bc = jnp.zeros((1, CLS_PAD), jnp.float32).at[:, :NUM_CLASSES].set(p["bc"])
    return {
        "embedding": p["embedding"],
        "wqkv": wqkv.astype(jnp.bfloat16),
        "bqkv": bqkv.reshape(L, 1, 3 * HIDDEN),
        "wo": p["wo"].astype(jnp.bfloat16),
        "w1": p["w1"].astype(jnp.bfloat16),
        "b1": p["b1"].reshape(L, 1, FFN),
        "w2": p["w2"].astype(jnp.bfloat16),
        "vecs": vecs,
        "lnf": lnf,
        "wc": wc.astype(jnp.bfloat16),
        "bc": bc,
    }


# ------------------------------- forward --------------------------------------
@jax.jit
def forward(kparams, input_ids, attention_mask, labels=None):
    B, S = input_ids.shape
    # Embedding lookup: plain-JAX gather (glue, not the hot path).
    x = jnp.take(kparams["embedding"], input_ids, axis=0)          # (B, S, D) f32
    x2d = x.reshape(B * S, HIDDEN)

    maskf = attention_mask.astype(jnp.float32)                     # (B, S)
    attn_bias = ((1.0 - maskf) * NEG_INF).reshape(B, 1, S)         # 0 valid / -1e30 pad
    counts = jnp.maximum(jnp.sum(maskf, axis=1, keepdims=True), 1.0)   # clamp avoids 0/0
    pool_w = maskf / counts                                        # (B, S) masked-mean weights

    logits_pad = _fused_forward(x2d, attn_bias, pool_w, kparams)   # (B, CLS_PAD)
    logits = logits_pad[:, :NUM_CLASSES]

    loss = None
    if labels is not None:
        logz = jax.nn.log_softmax(logits, axis=-1)
        loss = -jnp.mean(jnp.take_along_axis(logz, labels[:, None], axis=-1))
    # TODO(synk): dropout layers are identity (eval-mode semantics), matching model.eval().
    return {"loss": loss, "logits": logits}


# --------------------------------- demo ---------------------------------------
if __name__ == "__main__":
    key = jax.random.PRNGKey(0)
    pkey, dkey = jax.random.split(key)
    params = pack_params(init_params(pkey))

    B, S = 2, 8
    input_ids = jax.random.randint(dkey, (B, S), 0, VOCAB_SIZE, dtype=jnp.int32)
    attention_mask = jnp.array([[1, 1, 1, 1, 1, 1, 1, 1],
                                [1, 1, 1, 1, 1, 1, 0, 0]], dtype=jnp.int32)
    labels = jnp.array([0, 1], dtype=jnp.int32)

    out = forward(params, input_ids, attention_mask, labels)
    jax.block_until_ready(out["logits"])
    jax.block_until_ready(out["loss"])
    assert out["logits"].shape == (B, NUM_CLASSES)
    assert bool(jnp.all(jnp.isfinite(out["logits"])))
    assert bool(jnp.isfinite(out["loss"]))
    print("KERNEL_OK")
</pallas_src>

<mosaic_0001>
module attributes {stable_mosaic.version = 11 : i64} {
  func.func @_gpt_fused_kernel(%arg0: i32, %arg1: memref<16x128xf32, #tpu.memory_space<vmem>>, %arg2: memref<2x1x8xf32, #tpu.memory_space<vmem>>, %arg3: memref<2x8xf32, #tpu.memory_space<vmem>>, %arg4: memref<6x128x384xbf16, #tpu.memory_space<vmem>>, %arg5: memref<6x1x384xf32, #tpu.memory_space<vmem>>, %arg6: memref<6x128x128xbf16, #tpu.memory_space<vmem>>, %arg7: memref<6x128x256xbf16, #tpu.memory_space<vmem>>, %arg8: memref<6x1x256xf32, #tpu.memory_space<vmem>>, %arg9: memref<6x256x128xbf16, #tpu.memory_space<vmem>>, %arg10: memref<6x6x128xf32, #tpu.memory_space<vmem>>, %arg11: memref<2x128xf32, #tpu.memory_space<vmem>>, %arg12: memref<128x128xbf16, #tpu.memory_space<vmem>>, %arg13: memref<1x128xf32, #tpu.memory_space<vmem>>, %arg14: memref<2x128xf32, #tpu.memory_space<vmem>>) attributes {dimension_semantics = [#tpu.dimension_semantics<parallel>], iteration_bounds = array<i64: 1>, scalar_prefetch = 0 : i64, scratch_operands = 0 : i64, tpu.core_type = #tpu.core_type<tc>, window_params = [{transform_indices = @transform_0, window_bounds = array<i64: 16, 128>}, {transform_indices = @transform_1, window_bounds = array<i64: 2, 1, 8>}, {transform_indices = @transform_2, window_bounds = array<i64: 2, 8>}, {pipeline_mode = #tpu.pipeline_mode<synchronous>, transform_indices = @transform_3, window_bounds = array<i64: 6, 128, 384>}, {pipeline_mode = #tpu.pipeline_mode<synchronous>, transform_indices = @transform_4, window_bounds = array<i64: 6, 1, 384>}, {pipeline_mode = #tpu.pipeline_mode<synchronous>, transform_indices = @transform_5, window_bounds = array<i64: 6, 128, 128>}, {pipeline_mode = #tpu.pipeline_mode<synchronous>, transform_indices = @transform_6, window_bounds = array<i64: 6, 128, 256>}, {pipeline_mode = #tpu.pipeline_mode<synchronous>, transform_indices = @transform_7, window_bounds = array<i64: 6, 1, 256>}, {pipeline_mode = #tpu.pipeline_mode<synchronous>, transform_indices = @transform_8, window_bounds = array<i64: 6, 256, 128>}, {pipeline_mode = #tpu.pipeline_mode<synchronous>, transform_indices = @transform_9, window_bounds = array<i64: 6, 6, 128>}, {pipeline_mode = #tpu.pipeline_mode<synchronous>, transform_indices = @transform_10, window_bounds = array<i64: 2, 128>}, {pipeline_mode = #tpu.pipeline_mode<synchronous>, transform_indices = @transform_11, window_bounds = array<i64: 128, 128>}, {pipeline_mode = #tpu.pipeline_mode<synchronous>, transform_indices = @transform_12, window_bounds = array<i64: 1, 128>}, {transform_indices = @transform_13, window_bounds = array<i64: 2, 128>}]} {
    %c0 = arith.constant 0 : index
    %c0_0 = arith.constant 0 : index
    %c0_1 = arith.constant 0 : index
    %0 = vector.load %arg2[%c0, %c0_0, %c0_1] : memref<2x1x8xf32, #tpu.memory_space<vmem>>, vector<2x1x8xf32>
    %1 = vector.shape_cast %0 : vector<2x1x8xf32> to vector<1x2x1x8xf32>
    %2 = vector.shape_cast %1 : vector<1x2x1x8xf32> to vector<1x2x1x8xf32>
    %3 = vector.broadcast %2 : vector<1x2x1x8xf32> to vector<8x2x1x8xf32>
    %4 = vector.shape_cast %3 : vector<8x2x1x8xf32> to vector<16x1x8xf32>
    %c0_2 = arith.constant 0 : index
    %c0_3 = arith.constant 0 : index
    %5 = vector.load %arg1[%c0_2, %c0_3] : memref<16x128xf32, #tpu.memory_space<vmem>>, vector<16x128xf32>
    %c0_i32 = arith.constant 0 : i32
    %c6_i32 = arith.constant 6 : i32
    %6 = arith.addi %c0_i32, %c6_i32 : i32
    %c1_i32 = arith.constant 1 : i32
    %7 = scf.for %arg15 = %c0_i32 to %6 step %c1_i32 iter_args(%arg16 = %5) -> (vector<16x128xf32>)  : i32 {
      %46 = arith.index_cast %arg15 : i32 to index
      %c0_21 = arith.constant 0 : index
      %c0_22 = arith.constant 0 : index
      %47 = vector.load %arg10[%46, %c0_21, %c0_22] : memref<6x6x128xf32, #tpu.memory_space<vmem>>, vector<1x6x128xf32>
      %48 = vector.shape_cast %47 : vector<1x6x128xf32> to vector<6x128xf32>
      %49 = vector.extract_strided_slice %48 {offsets = [0, 0], sizes = [1, 128], strides = [1, 1]} : vector<6x128xf32> to vector<1x128xf32>
      %50 = vector.extract_strided_slice %48 {offsets = [1, 0], sizes = [1, 128], strides = [1, 1]} : vector<6x128xf32> to vector<1x128xf32>
      %51 = vector.extract_strided_slice %48 {offsets = [2, 0], sizes = [1, 128], strides = [1, 1]} : vector<6x128xf32> to vector<1x128xf32>
      %52 = vector.extract_strided_slice %48 {offsets = [3, 0], sizes = [1, 128], strides = [1, 1]} : vector<6x128xf32> to vector<1x128xf32>
      %53 = vector.extract_strided_slice %48 {offsets = [4, 0], sizes = [1, 128], strides = [1, 1]} : vector<6x128xf32> to vector<1x128xf32>
      %54 = vector.extract_strided_slice %48 {offsets = [5, 0], sizes = [1, 128], strides = [1, 1]} : vector<6x128xf32> to vector<1x128xf32>
      %55 = arith.truncf %arg16 : vector<16x128xf32> to vector<16x128xbf16>
      %56 = arith.index_cast %arg15 : i32 to index
      %c0_23 = arith.constant 0 : index
      %c0_24 = arith.constant 0 : index
      %57 = vector.load %arg4[%56, %c0_23, %c0_24] : memref<6x128x384xbf16, #tpu.memory_space<vmem>>, vector<1x128x384xbf16>
      %58 = vector.shape_cast %57 : vector<1x128x384xbf16> to vector<128x384xbf16>
      %cst_25 = arith.constant dense<0.000000e+00> : vector<16x384xf32>
      %59 = tpu.matmul %55, %58, %cst_25 {dimension_numbers = #tpu.dot_dimension_numbers<[1], [0], [0], [1], [0, 0, 1, 1], [], []>} : vector<16x128xbf16>, vector<128x384xbf16>, vector<16x384xf32> -> vector<16x384xf32>
      %60 = arith.index_cast %arg15 : i32 to index
      %c0_26 = arith.constant 0 : index
      %c0_27 = arith.constant 0 : index
      %61 = vector.load %arg5[%60, %c0_26, %c0_27] : memref<6x1x384xf32, #tpu.memory_space<vmem>>, vector<1x1x384xf32>
      %62 = vector.shape_cast %61 : vector<1x1x384xf32> to vector<1x384xf32>
      %63 = vector.broadcast %62 : vector<1x384xf32> to vector<16x384xf32>
      %64 = arith.addf %59, %63 : vector<16x384xf32>
      %65 = vector.extract_strided_slice %64 {offsets = [0, 0], sizes = [16, 128], strides = [1, 1]} : vector<16x384xf32> to vector<16x128xf32>
      %66 = vector.extract_strided_slice %65 {offsets = [0, 0], sizes = [16, 16], strides = [1, 1]} : vector<16x128xf32> to vector<16x16xf32>
      %67 = vector.shape_cast %66 : vector<16x16xf32> to vector<2x8x16xf32>
      %68 = vector.extract_strided_slice %65 {offsets = [0, 16], sizes = [16, 16], strides = [1, 1]} : vector<16x128xf32> to vector<16x16xf32>
      %69 = vector.shape_cast %68 : vector<16x16xf32> to vector<2x8x16xf32>
      %70 = vector.extract_strided_slice %65 {offsets = [0, 32], sizes = [16, 16], strides = [1, 1]} : vector<16x128xf32> to vector<16x16xf32>
      %71 = vector.shape_cast %70 : vector<16x16xf32> to vector<2x8x16xf32>
      %72 = vector.extract_strided_slice %65 {offsets = [0, 48], sizes = [16, 16], strides = [1, 1]} : vector<16x128xf32> to vector<16x16xf32>
      %73 = vector.shape_cast %72 : vector<16x16xf32> to vector<2x8x16xf32>
      %74 = vector.extract_strided_slice %65 {offsets = [0, 64], sizes = [16, 16], strides = [1, 1]} : vector<16x128xf32> to vector<16x16xf32>
      %75 = vector.shape_cast %74 : vector<16x16xf32> to vector<2x8x16xf32>
      %76 = vector.extract_strided_slice %65 {offsets = [0, 80], sizes = [16, 16], strides = [1, 1]} : vector<16x128xf32> to vector<16x16xf32>
      %77 = vector.shape_cast %76 : vector<16x16xf32> to vector<2x8x16xf32>
      %78 = vector.extract_strided_slice %65 {offsets = [0, 96], sizes = [16, 16], strides = [1, 1]} : vector<16x128xf32> to vector<16x16xf32>
      %79 = vector.shape_cast %78 : vector<16x16xf32> to vector<2x8x16xf32>
      %80 = vector.extract_strided_slice %65 {offsets = [0, 112], sizes = [16, 16], strides = [1, 1]} : vector<16x128xf32> to vector<16x16xf32>
      %81 = vector.shape_cast %80 : vector<16x16xf32> to vector<2x8x16xf32>
      %82 = vector.shape_cast %67 : vector<2x8x16xf32> to vector<1x2x8x16xf32>
      %83 = vector.shape_cast %69 : vector<2x8x16xf32> to vector<1x2x8x16xf32>
      %84 = vector.shape_cast %71 : vector<2x8x16xf32> to vector<1x2x8x16xf32>
      %85 = vector.shape_cast %73 : vector<2x8x16xf32> to vector<1x2x8x16xf32>
      %86 = vector.shape_cast %75 : vector<2x8x16xf32> to vector<1x2x8x16xf32>
      %87 = vector.shape_cast %77 : vector<2x8x16xf32> to vector<1x2x8x16xf32>
      %88 = vector.shape_cast %79 : vector<2x8x16xf32> to vector<1x2x8x16xf32>
      %89 = vector.shape_cast %81 : vector<2x8x16xf32> to vector<1x2x8x16xf32>
      %90 = tpu.concatenate %82, %83, %84, %85, %86, %87, %88, %89 in 0 : vector<1x2x8x16xf32>, vector<1x2x8x16xf32>, vector<1x2x8x16xf32>, vector<1x2x8x16xf32>, vector<1x2x8x16xf32>, vector<1x2x8x16xf32>, vector<1x2x8x16xf32>, vector<1x2x8x16xf32> -> vector<8x2x8x16xf32>
      %91 = vector.shape_cast %90 : vector<8x2x8x16xf32> to vector<16x8x16xf32>
      %92 = arith.truncf %91 : vector<16x8x16xf32> to vector<16x8x16xbf16>
      %93 = vector.extract_strided_slice %64 {offsets = [0, 128], sizes = [16, 128], strides = [1, 1]} : vector<16x384xf32> to vector<16x128xf32>
      %94 = vector.extract_strided_slice %93 {offsets = [0, 0], sizes = [16, 16], strides = [1, 1]} : vector<16x128xf32> to vector<16x16xf32>
      %95 = vector.shape_cast %94 : vector<16x16xf32> to vector<2x8x16xf32>
      %96 = vector.extract_strided_slice %93 {offsets = [0, 16], sizes = [16, 16], strides = [1, 1]} : vector<16x128xf32> to vector<16x16xf32>
      %97 = vector.shape_cast %96 : vector<16x16xf32> to vector<2x8x16xf32>
      %98 = vector.extract_strided_slice %93 {offsets = [0, 32], sizes = [16, 16], strides = [1, 1]} : vector<16x128xf32> to vector<16x16xf32>
      %99 = vector.shape_cast %98 : vector<16x16xf32> to vector<2x8x16xf32>
      %100 = vector.extract_strided_slice %93 {offsets = [0, 48], sizes = [16, 16], strides = [1, 1]} : vector<16x128xf32> to vector<16x16xf32>
      %101 = vector.shape_cast %100 : vector<16x16xf32> to vector<2x8x16xf32>
      %102 = vector.extract_strided_slice %93 {offsets = [0, 64], sizes = [16, 16], strides = [1, 1]} : vector<16x128xf32> to vector<16x16xf32>
      %103 = vector.shape_cast %102 : vector<16x16xf32> to vector<2x8x16xf32>
      %104 = vector.extract_strided_slice %93 {offsets = [0, 80], sizes = [16, 16], strides = [1, 1]} : vector<16x128xf32> to vector<16x16xf32>
      %105 = vector.shape_cast %104 : vector<16x16xf32> to vector<2x8x16xf32>
      %106 = vector.extract_strided_slice %93 {offsets = [0, 96], sizes = [16, 16], strides = [1, 1]} : vector<16x128xf32> to vector<16x16xf32>
      %107 = vector.shape_cast %106 : vector<16x16xf32> to vector<2x8x16xf32>
      %108 = vector.extract_strided_slice %93 {offsets = [0, 112], sizes = [16, 16], strides = [1, 1]} : vector<16x128xf32> to vector<16x16xf32>
      %109 = vector.shape_cast %108 : vector<16x16xf32> to vector<2x8x16xf32>
      %110 = vector.shape_cast %95 : vector<2x8x16xf32> to vector<1x2x8x16xf32>
      %111 = vector.shape_cast %97 : vector<2x8x16xf32> to vector<1x2x8x16xf32>
      %112 = vector.shape_cast %99 : vector<2x8x16xf32> to vector<1x2x8x16xf32>
      %113 = vector.shape_cast %101 : vector<2x8x16xf32> to vector<1x2x8x16xf32>
      %114 = vector.shape_cast %103 : vector<2x8x16xf32> to vector<1x2x8x16xf32>
      %115 = vector.shape_cast %105 : vector<2x8x16xf32> to vector<1x2x8x16xf32>
      %116 = vector.shape_cast %107 : vector<2x8x16xf32> to vector<1x2x8x16xf32>
      %117 = vector.shape_cast %109 : vector<2x8x16xf32> to vector<1x2x8x16xf32>
      %118 = tpu.concatenate %110, %111, %112, %113, %114, %115, %116, %117 in 0 : vector<1x2x8x16xf32>, vector<1x2x8x16xf32>, vector<1x2x8x16xf32>, vector<1x2x8x16xf32>, vector<1x2x8x16xf32>, vector<1x2x8x16xf32>, vector<1x2x8x16xf32>, vector<1x2x8x16xf32> -> vector<8x2x8x16xf32>
      %119 = vector.shape_cast %118 : vector<8x2x8x16xf32> to vector<16x8x16xf32>
      %120 = arith.truncf %119 : vector<16x8x16xf32> to vector<16x8x16xbf16>
      %121 = vector.extract_strided_slice %64 {offsets = [0, 256], sizes = [16, 128], strides = [1, 1]} : vector<16x384xf32> to vector<16x128xf32>
      %122 = vector.extract_strided_slice %121 {offsets = [0, 0], sizes = [16, 16], strides = [1, 1]} : vector<16x128xf32> to vector<16x16xf32>
      %123 = vector.shape_cast %122 : vector<16x16xf32> to vector<2x8x16xf32>
      %124 = vector.extract_strided_slice %121 {offsets = [0, 16], sizes = [16, 16], strides = [1, 1]} : vector<16x128xf32> to vector<16x16xf32>
      %125 = vector.shape_cast %124 : vector<16x16xf32> to vector<2x8x16xf32>
      %126 = vector.extract_strided_slice %121 {offsets = [0, 32], sizes = [16, 16], strides = [1, 1]} : vector<16x128xf32> to vector<16x16xf32>
      %127 = vector.shape_cast %126 : vector<16x16xf32> to vector<2x8x16xf32>
      %128 = vector.extract_strided_slice %121 {offsets = [0, 48], sizes = [16, 16], strides = [1, 1]} : vector<16x128xf32> to vector<16x16xf32>
      %129 = vector.shape_cast %128 : vector<16x16xf32> to vector<2x8x16xf32>
      %130 = vector.extract_strided_slice %121 {offsets = [0, 64], sizes = [16, 16], strides = [1, 1]} : vector<16x128xf32> to vector<16x16xf32>
      %131 = vector.shape_cast %130 : vector<16x16xf32> to vector<2x8x16xf32>
      %132 = vector.extract_strided_slice %121 {offsets = [0, 80], sizes = [16, 16], strides = [1, 1]} : vector<16x128xf32> to vector<16x16xf32>
      %133 = vector.shape_cast %132 : vector<16x16xf32> to vector<2x8x16xf32>
      %134 = vector.extract_strided_slice %121 {offsets = [0, 96], sizes = [16, 16], strides = [1, 1]} : vector<16x128xf32> to vector<16x16xf32>
      %135 = vector.shape_cast %134 : vector<16x16xf32> to vector<2x8x16xf32>
      %136 = vector.extract_strided_slice %121 {offsets = [0, 112], sizes = [16, 16], strides = [1, 1]} : vector<16x128xf32> to vector<16x16xf32>
      %137 = vector.shape_cast %136 : vector<16x16xf32> to vector<2x8x16xf32>
      %138 = vector.shape_cast %123 : vector<2x8x16xf32> to vector<1x2x8x16xf32>
      %139 = vector.shape_cast %125 : vector<2x8x16xf32> to vector<1x2x8x16xf32>
      %140 = vector.shape_cast %127 : vector<2x8x16xf32> to vector<1x2x8x16xf32>
      %141 = vector.shape_cast %129 : vector<2x8x16xf32> to vector<1x2x8x16xf32>
      %142 = vector.shape_cast %131 : vector<2x8x16xf32> to vector<1x2x8x16xf32>
      %143 = vector.shape_cast %133 : vector<2x8x16xf32> to vector<1x2x8x16xf32>
      %144 = vector.shape_cast %135 : vector<2x8x16xf32> to vector<1x2x8x16xf32>
      %145 = vector.shape_cast %137 : vector<2x8x16xf32> to vector<1x2x8x16xf32>
      %146 = tpu.concatenate %138, %139, %140, %141, %142, %143, %144, %145 in 0 : vector<1x2x8x16xf32>, vector<1x2x8x16xf32>, vector<1x2x8x16xf32>, vector<1x2x8x16xf32>, vector<1x2x8x16xf32>, vector<1x2x8x16xf32>, vector<1x2x8x16xf32>, vector<1x2x8x16xf32> -> vector<8x2x8x16xf32>
      %147 = vector.shape_cast %146 : vector<8x2x8x16xf32> to vector<16x8x16xf32>
      %148 = arith.truncf %147 : vector<16x8x16xf32> to vector<16x8x16xbf16>
      "tpu.trace_start"() <{level = 10 : i32, message = "bqd,bkd->bqk"}> : () -> ()
      %cst_28 = arith.constant dense<0.000000e+00> : vector<16x8x8xf32>
      %149 = tpu.matmul %92, %120, %cst_28 {dimension_numbers = #tpu.dot_dimension_numbers<[2], [2], [1], [1], [0, 0, 0, 1, 1, 1], [0], [0]>} : vector<16x8x16xbf16>, vector<16x8x16xbf16>, vector<16x8x8xf32> -> vector<16x8x8xf32>
      "tpu.trace_stop"() : () -> ()
      %150 = vector.broadcast %4 : vector<16x1x8xf32> to vector<16x8x8xf32>
      %151 = arith.addf %149, %150 : vector<16x8x8xf32>
      %cst_29 = arith.constant dense<0xFF800000> : vector<16x8xf32>
      %152 = vector.multi_reduction <maximumf>, %151, %cst_29 [2] : vector<16x8x8xf32> to vector<16x8xf32>
      %153 = vector.shape_cast %152 : vector<16x8xf32> to vector<16x8x1xf32>
      %154 = vector.broadcast %153 : vector<16x8x1xf32> to vector<16x8x8xf32>
      %155 = arith.subf %151, %154 : vector<16x8x8xf32>
      %156 = math.exp %155 : vector<16x8x8xf32>
      %cst_30 = arith.constant dense<0.000000e+00> : vector<16x8xf32>
      %157 = vector.multi_reduction <add>, %156, %cst_30 [2] : vector<16x8x8xf32> to vector<16x8xf32>
      %158 = vector.shape_cast %157 : vector<16x8xf32> to vector<16x8x1xf32>
      %159 = arith.truncf %156 : vector<16x8x8xf32> to vector<16x8x8xbf16>
      "tpu.trace_start"() <{level = 10 : i32, message = "bqk,bkd->bqd"}> : () -> ()
      %cst_31 = arith.constant dense<0.000000e+00> : vector<16x8x16xf32>
      %160 = tpu.matmul %159, %148, %cst_31 {dimension_numbers = #tpu.dot_dimension_numbers<[2], [1], [1], [2], [0, 0, 0, 1, 1, 2], [0], [0]>} : vector<16x8x8xbf16>, vector<16x8x16xbf16>, vector<16x8x16xf32> -> vector<16x8x16xf32>
      "tpu.trace_stop"() : () -> ()
      %161 = tpu.reciprocal %158 {approx = true} : vector<16x8x1xf32> -> vector<16x8x1xf32>
      %162 = vector.broadcast %161 : vector<16x8x1xf32> to vector<16x8x16xf32>
      %163 = arith.mulf %160, %162 : vector<16x8x16xf32>
      %164 = vector.shape_cast %163 : vector<16x8x16xf32> to vector<8x2x8x16xf32>
      %165 = vector.extract_strided_slice %164 {offsets = [0, 0, 0, 0], sizes = [1, 2, 8, 16], strides = [1, 1, 1, 1]} : vector<8x2x8x16xf32> to vector<1x2x8x16xf32>
      %166 = vector.shape_cast %165 : vector<1x2x8x16xf32> to vector<2x8x16xf32>
      %167 = vector.shape_cast %166 : vector<2x8x16xf32> to vector<16x16xf32>
      %168 = vector.extract_strided_slice %164 {offsets = [1, 0, 0, 0], sizes = [1, 2, 8, 16], strides = [1, 1, 1, 1]} : vector<8x2x8x16xf32> to vector<1x2x8x16xf32>
      %169 = vector.shape_cast %168 : vector<1x2x8x16xf32> to vector<2x8x16xf32>
      %170 = vector.shape_cast %169 : vector<2x8x16xf32> to vector<16x16xf32>
      %171 = vector.extract_strided_slice %164 {offsets = [2, 0, 0, 0], sizes = [1, 2, 8, 16], strides = [1, 1, 1, 1]} : vector<8x2x8x16xf32> to vector<1x2x8x16xf32>
      %172 = vector.shape_cast %171 : vector<1x2x8x16xf32> to vector<2x8x16xf32>
      %173 = vector.shape_cast %172 : vector<2x8x16xf32> to vector<16x16xf32>
      %174 = vector.extract_strided_slice %164 {offsets = [3, 0, 0, 0], sizes = [1, 2, 8, 16], strides = [1, 1, 1, 1]} : vector<8x2x8x16xf32> to vector<1x2x8x16xf32>
      %175 = vector.shape_cast %174 : vector<1x2x8x16xf32> to vector<2x8x16xf32>
      %176 = vector.shape_cast %175 : vector<2x8x16xf32> to vector<16x16xf32>
      %177 = vector.extract_strided_slice %164 {offsets = [4, 0, 0, 0], sizes = [1, 2, 8, 16], strides = [1, 1, 1, 1]} : vector<8x2x8x16xf32> to vector<1x2x8x16xf32>
      %178 = vector.shape_cast %177 : vector<1x2x8x16xf32> to vector<2x8x16xf32>
      %179 = vector.shape_cast %178 : vector<2x8x16xf32> to vector<16x16xf32>
      %180 = vector.extract_strided_slice %164 {offsets = [5, 0, 0, 0], sizes = [1, 2, 8, 16], strides = [1, 1, 1, 1]} : vector<8x2x8x16xf32> to vector<1x2x8x16xf32>
      %181 = vector.shape_cast %180 : vector<1x2x8x16xf32> to vector<2x8x16xf32>
      %182 = vector.shape_cast %181 : vector<2x8x16xf32> to vector<16x16xf32>
      %183 = vector.extract_strided_slice %164 {offsets = [6, 0, 0, 0], sizes = [1, 2, 8, 16], strides = [1, 1, 1, 1]} : vector<8x2x8x16xf32> to vector<1x2x8x16xf32>
      %184 = vector.shape_cast %183 : vector<1x2x8x16xf32> to vector<2x8x16xf32>
      %185 = vector.shape_cast %184 : vector<2x8x16xf32> to vector<16x16xf32>
      %186 = vector.extract_strided_slice %164 {offsets = [7, 0, 0, 0], sizes = [1, 2, 8, 16], strides = [1, 1, 1, 1]} : vector<8x2x8x16xf32> to vector<1x2x8x16xf32>
      %187 = vector.shape_cast %186 : vector<1x2x8x16xf32> to vector<2x8x16xf32>
      %188 = vector.shape_cast %187 : vector<2x8x16xf32> to vector<16x16xf32>
      %189 = tpu.concatenate %167, %170, %173, %176, %179, %182, %185, %188 in 1 : vector<16x16xf32>, vector<16x16xf32>, vector<16x16xf32>, vector<16x16xf32>, vector<16x16xf32>, vector<16x16xf32>, vector<16x16xf32>, vector<16x16xf32> -> vector<16x128xf32>
      %190 = arith.truncf %189 : vector<16x128xf32> to vector<16x128xbf16>
      %191 = arith.index_cast %arg15 : i32 to index
      %c0_32 = arith.constant 0 : index
      %c0_33 = arith.constant 0 : index
      %192 = vector.load %arg6[%191, %c0_32, %c0_33] : memref<6x128x128xbf16, #tpu.memory_space<vmem>>, vector<1x128x128xbf16>
      %193 = vector.shape_cast %192 : vector<1x128x128xbf16> to vector<128x128xbf16>
      %cst_34 = arith.constant dense<0.000000e+00> : vector<16x128xf32>
      %194 = tpu.matmul %190, %193, %cst_34 {dimension_numbers = #tpu.dot_dimension_numbers<[1], [0], [0], [1], [0, 0, 1, 1], [], []>} : vector<16x128xbf16>, vector<128x128xbf16>, vector<16x128xf32> -> vector<16x128xf32>
      %195 = vector.broadcast %49 : vector<1x128xf32> to vector<16x128xf32>
      %196 = arith.addf %194, %195 : vector<16x128xf32>
      %197 = arith.addf %arg16, %196 : vector<16x128xf32>
      %cst_35 = arith.constant dense<0.000000e+00> : vector<16xf32>
      %198 = vector.multi_reduction <add>, %197, %cst_35 [1] : vector<16x128xf32> to vector<16xf32>
      %199 = vector.shape_cast %198 : vector<16xf32> to vector<16x1xf32>
      %cst_36 = arith.constant 1.280000e+02 : f32
      %200 = vector.broadcast %cst_36 : f32 to vector<16x1xf32>
      %201 = arith.divf %199, %200 : vector<16x1xf32>
      %202 = vector.broadcast %201 : vector<16x1xf32> to vector<16x128xf32>
      %203 = arith.subf %197, %202 : vector<16x128xf32>
      %204 = arith.mulf %203, %203 : vector<16x128xf32>
      %cst_37 = arith.constant dense<0.000000e+00> : vector<16xf32>
      %205 = vector.multi_reduction <add>, %204, %cst_37 [1] : vector<16x128xf32> to vector<16xf32>
      %206 = vector.shape_cast %205 : vector<16xf32> to vector<16x1xf32>
      %cst_38 = arith.constant 1.280000e+02 : f32
      %207 = vector.broadcast %cst_38 : f32 to vector<16x1xf32>
      %208 = arith.divf %206, %207 : vector<16x1xf32>
      %209 = vector.broadcast %201 : vector<16x1xf32> to vector<16x128xf32>
      %210 = arith.subf %197, %209 : vector<16x128xf32>
      %cst_39 = arith.constant 9.99999974E-6 : f32
      %211 = vector.broadcast %cst_39 : f32 to vector<16x1xf32>
      %212 = arith.addf %208, %211 : vector<16x1xf32>
      %213 = math.rsqrt %212 : vector<16x1xf32>
      %214 = vector.broadcast %213 : vector<16x1xf32> to vector<16x128xf32>
      %215 = arith.mulf %210, %214 : vector<16x128xf32>
      %216 = vector.broadcast %50 : vector<1x128xf32> to vector<16x128xf32>
      %217 = arith.mulf %215, %216 : vector<16x128xf32>
      %218 = vector.broadcast %51 : vector<1x128xf32> to vector<16x128xf32>
      %219 = arith.addf %217, %218 : vector<16x128xf32>
      %220 = arith.truncf %219 : vector<16x128xf32> to vector<16x128xbf16>
      %221 = arith.index_cast %arg15 : i32 to index
      %c0_40 = arith.constant 0 : index
      %c0_41 = arith.constant 0 : index
      %222 = vector.load %arg7[%221, %c0_40, %c0_41] : memref<6x128x256xbf16, #tpu.memory_space<vmem>>, vector<1x128x256xbf16>
      %223 = vector.shape_cast %222 : vector<1x128x256xbf16> to vector<128x256xbf16>
      %cst_42 = arith.constant dense<0.000000e+00> : vector<16x256xf32>
      %224 = tpu.matmul %220, %223, %cst_42 {dimension_numbers = #tpu.dot_dimension_numbers<[1], [0], [0], [1], [0, 0, 1, 1], [], []>} : vector<16x128xbf16>, vector<128x256xbf16>, vector<16x256xf32> -> vector<16x256xf32>
      %225 = arith.index_cast %arg15 : i32 to index
      %c0_43 = arith.constant 0 : index
      %c0_44 = arith.constant 0 : index
      %226 = vector.load %arg8[%225, %c0_43, %c0_44] : memref<6x1x256xf32, #tpu.memory_space<vmem>>, vector<1x1x256xf32>
      %227 = vector.shape_cast %226 : vector<1x1x256xf32> to vector<1x256xf32>
      %228 = vector.broadcast %227 : vector<1x256xf32> to vector<16x256xf32>
      %229 = arith.addf %224, %228 : vector<16x256xf32>
      %cst_45 = arith.constant 0.000000e+00 : f32
      %230 = vector.broadcast %cst_45 : f32 to vector<16x256xf32>
      %231 = arith.maximumf %229, %230 : vector<16x256xf32>
      %232 = arith.truncf %231 : vector<16x256xf32> to vector<16x256xbf16>
      %233 = arith.index_cast %arg15 : i32 to index
      %c0_46 = arith.constant 0 : index
      %c0_47 = arith.constant 0 : index
      %234 = vector.load %arg9[%233, %c0_46, %c0_47] : memref<6x256x128xbf16, #tpu.memory_space<vmem>>, vector<1x256x128xbf16>
      %235 = vector.shape_cast %234 : vector<1x256x128xbf16> to vector<256x128xbf16>
      %cst_48 = arith.constant dense<0.000000e+00> : vector<16x128xf32>
      %236 = tpu.matmul %232, %235, %cst_48 {dimension_numbers = #tpu.dot_dimension_numbers<[1], [0], [0], [1], [0, 0, 1, 1], [], []>} : vector<16x256xbf16>, vector<256x128xbf16>, vector<16x128xf32> -> vector<16x128xf32>
      %237 = vector.broadcast %52 : vector<1x128xf32> to vector<16x128xf32>
      %238 = arith.addf %236, %237 : vector<16x128xf32>
      %239 = arith.addf %219, %238 : vector<16x128xf32>
      %cst_49 = arith.constant dense<0.000000e+00> : vector<16xf32>
      %240 = vector.multi_reduction <add>, %239, %cst_49 [1] : vector<16x128xf32> to vector<16xf32>
      %241 = vector.shape_cast %240 : vector<16xf32> to vector<16x1xf32>
      %cst_50 = arith.constant 1.280000e+02 : f32
      %242 = vector.broadcast %cst_50 : f32 to vector<16x1xf32>
      %243 = arith.divf %241, %242 : vector<16x1xf32>
      %244 = vector.broadcast %243 : vector<16x1xf32> to vector<16x128xf32>
      %245 = arith.subf %239, %244 : vector<16x128xf32>
      %246 = arith.mulf %245, %245 : vector<16x128xf32>
      %cst_51 = arith.constant dense<0.000000e+00> : vector<16xf32>
      %247 = vector.multi_reduction <add>, %246, %cst_51 [1] : vector<16x128xf32> to vector<16xf32>
      %248 = vector.shape_cast %247 : vector<16xf32> to vector<16x1xf32>
      %cst_52 = arith.constant 1.280000e+02 : f32
      %249 = vector.broadcast %cst_52 : f32 to vector<16x1xf32>
      %250 = arith.divf %248, %249 : vector<16x1xf32>
      %251 = vector.broadcast %243 : vector<16x1xf32> to vector<16x128xf32>
      %252 = arith.subf %239, %251 : vector<16x128xf32>
      %cst_53 = arith.constant 9.99999974E-6 : f32
      %253 = vector.broadcast %cst_53 : f32 to vector<16x1xf32>
      %254 = arith.addf %250, %253 : vector<16x1xf32>
      %255 = math.rsqrt %254 : vector<16x1xf32>
      %256 = vector.broadcast %255 : vector<16x1xf32> to vector<16x128xf32>
      %257 = arith.mulf %252, %256 : vector<16x128xf32>
      %258 = vector.broadcast %53 : vector<1x128xf32> to vector<16x128xf32>
      %259 = arith.mulf %257, %258 : vector<16x128xf32>
      %260 = vector.broadcast %54 : vector<1x128xf32> to vector<16x128xf32>
      %261 = arith.addf %259, %260 : vector<16x128xf32>
      scf.yield %261 : vector<16x128xf32>
    }
    %c6_i32_4 = arith.constant 6 : i32
    %c0_5 = arith.constant 0 : index
    %c0_6 = arith.constant 0 : index
    %8 = vector.load %arg11[%c0_5, %c0_6] : memref<2x128xf32, #tpu.memory_space<vmem>>, vector<2x128xf32>
    %9 = vector.extract_strided_slice %8 {offsets = [0, 0], sizes = [1, 128], strides = [1, 1]} : vector<2x128xf32> to vector<1x128xf32>
    %10 = vector.extract_strided_slice %8 {offsets = [1, 0], sizes = [1, 128], strides = [1, 1]} : vector<2x128xf32> to vector<1x128xf32>
    %cst = arith.constant dense<0.000000e+00> : vector<16xf32>
    %11 = vector.multi_reduction <add>, %7, %cst [1] : vector<16x128xf32> to vector<16xf32>
    %12 = vector.shape_cast %11 : vector<16xf32> to vector<16x1xf32>
    %cst_7 = arith.constant 1.280000e+02 : f32
    %13 = vector.broadcast %cst_7 : f32 to vector<16x1xf32>
    %14 = arith.divf %12, %13 : vector<16x1xf32>
    %15 = vector.broadcast %14 : vector<16x1xf32> to vector<16x128xf32>
    %16 = arith.subf %7, %15 : vector<16x128xf32>
    %17 = arith.mulf %16, %16 : vector<16x128xf32>
    %cst_8 = arith.constant dense<0.000000e+00> : vector<16xf32>
    %18 = vector.multi_reduction <add>, %17, %cst_8 [1] : vector<16x128xf32> to vector<16xf32>
    %19 = vector.shape_cast %18 : vector<16xf32> to vector<16x1xf32>
    %cst_9 = arith.constant 1.280000e+02 : f32
    %20 = vector.broadcast %cst_9 : f32 to vector<16x1xf32>
    %21 = arith.divf %19, %20 : vector<16x1xf32>
    %22 = vector.broadcast %14 : vector<16x1xf32> to vector<16x128xf32>
    %23 = arith.subf %7, %22 : vector<16x128xf32>
    %cst_10 = arith.constant 9.99999974E-6 : f32
    %24 = vector.broadcast %cst_10 : f32 to vector<16x1xf32>
    %25 = arith.addf %21, %24 : vector<16x1xf32>
    %26 = math.rsqrt %25 : vector<16x1xf32>
    %27 = vector.broadcast %26 : vector<16x1xf32> to vector<16x128xf32>
    %28 = arith.mulf %23, %27 : vector<16x128xf32>
    %29 = vector.broadcast %9 : vector<1x128xf32> to vector<16x128xf32>
    %30 = arith.mulf %28, %29 : vector<16x128xf32>
    %31 = vector.broadcast %10 : vector<1x128xf32> to vector<16x128xf32>
    %32 = arith.addf %30, %31 : vector<16x128xf32>
    %33 = vector.shape_cast %32 : vector<16x128xf32> to vector<2x8x128xf32>
    %c0_11 = arith.constant 0 : index
    %c0_12 = arith.constant 0 : index
    %34 = vector.load %arg3[%c0_11, %c0_12] : memref<2x8xf32, #tpu.memory_space<vmem>>, vector<2x8xf32>
    %35 = vector.shape_cast %34 : vector<2x8xf32> to vector<2x8x1xf32>
    %36 = vector.broadcast %35 : vector<2x8x1xf32> to vector<2x8x128xf32>
    %37 = arith.mulf %33, %36 : vector<2x8x128xf32>
    %cst_13 = arith.constant dense<0.000000e+00> : vector<2x128xf32>
    %38 = vector.multi_reduction <add>, %37, %cst_13 [1] : vector<2x8x128xf32> to vector<2x128xf32>
    %39 = arith.truncf %38 : vector<2x128xf32> to vector<2x128xbf16>
    %c0_14 = arith.constant 0 : index
    %c0_15 = arith.constant 0 : index
    %40 = vector.load %arg12[%c0_14, %c0_15] : memref<128x128xbf16, #tpu.memory_space<vmem>>, vector<128x128xbf16>
    %cst_16 = arith.constant dense<0.000000e+00> : vector<2x128xf32>
    %41 = tpu.matmul %39, %40, %cst_16 {dimension_numbers = #tpu.dot_dimension_numbers<[1], [0], [0], [1], [0, 0, 1, 1], [], []>} : vector<2x128xbf16>, vector<128x128xbf16>, vector<2x128xf32> -> vector<2x128xf32>
    %c0_17 = arith.constant 0 : index
    %c0_18 = arith.constant 0 : index
    %42 = vector.load %arg13[%c0_17, %c0_18] : memref<1x128xf32, #tpu.memory_space<vmem>>, vector<1x128xf32>
    %43 = vector.broadcast %42 : vector<1x128xf32> to vector<2x128xf32>
    %44 = arith.addf %41, %43 : vector<2x128xf32>
    %c0_19 = arith.constant 0 : index
    %c0_20 = arith.constant 0 : index
    %45 = vector.load %arg14[%c0_19, %c0_20] : memref<2x128xf32, #tpu.memory_space<vmem>>, vector<2x128xf32>
    tpu.vector_store %arg14[%c0_19, %c0_20], %44 {strides = array<i32>} : memref<2x128xf32, #tpu.memory_space<vmem>>, vector<2x128xf32>,
    return
  }
  func.func @transform_0(%arg0: i32) -> (i32, i32) {
    %c0_i32 = arith.constant 0 : i32
    %c0_i32_0 = arith.constant 0 : i32
    return %arg0, %c0_i32 : i32, i32
  }
  func.func @transform_1(%arg0: i32) -> (i32, i32, i32) {
    %c0_i32 = arith.constant 0 : i32
    %c0_i32_0 = arith.constant 0 : i32
    %c0_i32_1 = arith.constant 0 : i32
    return %arg0, %c0_i32, %c0_i32_0 : i32, i32, i32
  }
  func.func @transform_2(%arg0: i32) -> (i32, i32) {
    %c0_i32 = arith.constant 0 : i32
    %c0_i32_0 = arith.constant 0 : i32
    return %arg0, %c0_i32 : i32, i32
  }
  func.func @transform_3(%arg0: i32) -> (i32, i32, i32) {
    %c0_i32 = arith.constant 0 : i32
    %c0_i32_0 = arith.constant 0 : i32
    %c0_i32_1 = arith.constant 0 : i32
    %c0_i32_2 = arith.constant 0 : i32
    return %c0_i32, %c0_i32_0, %c0_i32_1 : i32, i32, i32
  }
  func.func @transform_4(%arg0: i32) -> (i32, i32, i32) {
    %c0_i32 = arith.constant 0 : i32
    %c0_i32_0 = arith.constant 0 : i32
    %c0_i32_1 = arith.constant 0 : i32
    %c0_i32_2 = arith.constant 0 : i32
    return %c0_i32, %c0_i32_0, %c0_i32_1 : i32, i32, i32
  }
  func.func @transform_5(%arg0: i32) -> (i32, i32, i32) {
    %c0_i32 = arith.constant 0 : i32
    %c0_i32_0 = arith.constant 0 : i32
    %c0_i32_1 = arith.constant 0 : i32
    %c0_i32_2 = arith.constant 0 : i32
    return %c0_i32, %c0_i32_0, %c0_i32_1 : i32, i32, i32
  }
  func.func @transform_6(%arg0: i32) -> (i32, i32, i32) {
    %c0_i32 = arith.constant 0 : i32
    %c0_i32_0 = arith.constant 0 : i32
    %c0_i32_1 = arith.constant 0 : i32
    %c0_i32_2 = arith.constant 0 : i32
    return %c0_i32, %c0_i32_0, %c0_i32_1 : i32, i32, i32
  }
  func.func @transform_7(%arg0: i32) -> (i32, i32, i32) {
    %c0_i32 = arith.constant 0 : i32
    %c0_i32_0 = arith.constant 0 : i32
    %c0_i32_1 = arith.constant 0 : i32
    %c0_i32_2 = arith.constant 0 : i32
    return %c0_i32, %c0_i32_0, %c0_i32_1 : i32, i32, i32
  }
  func.func @transform_8(%arg0: i32) -> (i32, i32, i32) {
    %c0_i32 = arith.constant 0 : i32
    %c0_i32_0 = arith.constant 0 : i32
    %c0_i32_1 = arith.constant 0 : i32
    %c0_i32_2 = arith.constant 0 : i32
    return %c0_i32, %c0_i32_0, %c0_i32_1 : i32, i32, i32
  }
  func.func @transform_9(%arg0: i32) -> (i32, i32, i32) {
    %c0_i32 = arith.constant 0 : i32
    %c0_i32_0 = arith.constant 0 : i32
    %c0_i32_1 = arith.constant 0 : i32
    %c0_i32_2 = arith.constant 0 : i32
    return %c0_i32, %c0_i32_0, %c0_i32_1 : i32, i32, i32
  }
  func.func @transform_10(%arg0: i32) -> (i32, i32) {
    %c0_i32 = arith.constant 0 : i32
    %c0_i32_0 = arith.constant 0 : i32
    %c0_i32_1 = arith.constant 0 : i32
    return %c0_i32, %c0_i32_0 : i32, i32
  }
  func.func @transform_11(%arg0: i32) -> (i32, i32) {
    %c0_i32 = arith.constant 0 : i32
    %c0_i32_0 = arith.constant 0 : i32
    %c0_i32_1 = arith.constant 0 : i32
    return %c0_i32, %c0_i32_0 : i32, i32
  }
  func.func @transform_12(%arg0: i32) -> (i32, i32) {
    %c0_i32 = arith.constant 0 : i32
    %c0_i32_0 = arith.constant 0 : i32
    %c0_i32_1 = arith.constant 0 : i32
    return %c0_i32, %c0_i32_0 : i32, i32
  }
  func.func @transform_13(%arg0: i32) -> (i32, i32) {
    %c0_i32 = arith.constant 0 : i32
    %c0_i32_0 = arith.constant 0 : i32
    return %arg0, %c0_i32 : i32, i32
  }
}

</mosaic_0001>

<llo_original>
// kernel: forward.1
$region0: #{forward.1}
  #allocation0 [shape = 'u32[]', space=smem, size = 0x4, offset = 0x4, fixed_abs, tag = 'smem constant byte address 0x4 - core index']
  #allocation1 [shape = 'u32[144,128]{1,0:T(1,128)}', space=vmem, size = 0x12000, scoped, tag = 'internal scratch']
  %s0 = inlined_call_operand.vmem [shape: f32[16,128], index: 0, kind: input, shape index: {}]
  %s1 = inlined_call_operand.vmem [shape: f32[2,1,8], index: 1, kind: input, shape index: {}]
  %s2 = inlined_call_operand.vmem [shape: f32[2,8], index: 2, kind: input, shape index: {}]
  %s3 = inlined_call_operand.hbm [shape: bf16[6,128,384], index: 3, kind: input, shape index: {}]
  %s4 = inlined_call_operand.vmem [shape: f32[6,1,384], index: 4, kind: input, shape index: {}]
  %s5 = inlined_call_operand.hbm [shape: bf16[6,128,128], index: 5, kind: input, shape index: {}]
  %s6 = inlined_call_operand.hbm [shape: bf16[6,128,256], index: 6, kind: input, shape index: {}]
  %s7 = inlined_call_operand.vmem [shape: f32[6,1,256], index: 7, kind: input, shape index: {}]
  %s8 = inlined_call_operand.hbm [shape: bf16[6,256,128], index: 8, kind: input, shape index: {}]
  %s9 = inlined_call_operand.vmem [shape: f32[6,6,128], index: 9, kind: input, shape index: {}]
  %s10 = inlined_call_operand.vmem [shape: f32[2,128], index: 10, kind: input, shape index: {}]
  %s11 = inlined_call_operand.vmem [shape: bf16[128,128], index: 11, kind: input, shape index: {}]
  %s12 = inlined_call_operand.vmem [shape: f32[1,128], index: 12, kind: input, shape index: {}]
  %s13 = inlined_call_operand.vmem [shape: f32[2,128], index: 13, kind: output, shape index: {}]
  %s14 = sld [smem:[#allocation0]]
  $region85: #{forward.1} parent=0
    _
  %s16 = ssub.s32 1, %s14
  %s17 = scalar_select 0, %s16, %s14
  $region1: #{forward.1} parent=0
    #allocation2 [shape = 'u8[589824]{0}', space=vmem, size = 0x90000, scoped, tag = 'input window, operand 3, single buffered']
    #allocation3 [shape = 's32[1]{0}', space=sflag, size = 0x4, scoped, tag = 'scoped memory for forward.1']
    #allocation4 [shape = 'u8[196608]{0}', space=vmem, size = 0x30000, scoped, tag = 'input window, operand 5, single buffered']
    #allocation5 [shape = 's32[1]{0}', space=sflag, size = 0x4, scoped, tag = 'scoped memory for forward.1']
    #allocation6 [shape = 'u8[393216]{0}', space=vmem, size = 0x60000, scoped, tag = 'input window, operand 6, single buffered']
    #allocation7 [shape = 'u8[393216]{0}', space=vmem, size = 0x60000, scoped, tag = 'input window, operand 8, single buffered']
    #allocation8 [shape = 's32[1]{0}', space=sflag, size = 0x4, scoped, tag = 'scoped memory for forward.1']
    %18 = vsyncpa [#allocation3], 0
    %19 = vsyncpa [#allocation5], 0
    %20 = vsyncpa [#allocation8], 0
    // Predicated region
    $region2: #{forward.1} parent=1 // pred_check
      _
    $region3: #{forward.1} parent=1 // pred_check_branch
      %22 = sbr.rel (0) target = $region5
    $region4: #{forward.1} parent=1 // pred_region
      _
    $region5: #{forward.1} parent=1 // pred_fallthru
      _
    // Predicated region
    $region6: #{forward.1} parent=1 // pred_check
      _
    $region7: #{forward.1} parent=1 // pred_check_branch
      %24 = sbr.rel (0) target = $region9
    $region8: #{forward.1} parent=1 // pred_region
      _
    $region9: #{forward.1} parent=1 // pred_fallthru
      _
    // Predicated region
    $region10: #{forward.1} parent=1 // pred_check
      _
    $region11: #{forward.1} parent=1 // pred_check_branch
      %26 = sbr.rel (0) target = $region13
    $region12: #{forward.1} parent=1 // pred_region
      _
    $region13: #{forward.1} parent=1 // pred_fallthru
      _
    // Predicated region
    $region14: #{forward.1} parent=1 // pred_check
      _
    $region15: #{forward.1} parent=1 // pred_check_branch
      %28 = sbr.rel (0) target = $region17
    $region16: #{forward.1} parent=1 // pred_region
      %s30 = ssub.s32 18432, 18432
      %31 = vsyncadd [#allocation3], %s30
      %s32 = sshll.u32 [#allocation2], 4
      %s33 = int_to_ptr.vmem [resolvable:$true] %s32
      %38 = dma.hbm_to_vmem [thread:$0]  %s3, 18432, %s33, [#allocation3], 192, 192, 12
    $region17: #{forward.1} parent=1 // pred_fallthru
      _
    // Predicated region
    $region18: #{forward.1} parent=1 // pred_check
      _
    $region19: #{forward.1} parent=1 // pred_check_branch
      %40 = sbr.rel (0) target = $region21
    $region20: #{forward.1} parent=1 // pred_region
      _
    $region21: #{forward.1} parent=1 // pred_fallthru
      _
    // Predicated region
    $region22: #{forward.1} parent=1 // pred_check
      _
    $region23: #{forward.1} parent=1 // pred_check_branch
      %42 = sbr.rel (0) target = $region25
    $region24: #{forward.1} parent=1 // pred_region
      %s44 = ssub.s32 6144, 6144
      %45 = vsyncadd [#allocation5], %s44
      %s46 = sshll.u32 [#allocation4], 4
      %s47 = int_to_ptr.vmem [resolvable:$true] %s46
      %52 = dma.hbm_to_vmem [thread:$0]  %s5, 6144, %s47, [#allocation5], 64, 64, 4
    $region25: #{forward.1} parent=1 // pred_fallthru
      _
    // Predicated region
    $region26: #{forward.1} parent=1 // pred_check
      _
    $region27: #{forward.1} parent=1 // pred_check_branch
      %54 = sbr.rel (0) target = $region29
    $region28: #{forward.1} parent=1 // pred_region
      %s56 = ssub.s32 12288, 12288
      %57 = vsyncadd [#allocation5], %s56
      %s58 = sshll.u32 [#allocation6], 4
      %s59 = int_to_ptr.vmem [resolvable:$true] %s58
      %64 = dma.hbm_to_vmem [thread:$0]  %s6, 12288, %s59, [#allocation5], 128, 128, 8
    $region29: #{forward.1} parent=1 // pred_fallthru
      _
    // Predicated region
    $region30: #{forward.1} parent=1 // pred_check
      _
    $region31: #{forward.1} parent=1 // pred_check_branch
      %66 = sbr.rel (0) target = $region33
    $region32: #{forward.1} parent=1 // pred_region
      _
    $region33: #{forward.1} parent=1 // pred_fallthru
      _
    // Predicated region
    $region34: #{forward.1} parent=1 // pred_check
      _
    $region35: #{forward.1} parent=1 // pred_check_branch
      %68 = sbr.rel (0) target = $region37
    $region36: #{forward.1} parent=1 // pred_region
      %s70 = ssub.s32 12288, 12288
      %71 = vsyncadd [#allocation8], %s70
      %s72 = sshll.u32 [#allocation7], 4
      %s73 = int_to_ptr.vmem [resolvable:$true] %s72
      %78 = dma.hbm_to_vmem [thread:$0]  %s8, 12288, %s73, [#allocation8], 64, 64, 4
    $region37: #{forward.1} parent=1 // pred_fallthru
      _
    // Predicated region
    $region38: #{forward.1} parent=1 // pred_check
      _
    $region39: #{forward.1} parent=1 // pred_check_branch
      %80 = sbr.rel (0) target = $region41
    $region40: #{forward.1} parent=1 // pred_region
      _
    $region41: #{forward.1} parent=1 // pred_fallthru
      _
    // Predicated region
    $region42: #{forward.1} parent=1 // pred_check
      _
    $region43: #{forward.1} parent=1 // pred_check_branch
      %82 = sbr.rel (0) target = $region45
    $region44: #{forward.1} parent=1 // pred_region
      _
    $region45: #{forward.1} parent=1 // pred_fallthru
      _
    // Predicated region
    $region46: #{forward.1} parent=1 // pred_check
      _
    $region47: #{forward.1} parent=1 // pred_check_branch
      %84 = sbr.rel (0) target = $region49
    $region48: #{forward.1} parent=1 // pred_region
      _
    $region49: #{forward.1} parent=1 // pred_fallthru
      _
    // Predicated region
    $region50: #{forward.1} parent=1 // pred_check
      _
    $region51: #{forward.1} parent=1 // pred_check_branch
      %86 = sbr.rel (0) target = $region53
    $region52: #{forward.1} parent=1 // pred_region
      _
    $region53: #{forward.1} parent=1 // pred_fallthru
      _
    // Predicated region
    $region54: #{forward.1} parent=1 // pred_check
      _
    $region55: #{forward.1} parent=1 // pred_check_branch
      %88 = sbr.rel (0) target = $region57
    $region56: #{forward.1} parent=1 // pred_region
      %89 = dma.done [#allocation3], 18432
    $region57: #{forward.1} parent=1 // pred_fallthru
      _
    // Predicated region
    $region58: #{forward.1} parent=1 // pred_check
      _
    $region59: #{forward.1} parent=1 // pred_check_branch
      %91 = sbr.rel (0) target = $region61
    $region60: #{forward.1} parent=1 // pred_region
      %92 = dma.done [#allocation5], 6144
    $region61: #{forward.1} parent=1 // pred_fallthru
      _
    // Predicated region
    $region62: #{forward.1} parent=1 // pred_check
      _
    $region63: #{forward.1} parent=1 // pred_check_branch
      %94 = sbr.rel (0) target = $region65
    $region64: #{forward.1} parent=1 // pred_region
      %95 = dma.done [#allocation5], 12288
    $region65: #{forward.1} parent=1 // pred_fallthru
      _
    // Predicated region
    $region66: #{forward.1} parent=1 // pred_check
      _
    $region67: #{forward.1} parent=1 // pred_check_branch
      %97 = sbr.rel (0) target = $region69
    $region68: #{forward.1} parent=1 // pred_region
      %98 = dma.done [#allocation8], 12288
    $region69: #{forward.1} parent=1 // pred_fallthru
      _
    %v100 = vld [vmem:[%s1] sm:$0x1]
    %v101 = vld [vmem:[%s1 + $0x1] sm:$0x1]
    %v102 = vld [vmem:[%s0] sm:$0xff]
    %v103 = vld [vmem:[%s0 + $0x8] sm:$0xff]
    loop: start=0, step=1, limit=6
    $region70: #{forward.1} parent=1 // loop_pre_header
      _
    $region71: #{forward.1} parent=1 // loop_header
      %s105 = sphi 0, %s109
      %p106 = scmp.ge.s32.totalorder %s105, 6
      %v110 = vphi %v102, %v2839
      %v111 = vphi %v103, %v2840
    $region72: #{forward.1} parent=1 // loop_header_branch
      %108 = sbr.rel (%p106) target = $region76
    $region73: #{forward.1} parent=1 // loop_body
      %s112 = smul.u32 %s105, 8
      %s113 = scalar_lea.vmem %s9, %s112
      %v114 = vld [vmem:[%s113] sm:$0x3f]
      %v115 = vpack.c.bf16 %v111, %v110
      %s116 = smul.u32 %s105, 48
      %s117 = smul.addr %s116, 4
      %s118 = scalar_lea.vmem [#allocation2], %s117
      %v119 = vld [vmem:[%s118] sm:$0xff]
      %v120 = vld [vmem:[%s118 + $0x8] sm:$0xf]
      %v121 = vld [vmem:[%s118 + $0xc] sm:$0xff]
      %v122 = vld [vmem:[%s118 + $0x14] sm:$0xf]
      %v123 = vld [vmem:[%s118 + $0x18] sm:$0xff]
      %v124 = vld [vmem:[%s118 + $0x20] sm:$0xf]
      %v125 = vld [vmem:[%s118 + $0x24] sm:$0xff]
      %v126 = vld [vmem:[%s118 + $0x2c] sm:$0xf]
      %v127 = vld [vmem:[%s118 + $0x30] sm:$0xff]
      %v128 = vld [vmem:[%s118 + $0x38] sm:$0xf]
      %v129 = vld [vmem:[%s118 + $0x3c] sm:$0xff]
      %v130 = vld [vmem:[%s118 + $0x44] sm:$0xf]
      %v131 = vld [vmem:[%s118 + $0x48] sm:$0xff]
      %v132 = vld [vmem:[%s118 + $0x50] sm:$0xf]
      %v133 = vld [vmem:[%s118 + $0x54] sm:$0xff]
      %v134 = vld [vmem:[%s118 + $0x5c] sm:$0xf]
      %v135 = vld [vmem:[%s118 + $0x60] sm:$0xff]
      %v136 = vld [vmem:[%s118 + $0x68] sm:$0xf]
      %v137 = vld [vmem:[%s118 + $0x6c] sm:$0xff]
      %v138 = vld [vmem:[%s118 + $0x74] sm:$0xf]
      %v139 = vld [vmem:[%s118 + $0x78] sm:$0xff]
      %v140 = vld [vmem:[%s118 + $0x80] sm:$0xf]
      %v141 = vld [vmem:[%s118 + $0x84] sm:$0xff]
      %v142 = vld [vmem:[%s118 + $0x8c] sm:$0xf]
      %v143 = vld [vmem:[%s118 + $0x90] sm:$0xff]
      %v144 = vld [vmem:[%s118 + $0x98] sm:$0xf]
      %v145 = vld [vmem:[%s118 + $0x9c] sm:$0xff]
      %v146 = vld [vmem:[%s118 + $0xa4] sm:$0xf]
      %v147 = vld [vmem:[%s118 + $0xa8] sm:$0xff]
      %v148 = vld [vmem:[%s118 + $0xb0] sm:$0xf]
      %v149 = vld [vmem:[%s118 + $0xb4] sm:$0xff]
      %v150 = vld [vmem:[%s118 + $0xbc] sm:$0xf]
      %s151 = smul.u32 %s105, 3
      %s152 = scalar_lea.vmem %s4, %s151
      %v153 = vld [vmem:[%s152] sm:$0x7]
      %v155 = vlaneseq
      %v156 = vshrl.u32 %v155, 7
      %v157 = vsub.s32 0, %v156
      %v158 = vrot.slane %v153, %v157
      %v159 = vlaneseq
      %v160 = vshrl.u32 %v159, 7
      %v161 = vsub.s32 1, %v160
      %v162 = vrot.slane %v153, %v161
      %v163 = vlaneseq
      %v164 = vshrl.u32 %v163, 7
      %v165 = vsub.s32 2, %v164
      %v166 = vrot.slane %v153, %v165
      %v202 = vunpack.c.l.b16 %v119
      %v203 = vunpack.c.h.b16 %v119
      %v204 = vunpack.c.l.b16 %v120
      %v205 = vunpack.c.l.b16 %v121
      %v206 = vunpack.c.h.b16 %v121
      %v207 = vunpack.c.l.b16 %v122
      %v208 = vunpack.c.l.b16 %v123
      %v209 = vunpack.c.h.b16 %v123
      %v210 = vunpack.c.l.b16 %v124
      %v211 = vunpack.c.l.b16 %v125
      %v212 = vunpack.c.h.b16 %v125
      %v213 = vunpack.c.l.b16 %v126
      %v214 = vunpack.c.l.b16 %v127
      %v215 = vunpack.c.h.b16 %v127
      %v216 = vunpack.c.l.b16 %v128
      %v217 = vunpack.c.l.b16 %v129
      %v218 = vunpack.c.h.b16 %v129
      %v219 = vunpack.c.l.b16 %v130
      %v220 = vunpack.c.l.b16 %v131
      %v221 = vunpack.c.h.b16 %v131
      %v222 = vunpack.c.l.b16 %v132
      %v223 = vunpack.c.l.b16 %v133
      %v224 = vunpack.c.h.b16 %v133
      %v225 = vunpack.c.l.b16 %v134
      %v226 = vunpack.c.l.b16 %v135
      %v227 = vunpack.c.h.b16 %v135
      %v228 = vunpack.c.l.b16 %v136
      %v229 = vunpack.c.l.b16 %v137
      %v230 = vunpack.c.h.b16 %v137
      %v231 = vunpack.c.l.b16 %v138
      %v232 = vunpack.c.l.b16 %v139
      %v233 = vunpack.c.h.b16 %v139
      %v234 = vunpack.c.l.b16 %v140
      %v235 = vunpack.c.l.b16 %v141
      %v236 = vunpack.c.h.b16 %v141
      %v237 = vunpack.c.l.b16 %v142
      %v238 = vunpack.c.l.b16 %v143
      %v239 = vunpack.c.h.b16 %v143
      %v240 = vunpack.c.l.b16 %v144
      %v241 = vunpack.c.l.b16 %v145
      %v242 = vunpack.c.h.b16 %v145
      %v243 = vunpack.c.l.b16 %v146
      %v244 = vunpack.c.l.b16 %v147
      %v245 = vunpack.c.h.b16 %v147
      %v246 = vunpack.c.l.b16 %v148
      %v247 = vunpack.c.l.b16 %v149
      %v248 = vunpack.c.h.b16 %v149
      %v249 = vunpack.c.l.b16 %v150
      %v250 = vpack.c.b16 %v205, %v202
      %v251 = vpack.c.b16 %v206, %v203
      %v252 = vpack.c.b16 %v207, %v204
      %v253 = vpack.c.b16 %v211, %v208
      %v254 = vpack.c.b16 %v212, %v209
      %v255 = vpack.c.b16 %v213, %v210
      %v256 = vpack.c.b16 %v217, %v214
      %v257 = vpack.c.b16 %v218, %v215
      %v258 = vpack.c.b16 %v219, %v216
      %v259 = vpack.c.b16 %v223, %v220
      %v260 = vpack.c.b16 %v224, %v221
      %v261 = vpack.c.b16 %v225, %v222
      %v262 = vpack.c.b16 %v229, %v226
      %v263 = vpack.c.b16 %v230, %v227
      %v264 = vpack.c.b16 %v231, %v228
      %v265 = vpack.c.b16 %v235, %v232
      %v266 = vpack.c.b16 %v236, %v233
      %v267 = vpack.c.b16 %v237, %v234
      %v268 = vpack.c.b16 %v241, %v238
      %v269 = vpack.c.b16 %v242, %v239
      %v270 = vpack.c.b16 %v243, %v240
      %v271 = vpack.c.b16 %v247, %v244
      %v272 = vpack.c.b16 %v248, %v245
      %v273 = vpack.c.b16 %v249, %v246
      %298 = vmatprep.subr.bf16.mxu0 %v272
      %299 = vmatpush1.bf16.msra.mxu0 %v271
      %300 = vmatprep.subr.bf16.mxu0 %v269
      %301 = vmatpush1.bf16.msra.mxu0 %v268
      %302 = vmatprep.subr.bf16.mxu0 %v266
      %303 = vmatpush1.bf16.msra.mxu0 %v265
      %304 = vmatprep.subr.bf16.mxu0 %v263
      %305 = vmatpush1.bf16.msra.mxu0 %v262
      %306 = vmatprep.subr.bf16.mxu0 %v260
      %307 = vmatpush1.bf16.msra.mxu0 %v259
      %308 = vmatprep.subr.bf16.mxu0 %v257
      %309 = vmatpush1.bf16.msra.mxu0 %v256
      %310 = vmatprep.subr.bf16.mxu0 %v254
      %311 = vmatpush1.bf16.msra.mxu0 %v253
      %312 = vmatprep.subr.bf16.mxu0 %v251
      %313 = vmatpush1.bf16.msra.mxu0 %v250
      %314 = vmatprep.subr.bf16.mxu0 0
      %315 = vmatpush2.bf16.msra.mxu0 0
      %316 = vmatprep.subr.bf16.mxu0 0
      %317 = vmatpush2.bf16.msra.mxu0 0
      %318 = vmatprep.subr.bf16.mxu0 0
      %319 = vmatpush2.bf16.msra.mxu0 0
      %320 = vmatprep.subr.bf16.mxu0 0
      %321 = vmatpush2.bf16.msra.mxu0 0
      %322 = vmatprep.subr.bf16.mxu0 0
      %323 = vmatpush2.bf16.msra.mxu0 0
      %324 = vmatprep.subr.bf16.mxu0 0
      %325 = vmatpush2.bf16.msra.mxu0 0
      %326 = vmatprep.subr.bf16.mxu0 0
      %327 = vmatpush2.bf16.msra.mxu0 0
      %328 = vmatprep.subr.bf16.mxu0 0
      %329 = vmatpush2.bf16.msra.mxu0 0
      %330 = vmatprep.mubr.bf16.mxu0 0
      %331 = vmatmul.mubr.bf16.gmra.mxu0 %v115
      %v332 = vpop.f32.mrf.mxu0
      %v333 = vadd.f32 %v158, %v332
      %v334 = vpop.f32.mrf.mxu0
      %v335 = vadd.f32 %v162, %v334
      %v336 = vpop.f32.mrf.mxu0
      %v337 = vadd.f32 %v158, %v336
      %v338 = vpop.f32.mrf.mxu0
      %v339 = vadd.f32 %v162, %v338
      %340 = vdwg.mxu0
      %341 = vmatprep.subr.bf16.mxu0 0
      %342 = vmatpush1.bf16.msra.mxu0 %v273
      %343 = vmatprep.subr.bf16.mxu0 0
      %344 = vmatpush1.bf16.msra.mxu0 %v270
      %345 = vmatprep.subr.bf16.mxu0 0
      %346 = vmatpush1.bf16.msra.mxu0 %v267
      %347 = vmatprep.subr.bf16.mxu0 0
      %348 = vmatpush1.bf16.msra.mxu0 %v264
      %349 = vmatprep.subr.bf16.mxu0 0
      %350 = vmatpush1.bf16.msra.mxu0 %v261
      %351 = vmatprep.subr.bf16.mxu0 0
      %352 = vmatpush1.bf16.msra.mxu0 %v258
      %353 = vmatprep.subr.bf16.mxu0 0
      %354 = vmatpush1.bf16.msra.mxu0 %v255
      %355 = vmatprep.subr.bf16.mxu0 0
      %356 = vmatpush1.bf16.msra.mxu0 %v252
      %357 = vmatprep.subr.bf16.mxu0 0
      %358 = vmatpush2.bf16.msra.mxu0 0
      %359 = vmatprep.subr.bf16.mxu0 0
      %360 = vmatpush2.bf16.msra.mxu0 0
      %361 = vmatprep.subr.bf16.mxu0 0
      %362 = vmatpush2.bf16.msra.mxu0 0
      %363 = vmatprep.subr.bf16.mxu0 0
      %364 = vmatpush2.bf16.msra.mxu0 0
      %365 = vmatprep.subr.bf16.mxu0 0
      %366 = vmatpush2.bf16.msra.mxu0 0
      %367 = vmatprep.subr.bf16.mxu0 0
      %368 = vmatpush2.bf16.msra.mxu0 0
      %369 = vmatprep.subr.bf16.mxu0 0
      %370 = vmatpush2.bf16.msra.mxu0 0
      %371 = vmatprep.subr.bf16.mxu0 0
      %372 = vmatpush2.bf16.msra.mxu0 0
      %373 = vmatprep.mubr.bf16.mxu0 0
      %374 = vmatmul.mubr.bf16.gmra.mxu0 %v115
      %v375 = vpop.f32.mrf.mxu0
      %v376 = vadd.f32 %v166, %v375
      %v377 = vpop.f32.mrf.mxu0
      %v378 = vpop.f32.mrf.mxu0
      %v379 = vadd.f32 %v166, %v378
      %v380 = vpop.f32.mrf.mxu0
      %381 = vdwg.mxu0
      %384 = vrot.lane.b32.xlu0 %v333, 112
      %v385 = vpop.permute.xlu0 %384
      %386 = vrot.lane.b32.xlu0 %v337, 112
      %v387 = vpop.permute.xlu0 %386
      %390 = vrot.lane.b32.xlu0 %v333, 96
      %v391 = vpop.permute.xlu0 %390
      %392 = vrot.lane.b32.xlu0 %v337, 96
      %v393 = vpop.permute.xlu0 %392
      %396 = vrot.lane.b32.xlu0 %v333, 80
      %v397 = vpop.permute.xlu0 %396
      %398 = vrot.lane.b32.xlu0 %v337, 80
      %v399 = vpop.permute.xlu0 %398
      %402 = vrot.lane.b32.xlu0 %v333, 64
      %v403 = vpop.permute.xlu0 %402
      %404 = vrot.lane.b32.xlu0 %v337, 64
      %v405 = vpop.permute.xlu0 %404
      %408 = vrot.lane.b32.xlu0 %v333, 48
      %v409 = vpop.permute.xlu0 %408
      %410 = vrot.lane.b32.xlu0 %v337, 48
      %v411 = vpop.permute.xlu0 %410
      %414 = vrot.lane.b32.xlu0 %v333, 32
      %v415 = vpop.permute.xlu0 %414
      %416 = vrot.lane.b32.xlu0 %v337, 32
      %v417 = vpop.permute.xlu0 %416
      %420 = vrot.lane.b32.xlu0 %v333, 16
      %v421 = vpop.permute.xlu0 %420
      %422 = vrot.lane.b32.xlu0 %v337, 16
      %v423 = vpop.permute.xlu0 %422
      %v426 = vpack.c.bf16 %v333, %v333
      %v427 = vpack.c.bf16 %v337, %v337
      %v428 = vpack.c.bf16 %v385, %v385
      %v429 = vpack.c.bf16 %v387, %v387
      %v430 = vpack.c.bf16 %v391, %v391
      %v431 = vpack.c.bf16 %v393, %v393
      %v432 = vpack.c.bf16 %v397, %v397
      %v433 = vpack.c.bf16 %v399, %v399
      %v434 = vpack.c.bf16 %v403, %v403
      %v435 = vpack.c.bf16 %v405, %v405
      %v436 = vpack.c.bf16 %v409, %v409
      %v437 = vpack.c.bf16 %v411, %v411
      %v438 = vpack.c.bf16 %v415, %v415
      %v439 = vpack.c.bf16 %v417, %v417
      %v440 = vpack.c.bf16 %v421, %v421
      %v441 = vpack.c.bf16 %v423, %v423
      %444 = vrot.lane.b32.xlu0 %v335, 112
      %v445 = vpop.permute.xlu0 %444
      %446 = vrot.lane.b32.xlu0 %v339, 112
      %v447 = vpop.permute.xlu0 %446
      %450 = vrot.lane.b32.xlu0 %v335, 96
      %v451 = vpop.permute.xlu0 %450
      %452 = vrot.lane.b32.xlu0 %v339, 96
      %v453 = vpop.permute.xlu0 %452
      %456 = vrot.lane.b32.xlu0 %v335, 80
      %v457 = vpop.permute.xlu0 %456
      %458 = vrot.lane.b32.xlu0 %v339, 80
      %v459 = vpop.permute.xlu0 %458
      %462 = vrot.lane.b32.xlu0 %v335, 64
      %v463 = vpop.permute.xlu0 %462
      %464 = vrot.lane.b32.xlu0 %v339, 64
      %v465 = vpop.permute.xlu0 %464
      %468 = vrot.lane.b32.xlu0 %v335, 48
      %v469 = vpop.permute.xlu0 %468
      %470 = vrot.lane.b32.xlu0 %v339, 48
      %v471 = vpop.permute.xlu0 %470
      %474 = vrot.lane.b32.xlu0 %v335, 32
      %v475 = vpop.permute.xlu0 %474
      %476 = vrot.lane.b32.xlu0 %v339, 32
      %v477 = vpop.permute.xlu0 %476
      %480 = vrot.lane.b32.xlu0 %v335, 16
      %v481 = vpop.permute.xlu0 %480
      %482 = vrot.lane.b32.xlu0 %v339, 16
      %v483 = vpop.permute.xlu0 %482
      %v486 = vpack.c.bf16 %v335, %v335
      %v487 = vpack.c.bf16 %v339, %v339
      %v488 = vpack.c.bf16 %v445, %v445
      %v489 = vpack.c.bf16 %v447, %v447
      %v490 = vpack.c.bf16 %v451, %v451
      %v491 = vpack.c.bf16 %v453, %v453
      %v492 = vpack.c.bf16 %v457, %v457
      %v493 = vpack.c.bf16 %v459, %v459
      %v494 = vpack.c.bf16 %v463, %v463
      %v495 = vpack.c.bf16 %v465, %v465
      %v496 = vpack.c.bf16 %v469, %v469
      %v497 = vpack.c.bf16 %v471, %v471
      %v498 = vpack.c.bf16 %v475, %v475
      %v499 = vpack.c.bf16 %v477, %v477
      %v500 = vpack.c.bf16 %v481, %v481
      %v501 = vpack.c.bf16 %v483, %v483
      %504 = vrot.lane.b32.xlu0 %v376, 112
      %v505 = vpop.permute.xlu0 %504
      %506 = vrot.lane.b32.xlu0 %v379, 112
      %v507 = vpop.permute.xlu0 %506
      %510 = vrot.lane.b32.xlu0 %v376, 96
      %v511 = vpop.permute.xlu0 %510
      %512 = vrot.lane.b32.xlu0 %v379, 96
      %v513 = vpop.permute.xlu0 %512
      %516 = vrot.lane.b32.xlu0 %v376, 80
      %v517 = vpop.permute.xlu0 %516
      %518 = vrot.lane.b32.xlu0 %v379, 80
      %v519 = vpop.permute.xlu0 %518
      %522 = vrot.lane.b32.xlu0 %v376, 64
      %v523 = vpop.permute.xlu0 %522
      %524 = vrot.lane.b32.xlu0 %v379, 64
      %v525 = vpop.permute.xlu0 %524
      %528 = vrot.lane.b32.xlu0 %v376, 48
      %v529 = vpop.permute.xlu0 %528
      %530 = vrot.lane.b32.xlu0 %v379, 48
      %v531 = vpop.permute.xlu0 %530
      %534 = vrot.lane.b32.xlu0 %v376, 32
      %v535 = vpop.permute.xlu0 %534
      %536 = vrot.lane.b32.xlu0 %v379, 32
      %v537 = vpop.permute.xlu0 %536
      %540 = vrot.lane.b32.xlu0 %v376, 16
      %v541 = vpop.permute.xlu0 %540
      %542 = vrot.lane.b32.xlu0 %v379, 16
      %v543 = vpop.permute.xlu0 %542
      %v546 = vpack.c.bf16 %v376, %v376
      %v547 = vpack.c.bf16 %v379, %v379
      %v548 = vpack.c.bf16 %v505, %v505
      %v549 = vpack.c.bf16 %v507, %v507
      %v550 = vpack.c.bf16 %v511, %v511
      %v551 = vpack.c.bf16 %v513, %v513
      %v552 = vpack.c.bf16 %v517, %v517
      %v553 = vpack.c.bf16 %v519, %v519
      %v554 = vpack.c.bf16 %v523, %v523
      %v555 = vpack.c.bf16 %v525, %v525
      %v556 = vpack.c.bf16 %v529, %v529
      %v557 = vpack.c.bf16 %v531, %v531
      %v558 = vpack.c.bf16 %v535, %v535
      %v559 = vpack.c.bf16 %v537, %v537
      %v560 = vpack.c.bf16 %v541, %v541
      %v561 = vpack.c.bf16 %v543, %v543
      %v564 = vlaneseq
      %v565 = vshrl.u32 %v564, 7
      %v566 = vsub.s32 0, %v565
      %v567 = vrot.slane %v100, %v566
      %v568 = vlaneseq
      %v569 = vshrl.u32 %v568, 7
      %v570 = vsub.s32 0, %v569
      %v571 = vrot.slane %v101, %v570
      %vm574 = vcmask 130048
      %v576 = vsel %vm574, %v426, 0
      %v579 = vsel %vm574, %v486, 0
      %581 = vmatprep.subr.bf16.mxu0 0
      %582 = vmatpush1.bf16.xpose.msra.mxu0 0
      %583 = vmatprep.subr.bf16.mxu0 0
      %584 = vmatpush1.bf16.xpose.msra.mxu0 0
      %585 = vmatprep.subr.bf16.mxu0 0
      %586 = vmatpush1.bf16.xpose.msra.mxu0 0
      %587 = vmatprep.subr.bf16.mxu0 0
      %588 = vmatpush1.bf16.xpose.msra.mxu0 0
      %589 = vmatprep.subr.bf16.mxu0 0
      %590 = vmatpush1.bf16.xpose.msra.mxu0 0
      %591 = vmatprep.subr.bf16.mxu0 0
      %592 = vmatpush1.bf16.xpose.msra.mxu0 0
      %593 = vmatprep.subr.bf16.mxu0 0
      %594 = vmatpush1.bf16.xpose.msra.mxu0 0
      %595 = vmatprep.subr.bf16.mxu0 0
      %596 = vmatpush1.bf16.xpose.msra.mxu0 %v579
      %597 = vmatprep.subr.bf16.mxu0 0
      %598 = vmatpush2.bf16.xpose.msra.mxu0 0
      %599 = vmatprep.subr.bf16.mxu0 0
      %600 = vmatpush2.bf16.xpose.msra.mxu0 0
      %601 = vmatprep.subr.bf16.mxu0 0
      %602 = vmatpush2.bf16.xpose.msra.mxu0 0
      %603 = vmatprep.subr.bf16.mxu0 0
      %604 = vmatpush2.bf16.xpose.msra.mxu0 0
      %605 = vmatprep.subr.bf16.mxu0 0
      %606 = vmatpush2.bf16.xpose.msra.mxu0 0
      %607 = vmatprep.subr.bf16.mxu0 0
      %608 = vmatpush2.bf16.xpose.msra.mxu0 0
      %609 = vmatprep.subr.bf16.mxu0 0
      %610 = vmatpush2.bf16.xpose.msra.mxu0 0
      %611 = vmatprep.subr.bf16.mxu0 0
      %612 = vmatpush2.bf16.xpose.msra.mxu0 0
      %613 = vmatprep.mubr.bf16.mxu0 0
      %614 = vmatmul.mubr.bf16.gmra.mxu0 %v576
      %v615 = vpop.f32.mrf.mxu0
      %v616 = vadd.f32 %v567, %v615
      %v617 = vpop.f32.mrf.mxu0
      %v618 = vpop.f32.mrf.mxu0
      %v619 = vpop.f32.mrf.mxu0
      %620 = vdwg.mxu0
      %v622 = vsel %vm574, %v427, 0
      %v625 = vsel %vm574, %v487, 0
      %627 = vmatprep.subr.bf16.mxu0 0
      %628 = vmatpush1.bf16.xpose.msra.mxu0 0
      %629 = vmatprep.subr.bf16.mxu0 0
      %630 = vmatpush1.bf16.xpose.msra.mxu0 0
      %631 = vmatprep.subr.bf16.mxu0 0
      %632 = vmatpush1.bf16.xpose.msra.mxu0 0
      %633 = vmatprep.subr.bf16.mxu0 0
      %634 = vmatpush1.bf16.xpose.msra.mxu0 0
      %635 = vmatprep.subr.bf16.mxu0 0
      %636 = vmatpush1.bf16.xpose.msra.mxu0 0
      %637 = vmatprep.subr.bf16.mxu0 0
      %638 = vmatpush1.bf16.xpose.msra.mxu0 0
      %639 = vmatprep.subr.bf16.mxu0 0
      %640 = vmatpush1.bf16.xpose.msra.mxu0 0
      %641 = vmatprep.subr.bf16.mxu0 0
      %642 = vmatpush1.bf16.xpose.msra.mxu0 %v625
      %643 = vmatprep.subr.bf16.mxu0 0
      %644 = vmatpush2.bf16.xpose.msra.mxu0 0
      %645 = vmatprep.subr.bf16.mxu0 0
      %646 = vmatpush2.bf16.xpose.msra.mxu0 0
      %647 = vmatprep.subr.bf16.mxu0 0
      %648 = vmatpush2.bf16.xpose.msra.mxu0 0
      %649 = vmatprep.subr.bf16.mxu0 0
      %650 = vmatpush2.bf16.xpose.msra.mxu0 0
      %651 = vmatprep.subr.bf16.mxu0 0
      %652 = vmatpush2.bf16.xpose.msra.mxu0 0
      %653 = vmatprep.subr.bf16.mxu0 0
      %654 = vmatpush2.bf16.xpose.msra.mxu0 0
      %655 = vmatprep.subr.bf16.mxu0 0
      %656 = vmatpush2.bf16.xpose.msra.mxu0 0
      %657 = vmatprep.subr.bf16.mxu0 0
      %658 = vmatpush2.bf16.xpose.msra.mxu0 0
      %659 = vmatprep.mubr.bf16.mxu0 0
      %660 = vmatmul.mubr.bf16.gmra.mxu0 %v622
      %v661 = vpop.f32.mrf.mxu0
      %v662 = vadd.f32 %v571, %v661
      %v663 = vpop.f32.mrf.mxu0
      %v664 = vpop.f32.mrf.mxu0
      %v665 = vpop.f32.mrf.mxu0
      %666 = vdwg.mxu0
      %v668 = vsel %vm574, %v428, 0
      %v671 = vsel %vm574, %v488, 0
      %673 = vmatprep.subr.bf16.mxu0 0
      %674 = vmatpush1.bf16.xpose.msra.mxu0 0
      %675 = vmatprep.subr.bf16.mxu0 0
      %676 = vmatpush1.bf16.xpose.msra.mxu0 0
      %677 = vmatprep.subr.bf16.mxu0 0
      %678 = vmatpush1.bf16.xpose.msra.mxu0 0
      %679 = vmatprep.subr.bf16.mxu0 0
      %680 = vmatpush1.bf16.xpose.msra.mxu0 0
      %681 = vmatprep.subr.bf16.mxu0 0
      %682 = vmatpush1.bf16.xpose.msra.mxu0 0
      %683 = vmatprep.subr.bf16.mxu0 0
      %684 = vmatpush1.bf16.xpose.msra.mxu0 0
      %685 = vmatprep.subr.bf16.mxu0 0
      %686 = vmatpush1.bf16.xpose.msra.mxu0 0
      %687 = vmatprep.subr.bf16.mxu0 0
      %688 = vmatpush1.bf16.xpose.msra.mxu0 %v671
      %689 = vmatprep.subr.bf16.mxu0 0
      %690 = vmatpush2.bf16.xpose.msra.mxu0 0
      %691 = vmatprep.subr.bf16.mxu0 0
      %692 = vmatpush2.bf16.xpose.msra.mxu0 0
      %693 = vmatprep.subr.bf16.mxu0 0
      %694 = vmatpush2.bf16.xpose.msra.mxu0 0
      %695 = vmatprep.subr.bf16.mxu0 0
      %696 = vmatpush2.bf16.xpose.msra.mxu0 0
      %697 = vmatprep.subr.bf16.mxu0 0
      %698 = vmatpush2.bf16.xpose.msra.mxu0 0
      %699 = vmatprep.subr.bf16.mxu0 0
      %700 = vmatpush2.bf16.xpose.msra.mxu0 0
      %701 = vmatprep.subr.bf16.mxu0 0
      %702 = vmatpush2.bf16.xpose.msra.mxu0 0
      %703 = vmatprep.subr.bf16.mxu0 0
      %704 = vmatpush2.bf16.xpose.msra.mxu0 0
      %705 = vmatprep.mubr.bf16.mxu0 0
      %706 = vmatmul.mubr.bf16.gmra.mxu0 %v668
      %v707 = vpop.f32.mrf.mxu0
      %v708 = vadd.f32 %v567, %v707
      %v709 = vpop.f32.mrf.mxu0
      %v710 = vpop.f32.mrf.mxu0
      %v711 = vpop.f32.mrf.mxu0
      %712 = vdwg.mxu0
      %v714 = vsel %vm574, %v429, 0
      %v717 = vsel %vm574, %v489, 0
      %719 = vmatprep.subr.bf16.mxu0 0
      %720 = vmatpush1.bf16.xpose.msra.mxu0 0
      %721 = vmatprep.subr.bf16.mxu0 0
      %722 = vmatpush1.bf16.xpose.msra.mxu0 0
      %723 = vmatprep.subr.bf16.mxu0 0
      %724 = vmatpush1.bf16.xpose.msra.mxu0 0
      %725 = vmatprep.subr.bf16.mxu0 0
      %726 = vmatpush1.bf16.xpose.msra.mxu0 0
      %727 = vmatprep.subr.bf16.mxu0 0
      %728 = vmatpush1.bf16.xpose.msra.mxu0 0
      %729 = vmatprep.subr.bf16.mxu0 0
      %730 = vmatpush1.bf16.xpose.msra.mxu0 0
      %731 = vmatprep.subr.bf16.mxu0 0
      %732 = vmatpush1.bf16.xpose.msra.mxu0 0
      %733 = vmatprep.subr.bf16.mxu0 0
      %734 = vmatpush1.bf16.xpose.msra.mxu0 %v717
      %735 = vmatprep.subr.bf16.mxu0 0
      %736 = vmatpush2.bf16.xpose.msra.mxu0 0
      %737 = vmatprep.subr.bf16.mxu0 0
      %738 = vmatpush2.bf16.xpose.msra.mxu0 0
      %739 = vmatprep.subr.bf16.mxu0 0
      %740 = vmatpush2.bf16.xpose.msra.mxu0 0
      %741 = vmatprep.subr.bf16.mxu0 0
      %742 = vmatpush2.bf16.xpose.msra.mxu0 0
      %743 = vmatprep.subr.bf16.mxu0 0
      %744 = vmatpush2.bf16.xpose.msra.mxu0 0
      %745 = vmatprep.subr.bf16.mxu0 0
      %746 = vmatpush2.bf16.xpose.msra.mxu0 0
      %747 = vmatprep.subr.bf16.mxu0 0
      %748 = vmatpush2.bf16.xpose.msra.mxu0 0
      %749 = vmatprep.subr.bf16.mxu0 0
      %750 = vmatpush2.bf16.xpose.msra.mxu0 0
      %751 = vmatprep.mubr.bf16.mxu0 0
      %752 = vmatmul.mubr.bf16.gmra.mxu0 %v714
      %v753 = vpop.f32.mrf.mxu0
      %v754 = vadd.f32 %v571, %v753
      %v755 = vpop.f32.mrf.mxu0
      %v756 = vpop.f32.mrf.mxu0
      %v757 = vpop.f32.mrf.mxu0
      %758 = vdwg.mxu0
      %v760 = vsel %vm574, %v430, 0
      %v763 = vsel %vm574, %v490, 0
      %765 = vmatprep.subr.bf16.mxu0 0
      %766 = vmatpush1.bf16.xpose.msra.mxu0 0
      %767 = vmatprep.subr.bf16.mxu0 0
      %768 = vmatpush1.bf16.xpose.msra.mxu0 0
      %769 = vmatprep.subr.bf16.mxu0 0
      %770 = vmatpush1.bf16.xpose.msra.mxu0 0
      %771 = vmatprep.subr.bf16.mxu0 0
      %772 = vmatpush1.bf16.xpose.msra.mxu0 0
      %773 = vmatprep.subr.bf16.mxu0 0
      %774 = vmatpush1.bf16.xpose.msra.mxu0 0
      %775 = vmatprep.subr.bf16.mxu0 0
      %776 = vmatpush1.bf16.xpose.msra.mxu0 0
      %777 = vmatprep.subr.bf16.mxu0 0
      %778 = vmatpush1.bf16.xpose.msra.mxu0 0
      %779 = vmatprep.subr.bf16.mxu0 0
      %780 = vmatpush1.bf16.xpose.msra.mxu0 %v763
      %781 = vmatprep.subr.bf16.mxu0 0
      %782 = vmatpush2.bf16.xpose.msra.mxu0 0
      %783 = vmatprep.subr.bf16.mxu0 0
      %784 = vmatpush2.bf16.xpose.msra.mxu0 0
      %785 = vmatprep.subr.bf16.mxu0 0
      %786 = vmatpush2.bf16.xpose.msra.mxu0 0
      %787 = vmatprep.subr.bf16.mxu0 0
      %788 = vmatpush2.bf16.xpose.msra.mxu0 0
      %789 = vmatprep.subr.bf16.mxu0 0
      %790 = vmatpush2.bf16.xpose.msra.mxu0 0
      %791 = vmatprep.subr.bf16.mxu0 0
      %792 = vmatpush2.bf16.xpose.msra.mxu0 0
      %793 = vmatprep.subr.bf16.mxu0 0
      %794 = vmatpush2.bf16.xpose.msra.mxu0 0
      %795 = vmatprep.subr.bf16.mxu0 0
      %796 = vmatpush2.bf16.xpose.msra.mxu0 0
      %797 = vmatprep.mubr.bf16.mxu0 0
      %798 = vmatmul.mubr.bf16.gmra.mxu0 %v760
      %v799 = vpop.f32.mrf.mxu0
      %v800 = vadd.f32 %v567, %v799
      %v801 = vpop.f32.mrf.mxu0
      %v802 = vpop.f32.mrf.mxu0
      %v803 = vpop.f32.mrf.mxu0
      %804 = vdwg.mxu0
      %v806 = vsel %vm574, %v431, 0
      %v809 = vsel %vm574, %v491, 0
      %811 = vmatprep.subr.bf16.mxu0 0
      %812 = vmatpush1.bf16.xpose.msra.mxu0 0
      %813 = vmatprep.subr.bf16.mxu0 0
      %814 = vmatpush1.bf16.xpose.msra.mxu0 0
      %815 = vmatprep.subr.bf16.mxu0 0
      %816 = vmatpush1.bf16.xpose.msra.mxu0 0
      %817 = vmatprep.subr.bf16.mxu0 0
      %818 = vmatpush1.bf16.xpose.msra.mxu0 0
      %819 = vmatprep.subr.bf16.mxu0 0
      %820 = vmatpush1.bf16.xpose.msra.mxu0 0
      %821 = vmatprep.subr.bf16.mxu0 0
      %822 = vmatpush1.bf16.xpose.msra.mxu0 0
      %823 = vmatprep.subr.bf16.mxu0 0
      %824 = vmatpush1.bf16.xpose.msra.mxu0 0
      %825 = vmatprep.subr.bf16.mxu0 0
      %826 = vmatpush1.bf16.xpose.msra.mxu0 %v809
      %827 = vmatprep.subr.bf16.mxu0 0
      %828 = vmatpush2.bf16.xpose.msra.mxu0 0
      %829 = vmatprep.subr.bf16.mxu0 0
      %830 = vmatpush2.bf16.xpose.msra.mxu0 0
      %831 = vmatprep.subr.bf16.mxu0 0
      %832 = vmatpush2.bf16.xpose.msra.mxu0 0
      %833 = vmatprep.subr.bf16.mxu0 0
      %834 = vmatpush2.bf16.xpose.msra.mxu0 0
      %835 = vmatprep.subr.bf16.mxu0 0
      %836 = vmatpush2.bf16.xpose.msra.mxu0 0
      %837 = vmatprep.subr.bf16.mxu0 0
      %838 = vmatpush2.bf16.xpose.msra.mxu0 0
      %839 = vmatprep.subr.bf16.mxu0 0
      %840 = vmatpush2.bf16.xpose.msra.mxu0 0
      %841 = vmatprep.subr.bf16.mxu0 0
      %842 = vmatpush2.bf16.xpose.msra.mxu0 0
      %843 = vmatprep.mubr.bf16.mxu0 0
      %844 = vmatmul.mubr.bf16.gmra.mxu0 %v806
      %v845 = vpop.f32.mrf.mxu0
      %v846 = vadd.f32 %v571, %v845
      %v847 = vpop.f32.mrf.mxu0
      %v848 = vpop.f32.mrf.mxu0
      %v849 = vpop.f32.mrf.mxu0
      %850 = vdwg.mxu0
      %v852 = vsel %vm574, %v432, 0
      %v855 = vsel %vm574, %v492, 0
      %857 = vmatprep.subr.bf16.mxu0 0
      %858 = vmatpush1.bf16.xpose.msra.mxu0 0
      %859 = vmatprep.subr.bf16.mxu0 0
      %860 = vmatpush1.bf16.xpose.msra.mxu0 0
      %861 = vmatprep.subr.bf16.mxu0 0
      %862 = vmatpush1.bf16.xpose.msra.mxu0 0
      %863 = vmatprep.subr.bf16.mxu0 0
      %864 = vmatpush1.bf16.xpose.msra.mxu0 0
      %865 = vmatprep.subr.bf16.mxu0 0
      %866 = vmatpush1.bf16.xpose.msra.mxu0 0
      %867 = vmatprep.subr.bf16.mxu0 0
      %868 = vmatpush1.bf16.xpose.msra.mxu0 0
      %869 = vmatprep.subr.bf16.mxu0 0
      %870 = vmatpush1.bf16.xpose.msra.mxu0 0
      %871 = vmatprep.subr.bf16.mxu0 0
      %872 = vmatpush1.bf16.xpose.msra.mxu0 %v855
      %873 = vmatprep.subr.bf16.mxu0 0
      %874 = vmatpush2.bf16.xpose.msra.mxu0 0
      %875 = vmatprep.subr.bf16.mxu0 0
      %876 = vmatpush2.bf16.xpose.msra.mxu0 0
      %877 = vmatprep.subr.bf16.mxu0 0
      %878 = vmatpush2.bf16.xpose.msra.mxu0 0
      %879 = vmatprep.subr.bf16.mxu0 0
      %880 = vmatpush2.bf16.xpose.msra.mxu0 0
      %881 = vmatprep.subr.bf16.mxu0 0
      %882 = vmatpush2.bf16.xpose.msra.mxu0 0
      %883 = vmatprep.subr.bf16.mxu0 0
      %884 = vmatpush2.bf16.xpose.msra.mxu0 0
      %885 = vmatprep.subr.bf16.mxu0 0
      %886 = vmatpush2.bf16.xpose.msra.mxu0 0
      %887 = vmatprep.subr.bf16.mxu0 0
      %888 = vmatpush2.bf16.xpose.msra.mxu0 0
      %889 = vmatprep.mubr.bf16.mxu0 0
      %890 = vmatmul.mubr.bf16.gmra.mxu0 %v852
      %v891 = vpop.f32.mrf.mxu0
      %v892 = vadd.f32 %v567, %v891
      %v893 = vpop.f32.mrf.mxu0
      %v894 = vpop.f32.mrf.mxu0
      %v895 = vpop.f32.mrf.mxu0
      %896 = vdwg.mxu0
      %v898 = vsel %vm574, %v433, 0
      %v901 = vsel %vm574, %v493, 0
      %903 = vmatprep.subr.bf16.mxu0 0
      %904 = vmatpush1.bf16.xpose.msra.mxu0 0
      %905 = vmatprep.subr.bf16.mxu0 0
      %906 = vmatpush1.bf16.xpose.msra.mxu0 0
      %907 = vmatprep.subr.bf16.mxu0 0
      %908 = vmatpush1.bf16.xpose.msra.mxu0 0
      %909 = vmatprep.subr.bf16.mxu0 0
      %910 = vmatpush1.bf16.xpose.msra.mxu0 0
      %911 = vmatprep.subr.bf16.mxu0 0
      %912 = vmatpush1.bf16.xpose.msra.mxu0 0
      %913 = vmatprep.subr.bf16.mxu0 0
      %914 = vmatpush1.bf16.xpose.msra.mxu0 0
      %915 = vmatprep.subr.bf16.mxu0 0
      %916 = vmatpush1.bf16.xpose.msra.mxu0 0
      %917 = vmatprep.subr.bf16.mxu0 0
      %918 = vmatpush1.bf16.xpose.msra.mxu0 %v901
      %919 = vmatprep.subr.bf16.mxu0 0
      %920 = vmatpush2.bf16.xpose.msra.mxu0 0
      %921 = vmatprep.subr.bf16.mxu0 0
      %922 = vmatpush2.bf16.xpose.msra.mxu0 0
      %923 = vmatprep.subr.bf16.mxu0 0
      %924 = vmatpush2.bf16.xpose.msra.mxu0 0
      %925 = vmatprep.subr.bf16.mxu0 0
      %926 = vmatpush2.bf16.xpose.msra.mxu0 0
      %927 = vmatprep.subr.bf16.mxu0 0
      %928 = vmatpush2.bf16.xpose.msra.mxu0 0
      %929 = vmatprep.subr.bf16.mxu0 0
      %930 = vmatpush2.bf16.xpose.msra.mxu0 0
      %931 = vmatprep.subr.bf16.mxu0 0
      %932 = vmatpush2.bf16.xpose.msra.mxu0 0
      %933 = vmatprep.subr.bf16.mxu0 0
      %934 = vmatpush2.bf16.xpose.msra.mxu0 0
      %935 = vmatprep.mubr.bf16.mxu0 0
      %936 = vmatmul.mubr.bf16.gmra.mxu0 %v898
      %v937 = vpop.f32.mrf.mxu0
      %v938 = vadd.f32 %v571, %v937
      %v939 = vpop.f32.mrf.mxu0
      %v940 = vpop.f32.mrf.mxu0
      %v941 = vpop.f32.mrf.mxu0
      %942 = vdwg.mxu0
      %v944 = vsel %vm574, %v434, 0
      %v947 = vsel %vm574, %v494, 0
      %949 = vmatprep.subr.bf16.mxu0 0
      %950 = vmatpush1.bf16.xpose.msra.mxu0 0
      %951 = vmatprep.subr.bf16.mxu0 0
      %952 = vmatpush1.bf16.xpose.msra.mxu0 0
      %953 = vmatprep.subr.bf16.mxu0 0
      %954 = vmatpush1.bf16.xpose.msra.mxu0 0
      %955 = vmatprep.subr.bf16.mxu0 0
      %956 = vmatpush1.bf16.xpose.msra.mxu0 0
      %957 = vmatprep.subr.bf16.mxu0 0
      %958 = vmatpush1.bf16.xpose.msra.mxu0 0
      %959 = vmatprep.subr.bf16.mxu0 0
      %960 = vmatpush1.bf16.xpose.msra.mxu0 0
      %961 = vmatprep.subr.bf16.mxu0 0
      %962 = vmatpush1.bf16.xpose.msra.mxu0 0
      %963 = vmatprep.subr.bf16.mxu0 0
      %964 = vmatpush1.bf16.xpose.msra.mxu0 %v947
      %965 = vmatprep.subr.bf16.mxu0 0
      %966 = vmatpush2.bf16.xpose.msra.mxu0 0
      %967 = vmatprep.subr.bf16.mxu0 0
      %968 = vmatpush2.bf16.xpose.msra.mxu0 0
      %969 = vmatprep.subr.bf16.mxu0 0
      %970 = vmatpush2.bf16.xpose.msra.mxu0 0
      %971 = vmatprep.subr.bf16.mxu0 0
      %972 = vmatpush2.bf16.xpose.msra.mxu0 0
      %973 = vmatprep.subr.bf16.mxu0 0
      %974 = vmatpush2.bf16.xpose.msra.mxu0 0
      %975 = vmatprep.subr.bf16.mxu0 0
      %976 = vmatpush2.bf16.xpose.msra.mxu0 0
      %977 = vmatprep.subr.bf16.mxu0 0
      %978 = vmatpush2.bf16.xpose.msra.mxu0 0
      %979 = vmatprep.subr.bf16.mxu0 0
      %980 = vmatpush2.bf16.xpose.msra.mxu0 0
      %981 = vmatprep.mubr.bf16.mxu0 0
      %982 = vmatmul.mubr.bf16.gmra.mxu0 %v944
      %v983 = vpop.f32.mrf.mxu0
      %v984 = vadd.f32 %v567, %v983
      %v985 = vpop.f32.mrf.mxu0
      %v986 = vpop.f32.mrf.mxu0
      %v987 = vpop.f32.mrf.mxu0
      %988 = vdwg.mxu0
      %v990 = vsel %vm574, %v435, 0
      %v993 = vsel %vm574, %v495, 0
      %995 = vmatprep.subr.bf16.mxu0 0
      %996 = vmatpush1.bf16.xpose.msra.mxu0 0
      %997 = vmatprep.subr.bf16.mxu0 0
      %998 = vmatpush1.bf16.xpose.msra.mxu0 0
      %999 = vmatprep.subr.bf16.mxu0 0
      %1000 = vmatpush1.bf16.xpose.msra.mxu0 0
      %1001 = vmatprep.subr.bf16.mxu0 0
      %1002 = vmatpush1.bf16.xpose.msra.mxu0 0
      %1003 = vmatprep.subr.bf16.mxu0 0
      %1004 = vmatpush1.bf16.xpose.msra.mxu0 0
      %1005 = vmatprep.subr.bf16.mxu0 0
      %1006 = vmatpush1.bf16.xpose.msra.mxu0 0
      %1007 = vmatprep.subr.bf16.mxu0 0
      %1008 = vmatpush1.bf16.xpose.msra.mxu0 0
      %1009 = vmatprep.subr.bf16.mxu0 0
      %1010 = vmatpush1.bf16.xpose.msra.mxu0 %v993
      %1011 = vmatprep.subr.bf16.mxu0 0
      %1012 = vmatpush2.bf16.xpose.msra.mxu0 0
      %1013 = vmatprep.subr.bf16.mxu0 0
      %1014 = vmatpush2.bf16.xpose.msra.mxu0 0
      %1015 = vmatprep.subr.bf16.mxu0 0
      %1016 = vmatpush2.bf16.xpose.msra.mxu0 0
      %1017 = vmatprep.subr.bf16.mxu0 0
      %1018 = vmatpush2.bf16.xpose.msra.mxu0 0
      %1019 = vmatprep.subr.bf16.mxu0 0
      %1020 = vmatpush2.bf16.xpose.msra.mxu0 0
      %1021 = vmatprep.subr.bf16.mxu0 0
      %1022 = vmatpush2.bf16.xpose.msra.mxu0 0
      %1023 = vmatprep.subr.bf16.mxu0 0
      %1024 = vmatpush2.bf16.xpose.msra.mxu0 0
      %1025 = vmatprep.subr.bf16.mxu0 0
      %1026 = vmatpush2.bf16.xpose.msra.mxu0 0
      %1027 = vmatprep.mubr.bf16.mxu0 0
      %1028 = vmatmul.mubr.bf16.gmra.mxu0 %v990
      %v1029 = vpop.f32.mrf.mxu0
      %v1030 = vadd.f32 %v571, %v1029
      %v1031 = vpop.f32.mrf.mxu0
      %v1032 = vpop.f32.mrf.mxu0
      %v1033 = vpop.f32.mrf.mxu0
      %1034 = vdwg.mxu0
      %v1036 = vsel %vm574, %v436, 0
      %v1039 = vsel %vm574, %v496, 0
      %1041 = vmatprep.subr.bf16.mxu0 0
      %1042 = vmatpush1.bf16.xpose.msra.mxu0 0
      %1043 = vmatprep.subr.bf16.mxu0 0
      %1044 = vmatpush1.bf16.xpose.msra.mxu0 0
      %1045 = vmatprep.subr.bf16.mxu0 0
      %1046 = vmatpush1.bf16.xpose.msra.mxu0 0
      %1047 = vmatprep.subr.bf16.mxu0 0
      %1048 = vmatpush1.bf16.xpose.msra.mxu0 0
      %1049 = vmatprep.subr.bf16.mxu0 0
      %1050 = vmatpush1.bf16.xpose.msra.mxu0 0
      %1051 = vmatprep.subr.bf16.mxu0 0
      %1052 = vmatpush1.bf16.xpose.msra.mxu0 0
      %1053 = vmatprep.subr.bf16.mxu0 0
      %1054 = vmatpush1.bf16.xpose.msra.mxu0 0
      %1055 = vmatprep.subr.bf16.mxu0 0
      %1056 = vmatpush1.bf16.xpose.msra.mxu0 %v1039
      %1057 = vmatprep.subr.bf16.mxu0 0
      %1058 = vmatpush2.bf16.xpose.msra.mxu0 0
      %1059 = vmatprep.subr.bf16.mxu0 0
      %1060 = vmatpush2.bf16.xpose.msra.mxu0 0
      %1061 = vmatprep.subr.bf16.mxu0 0
      %1062 = vmatpush2.bf16.xpose.msra.mxu0 0
      %1063 = vmatprep.subr.bf16.mxu0 0
      %1064 = vmatpush2.bf16.xpose.msra.mxu0 0
      %1065 = vmatprep.subr.bf16.mxu0 0
      %1066 = vmatpush2.bf16.xpose.msra.mxu0 0
      %1067 = vmatprep.subr.bf16.mxu0 0
      %1068 = vmatpush2.bf16.xpose.msra.mxu0 0
      %1069 = vmatprep.subr.bf16.mxu0 0
      %1070 = vmatpush2.bf16.xpose.msra.mxu0 0
      %1071 = vmatprep.subr.bf16.mxu0 0
      %1072 = vmatpush2.bf16.xpose.msra.mxu0 0
      %1073 = vmatprep.mubr.bf16.mxu0 0
      %1074 = vmatmul.mubr.bf16.gmra.mxu0 %v1036
      %v1075 = vpop.f32.mrf.mxu0
      %v1076 = vadd.f32 %v567, %v1075
      %v1077 = vpop.f32.mrf.mxu0
      %v1078 = vpop.f32.mrf.mxu0
      %v1079 = vpop.f32.mrf.mxu0
      %1080 = vdwg.mxu0
      %v1082 = vsel %vm574, %v437, 0
      %v1085 = vsel %vm574, %v497, 0
      %1087 = vmatprep.subr.bf16.mxu0 0
      %1088 = vmatpush1.bf16.xpose.msra.mxu0 0
      %1089 = vmatprep.subr.bf16.mxu0 0
      %1090 = vmatpush1.bf16.xpose.msra.mxu0 0
      %1091 = vmatprep.subr.bf16.mxu0 0
      %1092 = vmatpush1.bf16.xpose.msra.mxu0 0
      %1093 = vmatprep.subr.bf16.mxu0 0
      %1094 = vmatpush1.bf16.xpose.msra.mxu0 0
      %1095 = vmatprep.subr.bf16.mxu0 0
      %1096 = vmatpush1.bf16.xpose.msra.mxu0 0
      %1097 = vmatprep.subr.bf16.mxu0 0
      %1098 = vmatpush1.bf16.xpose.msra.mxu0 0
      %1099 = vmatprep.subr.bf16.mxu0 0
      %1100 = vmatpush1.bf16.xpose.msra.mxu0 0
      %1101 = vmatprep.subr.bf16.mxu0 0
      %1102 = vmatpush1.bf16.xpose.msra.mxu0 %v1085
      %1103 = vmatprep.subr.bf16.mxu0 0
      %1104 = vmatpush2.bf16.xpose.msra.mxu0 0
      %1105 = vmatprep.subr.bf16.mxu0 0
      %1106 = vmatpush2.bf16.xpose.msra.mxu0 0
      %1107 = vmatprep.subr.bf16.mxu0 0
      %1108 = vmatpush2.bf16.xpose.msra.mxu0 0
      %1109 = vmatprep.subr.bf16.mxu0 0
      %1110 = vmatpush2.bf16.xpose.msra.mxu0 0
      %1111 = vmatprep.subr.bf16.mxu0 0
      %1112 = vmatpush2.bf16.xpose.msra.mxu0 0
      %1113 = vmatprep.subr.bf16.mxu0 0
      %1114 = vmatpush2.bf16.xpose.msra.mxu0 0
      %1115 = vmatprep.subr.bf16.mxu0 0
      %1116 = vmatpush2.bf16.xpose.msra.mxu0 0
      %1117 = vmatprep.subr.bf16.mxu0 0
      %1118 = vmatpush2.bf16.xpose.msra.mxu0 0
      %1119 = vmatprep.mubr.bf16.mxu0 0
      %1120 = vmatmul.mubr.bf16.gmra.mxu0 %v1082
      %v1121 = vpop.f32.mrf.mxu0
      %v1122 = vadd.f32 %v571, %v1121
      %v1123 = vpop.f32.mrf.mxu0
      %v1124 = vpop.f32.mrf.mxu0
      %v1125 = vpop.f32.mrf.mxu0
      %1126 = vdwg.mxu0
      %v1128 = vsel %vm574, %v438, 0
      %v1131 = vsel %vm574, %v498, 0
      %1133 = vmatprep.subr.bf16.mxu0 0
      %1134 = vmatpush1.bf16.xpose.msra.mxu0 0
      %1135 = vmatprep.subr.bf16.mxu0 0
      %1136 = vmatpush1.bf16.xpose.msra.mxu0 0
      %1137 = vmatprep.subr.bf16.mxu0 0
      %1138 = vmatpush1.bf16.xpose.msra.mxu0 0
      %1139 = vmatprep.subr.bf16.mxu0 0
      %1140 = vmatpush1.bf16.xpose.msra.mxu0 0
      %1141 = vmatprep.subr.bf16.mxu0 0
      %1142 = vmatpush1.bf16.xpose.msra.mxu0 0
      %1143 = vmatprep.subr.bf16.mxu0 0
      %1144 = vmatpush1.bf16.xpose.msra.mxu0 0
      %1145 = vmatprep.subr.bf16.mxu0 0
      %1146 = vmatpush1.bf16.xpose.msra.mxu0 0
      %1147 = vmatprep.subr.bf16.mxu0 0
      %1148 = vmatpush1.bf16.xpose.msra.mxu0 %v1131
      %1149 = vmatprep.subr.bf16.mxu0 0
      %1150 = vmatpush2.bf16.xpose.msra.mxu0 0
      %1151 = vmatprep.subr.bf16.mxu0 0
      %1152 = vmatpush2.bf16.xpose.msra.mxu0 0
      %1153 = vmatprep.subr.bf16.mxu0 0
      %1154 = vmatpush2.bf16.xpose.msra.mxu0 0
      %1155 = vmatprep.subr.bf16.mxu0 0
      %1156 = vmatpush2.bf16.xpose.msra.mxu0 0
      %1157 = vmatprep.subr.bf16.mxu0 0
      %1158 = vmatpush2.bf16.xpose.msra.mxu0 0
      %1159 = vmatprep.subr.bf16.mxu0 0
      %1160 = vmatpush2.bf16.xpose.msra.mxu0 0
      %1161 = vmatprep.subr.bf16.mxu0 0
      %1162 = vmatpush2.bf16.xpose.msra.mxu0 0
      %1163 = vmatprep.subr.bf16.mxu0 0
      %1164 = vmatpush2.bf16.xpose.msra.mxu0 0
      %1165 = vmatprep.mubr.bf16.mxu0 0
      %1166 = vmatmul.mubr.bf16.gmra.mxu0 %v1128
      %v1167 = vpop.f32.mrf.mxu0
      %v1168 = vadd.f32 %v567, %v1167
      %v1169 = vpop.f32.mrf.mxu0
      %v1170 = vpop.f32.mrf.mxu0
      %v1171 = vpop.f32.mrf.mxu0
      %1172 = vdwg.mxu0
      %v1174 = vsel %vm574, %v439, 0
      %v1177 = vsel %vm574, %v499, 0
      %1179 = vmatprep.subr.bf16.mxu0 0
      %1180 = vmatpush1.bf16.xpose.msra.mxu0 0
      %1181 = vmatprep.subr.bf16.mxu0 0
      %1182 = vmatpush1.bf16.xpose.msra.mxu0 0
      %1183 = vmatprep.subr.bf16.mxu0 0
      %1184 = vmatpush1.bf16.xpose.msra.mxu0 0
      %1185 = vmatprep.subr.bf16.mxu0 0
      %1186 = vmatpush1.bf16.xpose.msra.mxu0 0
      %1187 = vmatprep.subr.bf16.mxu0 0
      %1188 = vmatpush1.bf16.xpose.msra.mxu0 0
      %1189 = vmatprep.subr.bf16.mxu0 0
      %1190 = vmatpush1.bf16.xpose.msra.mxu0 0
      %1191 = vmatprep.subr.bf16.mxu0 0
      %1192 = vmatpush1.bf16.xpose.msra.mxu0 0
      %1193 = vmatprep.subr.bf16.mxu0 0
      %1194 = vmatpush1.bf16.xpose.msra.mxu0 %v1177
      %1195 = vmatprep.subr.bf16.mxu0 0
      %1196 = vmatpush2.bf16.xpose.msra.mxu0 0
      %1197 = vmatprep.subr.bf16.mxu0 0
      %1198 = vmatpush2.bf16.xpose.msra.mxu0 0
      %1199 = vmatprep.subr.bf16.mxu0 0
      %1200 = vmatpush2.bf16.xpose.msra.mxu0 0
      %1201 = vmatprep.subr.bf16.mxu0 0
      %1202 = vmatpush2.bf16.xpose.msra.mxu0 0
      %1203 = vmatprep.subr.bf16.mxu0 0
      %1204 = vmatpush2.bf16.xpose.msra.mxu0 0
      %1205 = vmatprep.subr.bf16.mxu0 0
      %1206 = vmatpush2.bf16.xpose.msra.mxu0 0
      %1207 = vmatprep.subr.bf16.mxu0 0
      %1208 = vmatpush2.bf16.xpose.msra.mxu0 0
      %1209 = vmatprep.subr.bf16.mxu0 0
      %1210 = vmatpush2.bf16.xpose.msra.mxu0 0
      %1211 = vmatprep.mubr.bf16.mxu0 0
      %1212 = vmatmul.mubr.bf16.gmra.mxu0 %v1174
      %v1213 = vpop.f32.mrf.mxu0
      %v1214 = vadd.f32 %v571, %v1213
      %v1215 = vpop.f32.mrf.mxu0
      %v1216 = vpop.f32.mrf.mxu0
      %v1217 = vpop.f32.mrf.mxu0
      %1218 = vdwg.mxu0
      %v1220 = vsel %vm574, %v440, 0
      %v1223 = vsel %vm574, %v500, 0
      %1225 = vmatprep.subr.bf16.mxu0 0
      %1226 = vmatpush1.bf16.xpose.msra.mxu0 0
      %1227 = vmatprep.subr.bf16.mxu0 0
      %1228 = vmatpush1.bf16.xpose.msra.mxu0 0
      %1229 = vmatprep.subr.bf16.mxu0 0
      %1230 = vmatpush1.bf16.xpose.msra.mxu0 0
      %1231 = vmatprep.subr.bf16.mxu0 0
      %1232 = vmatpush1.bf16.xpose.msra.mxu0 0
      %1233 = vmatprep.subr.bf16.mxu0 0
      %1234 = vmatpush1.bf16.xpose.msra.mxu0 0
      %1235 = vmatprep.subr.bf16.mxu0 0
      %1236 = vmatpush1.bf16.xpose.msra.mxu0 0
      %1237 = vmatprep.subr.bf16.mxu0 0
      %1238 = vmatpush1.bf16.xpose.msra.mxu0 0
      %1239 = vmatprep.subr.bf16.mxu0 0
      %1240 = vmatpush1.bf16.xpose.msra.mxu0 %v1223
      %1241 = vmatprep.subr.bf16.mxu0 0
      %1242 = vmatpush2.bf16.xpose.msra.mxu0 0
      %1243 = vmatprep.subr.bf16.mxu0 0
      %1244 = vmatpush2.bf16.xpose.msra.mxu0 0
      %1245 = vmatprep.subr.bf16.mxu0 0
      %1246 = vmatpush2.bf16.xpose.msra.mxu0 0
      %1247 = vmatprep.subr.bf16.mxu0 0
      %1248 = vmatpush2.bf16.xpose.msra.mxu0 0
      %1249 = vmatprep.subr.bf16.mxu0 0
      %1250 = vmatpush2.bf16.xpose.msra.mxu0 0
      %1251 = vmatprep.subr.bf16.mxu0 0
      %1252 = vmatpush2.bf16.xpose.msra.mxu0 0
      %1253 = vmatprep.subr.bf16.mxu0 0
      %1254 = vmatpush2.bf16.xpose.msra.mxu0 0
      %1255 = vmatprep.subr.bf16.mxu0 0
      %1256 = vmatpush2.bf16.xpose.msra.mxu0 0
      %1257 = vmatprep.mubr.bf16.mxu0 0
      %1258 = vmatmul.mubr.bf16.gmra.mxu0 %v1220
      %v1259 = vpop.f32.mrf.mxu0
      %v1260 = vadd.f32 %v567, %v1259
      %v1261 = vpop.f32.mrf.mxu0
      %v1262 = vpop.f32.mrf.mxu0
      %v1263 = vpop.f32.mrf.mxu0
      %1264 = vdwg.mxu0
      %v1266 = vsel %vm574, %v441, 0
      %v1269 = vsel %vm574, %v501, 0
      %1271 = vmatprep.subr.bf16.mxu0 0
      %1272 = vmatpush1.bf16.xpose.msra.mxu0 0
      %1273 = vmatprep.subr.bf16.mxu0 0
      %1274 = vmatpush1.bf16.xpose.msra.mxu0 0
      %1275 = vmatprep.subr.bf16.mxu0 0
      %1276 = vmatpush1.bf16.xpose.msra.mxu0 0
      %1277 = vmatprep.subr.bf16.mxu0 0
      %1278 = vmatpush1.bf16.xpose.msra.mxu0 0
      %1279 = vmatprep.subr.bf16.mxu0 0
      %1280 = vmatpush1.bf16.xpose.msra.mxu0 0
      %1281 = vmatprep.subr.bf16.mxu0 0
      %1282 = vmatpush1.bf16.xpose.msra.mxu0 0
      %1283 = vmatprep.subr.bf16.mxu0 0
      %1284 = vmatpush1.bf16.xpose.msra.mxu0 0
      %1285 = vmatprep.subr.bf16.mxu0 0
      %1286 = vmatpush1.bf16.xpose.msra.mxu0 %v1269
      %1287 = vmatprep.subr.bf16.mxu0 0
      %1288 = vmatpush2.bf16.xpose.msra.mxu0 0
      %1289 = vmatprep.subr.bf16.mxu0 0
      %1290 = vmatpush2.bf16.xpose.msra.mxu0 0
      %1291 = vmatprep.subr.bf16.mxu0 0
      %1292 = vmatpush2.bf16.xpose.msra.mxu0 0
      %1293 = vmatprep.subr.bf16.mxu0 0
      %1294 = vmatpush2.bf16.xpose.msra.mxu0 0
      %1295 = vmatprep.subr.bf16.mxu0 0
      %1296 = vmatpush2.bf16.xpose.msra.mxu0 0
      %1297 = vmatprep.subr.bf16.mxu0 0
      %1298 = vmatpush2.bf16.xpose.msra.mxu0 0
      %1299 = vmatprep.subr.bf16.mxu0 0
      %1300 = vmatpush2.bf16.xpose.msra.mxu0 0
      %1301 = vmatprep.subr.bf16.mxu0 0
      %1302 = vmatpush2.bf16.xpose.msra.mxu0 0
      %1303 = vmatprep.mubr.bf16.mxu0 0
      %1304 = vmatmul.mubr.bf16.gmra.mxu0 %v1266
      %v1305 = vpop.f32.mrf.mxu0
      %v1306 = vadd.f32 %v571, %v1305
      %v1307 = vpop.f32.mrf.mxu0
      %v1308 = vpop.f32.mrf.mxu0
      %v1309 = vpop.f32.mrf.mxu0
      %1310 = vdwg.mxu0
      %vm1311 = vcmask 64512
      %v1312 = vsel %vm1311, %v616, -inf
      %1313 = vmax.xlane.f32.xlu0 %v1312
      %v1314 = vpop.xlane.xlu0 %1313
      %v1315 = vsel %vm1311, %v662, -inf
      %1316 = vmax.xlane.f32.xlu0 %v1315
      %v1317 = vpop.xlane.xlu0 %1316
      %v1318 = vsel %vm1311, %v708, -inf
      %1319 = vmax.xlane.f32.xlu0 %v1318
      %v1320 = vpop.xlane.xlu0 %1319
      %v1321 = vsel %vm1311, %v754, -inf
      %1322 = vmax.xlane.f32.xlu0 %v1321
      %v1323 = vpop.xlane.xlu0 %1322
      %v1324 = vsel %vm1311, %v800, -inf
      %1325 = vmax.xlane.f32.xlu0 %v1324
      %v1326 = vpop.xlane.xlu0 %1325
      %v1327 = vsel %vm1311, %v846, -inf
      %1328 = vmax.xlane.f32.xlu0 %v1327
      %v1329 = vpop.xlane.xlu0 %1328
      %v1330 = vsel %vm1311, %v892, -inf
      %1331 = vmax.xlane.f32.xlu0 %v1330
      %v1332 = vpop.xlane.xlu0 %1331
      %v1333 = vsel %vm1311, %v938, -inf
      %1334 = vmax.xlane.f32.xlu0 %v1333
      %v1335 = vpop.xlane.xlu0 %1334
      %v1336 = vsel %vm1311, %v984, -inf
      %1337 = vmax.xlane.f32.xlu0 %v1336
      %v1338 = vpop.xlane.xlu0 %1337
      %v1339 = vsel %vm1311, %v1030, -inf
      %1340 = vmax.xlane.f32.xlu0 %v1339
      %v1341 = vpop.xlane.xlu0 %1340
      %v1342 = vsel %vm1311, %v1076, -inf
      %1343 = vmax.xlane.f32.xlu0 %v1342
      %v1344 = vpop.xlane.xlu0 %1343
      %v1345 = vsel %vm1311, %v1122, -inf
      %1346 = vmax.xlane.f32.xlu0 %v1345
      %v1347 = vpop.xlane.xlu0 %1346
      %v1348 = vsel %vm1311, %v1168, -inf
      %1349 = vmax.xlane.f32.xlu0 %v1348
      %v1350 = vpop.xlane.xlu0 %1349
      %v1351 = vsel %vm1311, %v1214, -inf
      %1352 = vmax.xlane.f32.xlu0 %v1351
      %v1353 = vpop.xlane.xlu0 %1352
      %v1354 = vsel %vm1311, %v1260, -inf
      %1355 = vmax.xlane.f32.xlu0 %v1354
      %v1356 = vpop.xlane.xlu0 %1355
      %v1357 = vsel %vm1311, %v1306, -inf
      %1358 = vmax.xlane.f32.xlu0 %v1357
      %v1359 = vpop.xlane.xlu0 %1358
      %v1360 = vsub.f32 %v616, %v1314
      %v1361 = vsub.f32 %v662, %v1317
      %v1362 = vsub.f32 %v708, %v1320
      %v1363 = vsub.f32 %v754, %v1323
      %v1364 = vsub.f32 %v800, %v1326
      %v1365 = vsub.f32 %v846, %v1329
      %v1366 = vsub.f32 %v892, %v1332
      %v1367 = vsub.f32 %v938, %v1335
      %v1368 = vsub.f32 %v984, %v1338
      %v1369 = vsub.f32 %v1030, %v1341
      %v1370 = vsub.f32 %v1076, %v1344
      %v1371 = vsub.f32 %v1122, %v1347
      %v1372 = vsub.f32 %v1168, %v1350
      %v1373 = vsub.f32 %v1214, %v1353
      %v1374 = vsub.f32 %v1260, %v1356
      %v1375 = vsub.f32 %v1306, %v1359
      %v1376 = vmul.f32 %v1360, 1.442695
      %v1377 = vpow.pop %v1376
      %v1378 = vmul.f32 %v1361, 1.442695
      %v1379 = vpow.pop %v1378
      %v1380 = vmul.f32 %v1362, 1.442695
      %v1381 = vpow.pop %v1380
      %v1382 = vmul.f32 %v1363, 1.442695
      %v1383 = vpow.pop %v1382
      %v1384 = vmul.f32 %v1364, 1.442695
      %v1385 = vpow.pop %v1384
      %v1386 = vmul.f32 %v1365, 1.442695
      %v1387 = vpow.pop %v1386
      %v1388 = vmul.f32 %v1366, 1.442695
      %v1389 = vpow.pop %v1388
      %v1390 = vmul.f32 %v1367, 1.442695
      %v1391 = vpow.pop %v1390
      %v1392 = vmul.f32 %v1368, 1.442695
      %v1393 = vpow.pop %v1392
      %v1394 = vmul.f32 %v1369, 1.442695
      %v1395 = vpow.pop %v1394
      %v1396 = vmul.f32 %v1370, 1.442695
      %v1397 = vpow.pop %v1396
      %v1398 = vmul.f32 %v1371, 1.442695
      %v1399 = vpow.pop %v1398
      %v1400 = vmul.f32 %v1372, 1.442695
      %v1401 = vpow.pop %v1400
      %v1402 = vmul.f32 %v1373, 1.442695
      %v1403 = vpow.pop %v1402
      %v1404 = vmul.f32 %v1374, 1.442695
      %v1405 = vpow.pop %v1404
      %v1406 = vmul.f32 %v1375, 1.442695
      %v1407 = vpow.pop %v1406
      %v1408 = vsel %vm1311, %v1377, 0.0
      %1409 = vadd.xlane.f32.xlu0 %v1408
      %v1410 = vpop.xlane.xlu0 %1409
      %v1411 = vsel %vm1311, %v1379, 0.0
      %1412 = vadd.xlane.f32.xlu0 %v1411
      %v1413 = vpop.xlane.xlu0 %1412
      %v1414 = vsel %vm1311, %v1381, 0.0
      %1415 = vadd.xlane.f32.xlu0 %v1414
      %v1416 = vpop.xlane.xlu0 %1415
      %v1417 = vsel %vm1311, %v1383, 0.0
      %1418 = vadd.xlane.f32.xlu0 %v1417
      %v1419 = vpop.xlane.xlu0 %1418
      %v1420 = vsel %vm1311, %v1385, 0.0
      %1421 = vadd.xlane.f32.xlu0 %v1420
      %v1422 = vpop.xlane.xlu0 %1421
      %v1423 = vsel %vm1311, %v1387, 0.0
      %1424 = vadd.xlane.f32.xlu0 %v1423
      %v1425 = vpop.xlane.xlu0 %1424
      %v1426 = vsel %vm1311, %v1389, 0.0
      %1427 = vadd.xlane.f32.xlu0 %v1426
      %v1428 = vpop.xlane.xlu0 %1427
      %v1429 = vsel %vm1311, %v1391, 0.0
      %1430 = vadd.xlane.f32.xlu0 %v1429
      %v1431 = vpop.xlane.xlu0 %1430
      %v1432 = vsel %vm1311, %v1393, 0.0
      %1433 = vadd.xlane.f32.xlu0 %v1432
      %v1434 = vpop.xlane.xlu0 %1433
      %v1435 = vsel %vm1311, %v1395, 0.0
      %1436 = vadd.xlane.f32.xlu0 %v1435
      %v1437 = vpop.xlane.xlu0 %1436
      %v1438 = vsel %vm1311, %v1397, 0.0
      %1439 = vadd.xlane.f32.xlu0 %v1438
      %v1440 = vpop.xlane.xlu0 %1439
      %v1441 = vsel %vm1311, %v1399, 0.0
      %1442 = vadd.xlane.f32.xlu0 %v1441
      %v1443 = vpop.xlane.xlu0 %1442
      %v1444 = vsel %vm1311, %v1401, 0.0
      %1445 = vadd.xlane.f32.xlu0 %v1444
      %v1446 = vpop.xlane.xlu0 %1445
      %v1447 = vsel %vm1311, %v1403, 0.0
      %1448 = vadd.xlane.f32.xlu0 %v1447
      %v1449 = vpop.xlane.xlu0 %1448
      %v1450 = vsel %vm1311, %v1405, 0.0
      %1451 = vadd.xlane.f32.xlu0 %v1450
      %v1452 = vpop.xlane.xlu0 %1451
      %v1453 = vsel %vm1311, %v1407, 0.0
      %1454 = vadd.xlane.f32.xlu0 %v1453
      %v1455 = vpop.xlane.xlu0 %1454
      %v1456 = vpack.c.bf16 %v1377, %v1377
      %v1457 = vpack.c.bf16 %v1379, %v1379
      %v1458 = vpack.c.bf16 %v1381, %v1381
      %v1459 = vpack.c.bf16 %v1383, %v1383
      %v1460 = vpack.c.bf16 %v1385, %v1385
      %v1461 = vpack.c.bf16 %v1387, %v1387
      %v1462 = vpack.c.bf16 %v1389, %v1389
      %v1463 = vpack.c.bf16 %v1391, %v1391
      %v1464 = vpack.c.bf16 %v1393, %v1393
      %v1465 = vpack.c.bf16 %v1395, %v1395
      %v1466 = vpack.c.bf16 %v1397, %v1397
      %v1467 = vpack.c.bf16 %v1399, %v1399
      %v1468 = vpack.c.bf16 %v1401, %v1401
      %v1469 = vpack.c.bf16 %v1403, %v1403
      %v1470 = vpack.c.bf16 %v1405, %v1405
      %v1471 = vpack.c.bf16 %v1407, %v1407
      %v1473 = vsel %vm1311, %v1456, 0
      %vm1475 = vcmask 1043456
      %v1477 = vsel %vm1475, %v546, 0
      %1479 = vmatprep.subr.bf16.mxu0 0
      %1480 = vmatpush1.bf16.msra.mxu0 0
      %1481 = vmatprep.subr.bf16.mxu0 0
      %1482 = vmatpush1.bf16.msra.mxu0 0
      %1483 = vmatprep.subr.bf16.mxu0 0
      %1484 = vmatpush1.bf16.msra.mxu0 0
      %1485 = vmatprep.subr.bf16.mxu0 0
      %1486 = vmatpush1.bf16.msra.mxu0 0
      %1487 = vmatprep.subr.bf16.mxu0 0
      %1488 = vmatpush1.bf16.msra.mxu0 0
      %1489 = vmatprep.subr.bf16.mxu0 0
      %1490 = vmatpush1.bf16.msra.mxu0 0
      %1491 = vmatprep.subr.bf16.mxu0 0
      %1492 = vmatpush1.bf16.msra.mxu0 0
      %1493 = vmatprep.subr.bf16.mxu0 0
      %1494 = vmatpush1.bf16.msra.mxu0 %v1477
      %1495 = vmatprep.subr.bf16.mxu0 0
      %1496 = vmatpush2.bf16.msra.mxu0 0
      %1497 = vmatprep.subr.bf16.mxu0 0
      %1498 = vmatpush2.bf16.msra.mxu0 0
      %1499 = vmatprep.subr.bf16.mxu0 0
      %1500 = vmatpush2.bf16.msra.mxu0 0
      %1501 = vmatprep.subr.bf16.mxu0 0
      %1502 = vmatpush2.bf16.msra.mxu0 0
      %1503 = vmatprep.subr.bf16.mxu0 0
      %1504 = vmatpush2.bf16.msra.mxu0 0
      %1505 = vmatprep.subr.bf16.mxu0 0
      %1506 = vmatpush2.bf16.msra.mxu0 0
      %1507 = vmatprep.subr.bf16.mxu0 0
      %1508 = vmatpush2.bf16.msra.mxu0 0
      %1509 = vmatprep.subr.bf16.mxu0 0
      %1510 = vmatpush2.bf16.msra.mxu0 0
      %1511 = vmatprep.mubr.bf16.mxu0 0
      %1512 = vmatmul.mubr.bf16.gmra.mxu0 %v1473
      %v1513 = vpop.f32.mrf.mxu0
      %v1514 = vadd.f32 0.0, %v1513
      %v1515 = vpop.f32.mrf.mxu0
      %v1516 = vpop.f32.mrf.mxu0
      %v1517 = vpop.f32.mrf.mxu0
      %1518 = vdwg.mxu0
      %v1520 = vsel %vm1311, %v1457, 0
      %v1523 = vsel %vm1475, %v547, 0
      %1525 = vmatprep.subr.bf16.mxu0 0
      %1526 = vmatpush1.bf16.msra.mxu0 0
      %1527 = vmatprep.subr.bf16.mxu0 0
      %1528 = vmatpush1.bf16.msra.mxu0 0
      %1529 = vmatprep.subr.bf16.mxu0 0
      %1530 = vmatpush1.bf16.msra.mxu0 0
      %1531 = vmatprep.subr.bf16.mxu0 0
      %1532 = vmatpush1.bf16.msra.mxu0 0
      %1533 = vmatprep.subr.bf16.mxu0 0
      %1534 = vmatpush1.bf16.msra.mxu0 0
      %1535 = vmatprep.subr.bf16.mxu0 0
      %1536 = vmatpush1.bf16.msra.mxu0 0
      %1537 = vmatprep.subr.bf16.mxu0 0
      %1538 = vmatpush1.bf16.msra.mxu0 0
      %1539 = vmatprep.subr.bf16.mxu0 0
      %1540 = vmatpush1.bf16.msra.mxu0 %v1523
      %1541 = vmatprep.subr.bf16.mxu0 0
      %1542 = vmatpush2.bf16.msra.mxu0 0
      %1543 = vmatprep.subr.bf16.mxu0 0
      %1544 = vmatpush2.bf16.msra.mxu0 0
      %1545 = vmatprep.subr.bf16.mxu0 0
      %1546 = vmatpush2.bf16.msra.mxu0 0
      %1547 = vmatprep.subr.bf16.mxu0 0
      %1548 = vmatpush2.bf16.msra.mxu0 0
      %1549 = vmatprep.subr.bf16.mxu0 0
      %1550 = vmatpush2.bf16.msra.mxu0 0
      %1551 = vmatprep.subr.bf16.mxu0 0
      %1552 = vmatpush2.bf16.msra.mxu0 0
      %1553 = vmatprep.subr.bf16.mxu0 0
      %1554 = vmatpush2.bf16.msra.mxu0 0
      %1555 = vmatprep.subr.bf16.mxu0 0
      %1556 = vmatpush2.bf16.msra.mxu0 0
      %1557 = vmatprep.mubr.bf16.mxu0 0
      %1558 = vmatmul.mubr.bf16.gmra.mxu0 %v1520
      %v1559 = vpop.f32.mrf.mxu0
      %v1560 = vadd.f32 0.0, %v1559
      %v1561 = vpop.f32.mrf.mxu0
      %v1562 = vpop.f32.mrf.mxu0
      %v1563 = vpop.f32.mrf.mxu0
      %1564 = vdwg.mxu0
      %v1566 = vsel %vm1311, %v1458, 0
      %v1569 = vsel %vm1475, %v548, 0
      %1571 = vmatprep.subr.bf16.mxu0 0
      %1572 = vmatpush1.bf16.msra.mxu0 0
      %1573 = vmatprep.subr.bf16.mxu0 0
      %1574 = vmatpush1.bf16.msra.mxu0 0
      %1575 = vmatprep.subr.bf16.mxu0 0
      %1576 = vmatpush1.bf16.msra.mxu0 0
      %1577 = vmatprep.subr.bf16.mxu0 0
      %1578 = vmatpush1.bf16.msra.mxu0 0
      %1579 = vmatprep.subr.bf16.mxu0 0
      %1580 = vmatpush1.bf16.msra.mxu0 0
      %1581 = vmatprep.subr.bf16.mxu0 0
      %1582 = vmatpush1.bf16.msra.mxu0 0
      %1583 = vmatprep.subr.bf16.mxu0 0
      %1584 = vmatpush1.bf16.msra.mxu0 0
      %1585 = vmatprep.subr.bf16.mxu0 0
      %1586 = vmatpush1.bf16.msra.mxu0 %v1569
      %1587 = vmatprep.subr.bf16.mxu0 0
      %1588 = vmatpush2.bf16.msra.mxu0 0
      %1589 = vmatprep.subr.bf16.mxu0 0
      %1590 = vmatpush2.bf16.msra.mxu0 0
      %1591 = vmatprep.subr.bf16.mxu0 0
      %1592 = vmatpush2.bf16.msra.mxu0 0
      %1593 = vmatprep.subr.bf16.mxu0 0
      %1594 = vmatpush2.bf16.msra.mxu0 0
      %1595 = vmatprep.subr.bf16.mxu0 0
      %1596 = vmatpush2.bf16.msra.mxu0 0
      %1597 = vmatprep.subr.bf16.mxu0 0
      %1598 = vmatpush2.bf16.msra.mxu0 0
      %1599 = vmatprep.subr.bf16.mxu0 0
      %1600 = vmatpush2.bf16.msra.mxu0 0
      %1601 = vmatprep.subr.bf16.mxu0 0
      %1602 = vmatpush2.bf16.msra.mxu0 0
      %1603 = vmatprep.mubr.bf16.mxu0 0
      %1604 = vmatmul.mubr.bf16.gmra.mxu0 %v1566
      %v1605 = vpop.f32.mrf.mxu0
      %v1606 = vadd.f32 0.0, %v1605
      %v1607 = vpop.f32.mrf.mxu0
      %v1608 = vpop.f32.mrf.mxu0
      %v1609 = vpop.f32.mrf.mxu0
      %1610 = vdwg.mxu0
      %v1612 = vsel %vm1311, %v1459, 0
      %v1615 = vsel %vm1475, %v549, 0
      %1617 = vmatprep.subr.bf16.mxu0 0
      %1618 = vmatpush1.bf16.msra.mxu0 0
      %1619 = vmatprep.subr.bf16.mxu0 0
      %1620 = vmatpush1.bf16.msra.mxu0 0
      %1621 = vmatprep.subr.bf16.mxu0 0
      %1622 = vmatpush1.bf16.msra.mxu0 0
      %1623 = vmatprep.subr.bf16.mxu0 0
      %1624 = vmatpush1.bf16.msra.mxu0 0
      %1625 = vmatprep.subr.bf16.mxu0 0
      %1626 = vmatpush1.bf16.msra.mxu0 0
      %1627 = vmatprep.subr.bf16.mxu0 0
      %1628 = vmatpush1.bf16.msra.mxu0 0
      %1629 = vmatprep.subr.bf16.mxu0 0
      %1630 = vmatpush1.bf16.msra.mxu0 0
      %1631 = vmatprep.subr.bf16.mxu0 0
      %1632 = vmatpush1.bf16.msra.mxu0 %v1615
      %1633 = vmatprep.subr.bf16.mxu0 0
      %1634 = vmatpush2.bf16.msra.mxu0 0
      %1635 = vmatprep.subr.bf16.mxu0 0
      %1636 = vmatpush2.bf16.msra.mxu0 0
      %1637 = vmatprep.subr.bf16.mxu0 0
      %1638 = vmatpush2.bf16.msra.mxu0 0
      %1639 = vmatprep.subr.bf16.mxu0 0
      %1640 = vmatpush2.bf16.msra.mxu0 0
      %1641 = vmatprep.subr.bf16.mxu0 0
      %1642 = vmatpush2.bf16.msra.mxu0 0
      %1643 = vmatprep.subr.bf16.mxu0 0
      %1644 = vmatpush2.bf16.msra.mxu0 0
      %1645 = vmatprep.subr.bf16.mxu0 0
      %1646 = vmatpush2.bf16.msra.mxu0 0
      %1647 = vmatprep.subr.bf16.mxu0 0
      %1648 = vmatpush2.bf16.msra.mxu0 0
      %1649 = vmatprep.mubr.bf16.mxu0 0
      %1650 = vmatmul.mubr.bf16.gmra.mxu0 %v1612
      %v1651 = vpop.f32.mrf.mxu0
      %v1652 = vadd.f32 0.0, %v1651
      %v1653 = vpop.f32.mrf.mxu0
      %v1654 = vpop.f32.mrf.mxu0
      %v1655 = vpop.f32.mrf.mxu0
      %1656 = vdwg.mxu0
      %v1658 = vsel %vm1311, %v1460, 0
      %v1661 = vsel %vm1475, %v550, 0
      %1663 = vmatprep.subr.bf16.mxu0 0
      %1664 = vmatpush1.bf16.msra.mxu0 0
      %1665 = vmatprep.subr.bf16.mxu0 0
      %1666 = vmatpush1.bf16.msra.mxu0 0
      %1667 = vmatprep.subr.bf16.mxu0 0
      %1668 = vmatpush1.bf16.msra.mxu0 0
      %1669 = vmatprep.subr.bf16.mxu0 0
      %1670 = vmatpush1.bf16.msra.mxu0 0
      %1671 = vmatprep.subr.bf16.mxu0 0
      %1672 = vmatpush1.bf16.msra.mxu0 0
      %1673 = vmatprep.subr.bf16.mxu0 0
      %1674 = vmatpush1.bf16.msra.mxu0 0
      %1675 = vmatprep.subr.bf16.mxu0 0
      %1676 = vmatpush1.bf16.msra.mxu0 0
      %1677 = vmatprep.subr.bf16.mxu0 0
      %1678 = vmatpush1.bf16.msra.mxu0 %v1661
      %1679 = vmatprep.subr.bf16.mxu0 0
      %1680 = vmatpush2.bf16.msra.mxu0 0
      %1681 = vmatprep.subr.bf16.mxu0 0
      %1682 = vmatpush2.bf16.msra.mxu0 0
      %1683 = vmatprep.subr.bf16.mxu0 0
      %1684 = vmatpush2.bf16.msra.mxu0 0
      %1685 = vmatprep.subr.bf16.mxu0 0
      %1686 = vmatpush2.bf16.msra.mxu0 0
      %1687 = vmatprep.subr.bf16.mxu0 0
      %1688 = vmatpush2.bf16.msra.mxu0 0
      %1689 = vmatprep.subr.bf16.mxu0 0
      %1690 = vmatpush2.bf16.msra.mxu0 0
      %1691 = vmatprep.subr.bf16.mxu0 0
      %1692 = vmatpush2.bf16.msra.mxu0 0
      %1693 = vmatprep.subr.bf16.mxu0 0
      %1694 = vmatpush2.bf16.msra.mxu0 0
      %1695 = vmatprep.mubr.bf16.mxu0 0
      %1696 = vmatmul.mubr.bf16.gmra.mxu0 %v1658
      %v1697 = vpop.f32.mrf.mxu0
      %v1698 = vadd.f32 0.0, %v1697
      %v1699 = vpop.f32.mrf.mxu0
      %v1700 = vpop.f32.mrf.mxu0
      %v1701 = vpop.f32.mrf.mxu0
      %1702 = vdwg.mxu0
      %v1704 = vsel %vm1311, %v1461, 0
      %v1707 = vsel %vm1475, %v551, 0
      %1709 = vmatprep.subr.bf16.mxu0 0
      %1710 = vmatpush1.bf16.msra.mxu0 0
      %1711 = vmatprep.subr.bf16.mxu0 0
      %1712 = vmatpush1.bf16.msra.mxu0 0
      %1713 = vmatprep.subr.bf16.mxu0 0
      %1714 = vmatpush1.bf16.msra.mxu0 0
      %1715 = vmatprep.subr.bf16.mxu0 0
      %1716 = vmatpush1.bf16.msra.mxu0 0
      %1717 = vmatprep.subr.bf16.mxu0 0
      %1718 = vmatpush1.bf16.msra.mxu0 0
      %1719 = vmatprep.subr.bf16.mxu0 0
      %1720 = vmatpush1.bf16.msra.mxu0 0
      %1721 = vmatprep.subr.bf16.mxu0 0
      %1722 = vmatpush1.bf16.msra.mxu0 0
      %1723 = vmatprep.subr.bf16.mxu0 0
      %1724 = vmatpush1.bf16.msra.mxu0 %v1707
      %1725 = vmatprep.subr.bf16.mxu0 0
      %1726 = vmatpush2.bf16.msra.mxu0 0
      %1727 = vmatprep.subr.bf16.mxu0 0
      %1728 = vmatpush2.bf16.msra.mxu0 0
      %1729 = vmatprep.subr.bf16.mxu0 0
      %1730 = vmatpush2.bf16.msra.mxu0 0
      %1731 = vmatprep.subr.bf16.mxu0 0
      %1732 = vmatpush2.bf16.msra.mxu0 0
      %1733 = vmatprep.subr.bf16.mxu0 0
      %1734 = vmatpush2.bf16.msra.mxu0 0
      %1735 = vmatprep.subr.bf16.mxu0 0
      %1736 = vmatpush2.bf16.msra.mxu0 0
      %1737 = vmatprep.subr.bf16.mxu0 0
      %1738 = vmatpush2.bf16.msra.mxu0 0
      %1739 = vmatprep.subr.bf16.mxu0 0
      %1740 = vmatpush2.bf16.msra.mxu0 0
      %1741 = vmatprep.mubr.bf16.mxu0 0
      %1742 = vmatmul.mubr.bf16.gmra.mxu0 %v1704
      %v1743 = vpop.f32.mrf.mxu0
      %v1744 = vadd.f32 0.0, %v1743
      %v1745 = vpop.f32.mrf.mxu0
      %v1746 = vpop.f32.mrf.mxu0
      %v1747 = vpop.f32.mrf.mxu0
      %1748 = vdwg.mxu0
      %v1750 = vsel %vm1311, %v1462, 0
      %v1753 = vsel %vm1475, %v552, 0
      %1755 = vmatprep.subr.bf16.mxu0 0
      %1756 = vmatpush1.bf16.msra.mxu0 0
      %1757 = vmatprep.subr.bf16.mxu0 0
      %1758 = vmatpush1.bf16.msra.mxu0 0
      %1759 = vmatprep.subr.bf16.mxu0 0
      %1760 = vmatpush1.bf16.msra.mxu0 0
      %1761 = vmatprep.subr.bf16.mxu0 0
      %1762 = vmatpush1.bf16.msra.mxu0 0
      %1763 = vmatprep.subr.bf16.mxu0 0
      %1764 = vmatpush1.bf16.msra.mxu0 0
      %1765 = vmatprep.subr.bf16.mxu0 0
      %1766 = vmatpush1.bf16.msra.mxu0 0
      %1767 = vmatprep.subr.bf16.mxu0 0
      %1768 = vmatpush1.bf16.msra.mxu0 0
      %1769 = vmatprep.subr.bf16.mxu0 0
      %1770 = vmatpush1.bf16.msra.mxu0 %v1753
      %1771 = vmatprep.subr.bf16.mxu0 0
      %1772 = vmatpush2.bf16.msra.mxu0 0
      %1773 = vmatprep.subr.bf16.mxu0 0
      %1774 = vmatpush2.bf16.msra.mxu0 0
      %1775 = vmatprep.subr.bf16.mxu0 0
      %1776 = vmatpush2.bf16.msra.mxu0 0
      %1777 = vmatprep.subr.bf16.mxu0 0
      %1778 = vmatpush2.bf16.msra.mxu0 0
      %1779 = vmatprep.subr.bf16.mxu0 0
      %1780 = vmatpush2.bf16.msra.mxu0 0
      %1781 = vmatprep.subr.bf16.mxu0 0
      %1782 = vmatpush2.bf16.msra.mxu0 0
      %1783 = vmatprep.subr.bf16.mxu0 0
      %1784 = vmatpush2.bf16.msra.mxu0 0
      %1785 = vmatprep.subr.bf16.mxu0 0
      %1786 = vmatpush2.bf16.msra.mxu0 0
      %1787 = vmatprep.mubr.bf16.mxu0 0
      %1788 = vmatmul.mubr.bf16.gmra.mxu0 %v1750
      %v1789 = vpop.f32.mrf.mxu0
      %v1790 = vadd.f32 0.0, %v1789
      %v1791 = vpop.f32.mrf.mxu0
      %v1792 = vpop.f32.mrf.mxu0
      %v1793 = vpop.f32.mrf.mxu0
      %1794 = vdwg.mxu0
      %v1796 = vsel %vm1311, %v1463, 0
      %v1799 = vsel %vm1475, %v553, 0
      %1801 = vmatprep.subr.bf16.mxu0 0
      %1802 = vmatpush1.bf16.msra.mxu0 0
      %1803 = vmatprep.subr.bf16.mxu0 0
      %1804 = vmatpush1.bf16.msra.mxu0 0
      %1805 = vmatprep.subr.bf16.mxu0 0
      %1806 = vmatpush1.bf16.msra.mxu0 0
      %1807 = vmatprep.subr.bf16.mxu0 0
      %1808 = vmatpush1.bf16.msra.mxu0 0
      %1809 = vmatprep.subr.bf16.mxu0 0
      %1810 = vmatpush1.bf16.msra.mxu0 0
      %1811 = vmatprep.subr.bf16.mxu0 0
      %1812 = vmatpush1.bf16.msra.mxu0 0
      %1813 = vmatprep.subr.bf16.mxu0 0
      %1814 = vmatpush1.bf16.msra.mxu0 0
      %1815 = vmatprep.subr.bf16.mxu0 0
      %1816 = vmatpush1.bf16.msra.mxu0 %v1799
      %1817 = vmatprep.subr.bf16.mxu0 0
      %1818 = vmatpush2.bf16.msra.mxu0 0
      %1819 = vmatprep.subr.bf16.mxu0 0
      %1820 = vmatpush2.bf16.msra.mxu0 0
      %1821 = vmatprep.subr.bf16.mxu0 0
      %1822 = vmatpush2.bf16.msra.mxu0 0
      %1823 = vmatprep.subr.bf16.mxu0 0
      %1824 = vmatpush2.bf16.msra.mxu0 0
      %1825 = vmatprep.subr.bf16.mxu0 0
      %1826 = vmatpush2.bf16.msra.mxu0 0
      %1827 = vmatprep.subr.bf16.mxu0 0
      %1828 = vmatpush2.bf16.msra.mxu0 0
      %1829 = vmatprep.subr.bf16.mxu0 0
      %1830 = vmatpush2.bf16.msra.mxu0 0
      %1831 = vmatprep.subr.bf16.mxu0 0
      %1832 = vmatpush2.bf16.msra.mxu0 0
      %1833 = vmatprep.mubr.bf16.mxu0 0
      %1834 = vmatmul.mubr.bf16.gmra.mxu0 %v1796
      %v1835 = vpop.f32.mrf.mxu0
      %v1836 = vadd.f32 0.0, %v1835
      %v1837 = vpop.f32.mrf.mxu0
      %v1838 = vpop.f32.mrf.mxu0
      %v1839 = vpop.f32.mrf.mxu0
      %1840 = vdwg.mxu0
      %v1842 = vsel %vm1311, %v1464, 0
      %v1845 = vsel %vm1475, %v554, 0
      %1847 = vmatprep.subr.bf16.mxu0 0
      %1848 = vmatpush1.bf16.msra.mxu0 0
      %1849 = vmatprep.subr.bf16.mxu0 0
      %1850 = vmatpush1.bf16.msra.mxu0 0
      %1851 = vmatprep.subr.bf16.mxu0 0
      %1852 = vmatpush1.bf16.msra.mxu0 0
      %1853 = vmatprep.subr.bf16.mxu0 0
      %1854 = vmatpush1.bf16.msra.mxu0 0
      %1855 = vmatprep.subr.bf16.mxu0 0
      %1856 = vmatpush1.bf16.msra.mxu0 0
      %1857 = vmatprep.subr.bf16.mxu0 0
      %1858 = vmatpush1.bf16.msra.mxu0 0
      %1859 = vmatprep.subr.bf16.mxu0 0
      %1860 = vmatpush1.bf16.msra.mxu0 0
      %1861 = vmatprep.subr.bf16.mxu0 0
      %1862 = vmatpush1.bf16.msra.mxu0 %v1845
      %1863 = vmatprep.subr.bf16.mxu0 0
      %1864 = vmatpush2.bf16.msra.mxu0 0
      %1865 = vmatprep.subr.bf16.mxu0 0
      %1866 = vmatpush2.bf16.msra.mxu0 0
      %1867 = vmatprep.subr.bf16.mxu0 0
      %1868 = vmatpush2.bf16.msra.mxu0 0
      %1869 = vmatprep.subr.bf16.mxu0 0
      %1870 = vmatpush2.bf16.msra.mxu0 0
      %1871 = vmatprep.subr.bf16.mxu0 0
      %1872 = vmatpush2.bf16.msra.mxu0 0
      %1873 = vmatprep.subr.bf16.mxu0 0
      %1874 = vmatpush2.bf16.msra.mxu0 0
      %1875 = vmatprep.subr.bf16.mxu0 0
      %1876 = vmatpush2.bf16.msra.mxu0 0
      %1877 = vmatprep.subr.bf16.mxu0 0
      %1878 = vmatpush2.bf16.msra.mxu0 0
      %1879 = vmatprep.mubr.bf16.mxu0 0
      %1880 = vmatmul.mubr.bf16.gmra.mxu0 %v1842
      %v1881 = vpop.f32.mrf.mxu0
      %v1882 = vadd.f32 0.0, %v1881
      %v1883 = vpop.f32.mrf.mxu0
      %v1884 = vpop.f32.mrf.mxu0
      %v1885 = vpop.f32.mrf.mxu0
      %1886 = vdwg.mxu0
      %v1888 = vsel %vm1311, %v1465, 0
      %v1891 = vsel %vm1475, %v555, 0
      %1893 = vmatprep.subr.bf16.mxu0 0
      %1894 = vmatpush1.bf16.msra.mxu0 0
      %1895 = vmatprep.subr.bf16.mxu0 0
      %1896 = vmatpush1.bf16.msra.mxu0 0
      %1897 = vmatprep.subr.bf16.mxu0 0
      %1898 = vmatpush1.bf16.msra.mxu0 0
      %1899 = vmatprep.subr.bf16.mxu0 0
      %1900 = vmatpush1.bf16.msra.mxu0 0
      %1901 = vmatprep.subr.bf16.mxu0 0
      %1902 = vmatpush1.bf16.msra.mxu0 0
      %1903 = vmatprep.subr.bf16.mxu0 0
      %1904 = vmatpush1.bf16.msra.mxu0 0
      %1905 = vmatprep.subr.bf16.mxu0 0
      %1906 = vmatpush1.bf16.msra.mxu0 0
      %1907 = vmatprep.subr.bf16.mxu0 0
      %1908 = vmatpush1.bf16.msra.mxu0 %v1891
      %1909 = vmatprep.subr.bf16.mxu0 0
      %1910 = vmatpush2.bf16.msra.mxu0 0
      %1911 = vmatprep.subr.bf16.mxu0 0
      %1912 = vmatpush2.bf16.msra.mxu0 0
      %1913 = vmatprep.subr.bf16.mxu0 0
      %1914 = vmatpush2.bf16.msra.mxu0 0
      %1915 = vmatprep.subr.bf16.mxu0 0
      %1916 = vmatpush2.bf16.msra.mxu0 0
      %1917 = vmatprep.subr.bf16.mxu0 0
      %1918 = vmatpush2.bf16.msra.mxu0 0
      %1919 = vmatprep.subr.bf16.mxu0 0
      %1920 = vmatpush2.bf16.msra.mxu0 0
      %1921 = vmatprep.subr.bf16.mxu0 0
      %1922 = vmatpush2.bf16.msra.mxu0 0
      %1923 = vmatprep.subr.bf16.mxu0 0
      %1924 = vmatpush2.bf16.msra.mxu0 0
      %1925 = vmatprep.mubr.bf16.mxu0 0
      %1926 = vmatmul.mubr.bf16.gmra.mxu0 %v1888
      %v1927 = vpop.f32.mrf.mxu0
      %v1928 = vadd.f32 0.0, %v1927
      %v1929 = vpop.f32.mrf.mxu0
      %v1930 = vpop.f32.mrf.mxu0
      %v1931 = vpop.f32.mrf.mxu0
      %1932 = vdwg.mxu0
      %v1934 = vsel %vm1311, %v1466, 0
      %v1937 = vsel %vm1475, %v556, 0
      %1939 = vmatprep.subr.bf16.mxu0 0
      %1940 = vmatpush1.bf16.msra.mxu0 0
      %1941 = vmatprep.subr.bf16.mxu0 0
      %1942 = vmatpush1.bf16.msra.mxu0 0
      %1943 = vmatprep.subr.bf16.mxu0 0
      %1944 = vmatpush1.bf16.msra.mxu0 0
      %1945 = vmatprep.subr.bf16.mxu0 0
      %1946 = vmatpush1.bf16.msra.mxu0 0
      %1947 = vmatprep.subr.bf16.mxu0 0
      %1948 = vmatpush1.bf16.msra.mxu0 0
      %1949 = vmatprep.subr.bf16.mxu0 0
      %1950 = vmatpush1.bf16.msra.mxu0 0
      %1951 = vmatprep.subr.bf16.mxu0 0
      %1952 = vmatpush1.bf16.msra.mxu0 0
      %1953 = vmatprep.subr.bf16.mxu0 0
      %1954 = vmatpush1.bf16.msra.mxu0 %v1937
      %1955 = vmatprep.subr.bf16.mxu0 0
      %1956 = vmatpush2.bf16.msra.mxu0 0
      %1957 = vmatprep.subr.bf16.mxu0 0
      %1958 = vmatpush2.bf16.msra.mxu0 0
      %1959 = vmatprep.subr.bf16.mxu0 0
      %1960 = vmatpush2.bf16.msra.mxu0 0
      %1961 = vmatprep.subr.bf16.mxu0 0
      %1962 = vmatpush2.bf16.msra.mxu0 0
      %1963 = vmatprep.subr.bf16.mxu0 0
      %1964 = vmatpush2.bf16.msra.mxu0 0
      %1965 = vmatprep.subr.bf16.mxu0 0
      %1966 = vmatpush2.bf16.msra.mxu0 0
      %1967 = vmatprep.subr.bf16.mxu0 0
      %1968 = vmatpush2.bf16.msra.mxu0 0
      %1969 = vmatprep.subr.bf16.mxu0 0
      %1970 = vmatpush2.bf16.msra.mxu0 0
      %1971 = vmatprep.mubr.bf16.mxu0 0
      %1972 = vmatmul.mubr.bf16.gmra.mxu0 %v1934
      %v1973 = vpop.f32.mrf.mxu0
      %v1974 = vadd.f32 0.0, %v1973
      %v1975 = vpop.f32.mrf.mxu0
      %v1976 = vpop.f32.mrf.mxu0
      %v1977 = vpop.f32.mrf.mxu0
      %1978 = vdwg.mxu0
      %v1980 = vsel %vm1311, %v1467, 0
      %v1983 = vsel %vm1475, %v557, 0
      %1985 = vmatprep.subr.bf16.mxu0 0
      %1986 = vmatpush1.bf16.msra.mxu0 0
      %1987 = vmatprep.subr.bf16.mxu0 0
      %1988 = vmatpush1.bf16.msra.mxu0 0
      %1989 = vmatprep.subr.bf16.mxu0 0
      %1990 = vmatpush1.bf16.msra.mxu0 0
      %1991 = vmatprep.subr.bf16.mxu0 0
      %1992 = vmatpush1.bf16.msra.mxu0 0
      %1993 = vmatprep.subr.bf16.mxu0 0
      %1994 = vmatpush1.bf16.msra.mxu0 0
      %1995 = vmatprep.subr.bf16.mxu0 0
      %1996 = vmatpush1.bf16.msra.mxu0 0
      %1997 = vmatprep.subr.bf16.mxu0 0
      %1998 = vmatpush1.bf16.msra.mxu0 0
      %1999 = vmatprep.subr.bf16.mxu0 0
      %2000 = vmatpush1.bf16.msra.mxu0 %v1983
      %2001 = vmatprep.subr.bf16.mxu0 0
      %2002 = vmatpush2.bf16.msra.mxu0 0
      %2003 = vmatprep.subr.bf16.mxu0 0
      %2004 = vmatpush2.bf16.msra.mxu0 0
      %2005 = vmatprep.subr.bf16.mxu0 0
      %2006 = vmatpush2.bf16.msra.mxu0 0
      %2007 = vmatprep.subr.bf16.mxu0 0
      %2008 = vmatpush2.bf16.msra.mxu0 0
      %2009 = vmatprep.subr.bf16.mxu0 0
      %2010 = vmatpush2.bf16.msra.mxu0 0
      %2011 = vmatprep.subr.bf16.mxu0 0
      %2012 = vmatpush2.bf16.msra.mxu0 0
      %2013 = vmatprep.subr.bf16.mxu0 0
      %2014 = vmatpush2.bf16.msra.mxu0 0
      %2015 = vmatprep.subr.bf16.mxu0 0
      %2016 = vmatpush2.bf16.msra.mxu0 0
      %2017 = vmatprep.mubr.bf16.mxu0 0
      %2018 = vmatmul.mubr.bf16.gmra.mxu0 %v1980
      %v2019 = vpop.f32.mrf.mxu0
      %v2020 = vadd.f32 0.0, %v2019
      %v2021 = vpop.f32.mrf.mxu0
      %v2022 = vpop.f32.mrf.mxu0
      %v2023 = vpop.f32.mrf.mxu0
      %2024 = vdwg.mxu0
      %v2026 = vsel %vm1311, %v1468, 0
      %v2029 = vsel %vm1475, %v558, 0
      %2031 = vmatprep.subr.bf16.mxu0 0
      %2032 = vmatpush1.bf16.msra.mxu0 0
      %2033 = vmatprep.subr.bf16.mxu0 0
      %2034 = vmatpush1.bf16.msra.mxu0 0
      %2035 = vmatprep.subr.bf16.mxu0 0
      %2036 = vmatpush1.bf16.msra.mxu0 0
      %2037 = vmatprep.subr.bf16.mxu0 0
      %2038 = vmatpush1.bf16.msra.mxu0 0
      %2039 = vmatprep.subr.bf16.mxu0 0
      %2040 = vmatpush1.bf16.msra.mxu0 0
      %2041 = vmatprep.subr.bf16.mxu0 0
      %2042 = vmatpush1.bf16.msra.mxu0 0
      %2043 = vmatprep.subr.bf16.mxu0 0
      %2044 = vmatpush1.bf16.msra.mxu0 0
      %2045 = vmatprep.subr.bf16.mxu0 0
      %2046 = vmatpush1.bf16.msra.mxu0 %v2029
      %2047 = vmatprep.subr.bf16.mxu0 0
      %2048 = vmatpush2.bf16.msra.mxu0 0
      %2049 = vmatprep.subr.bf16.mxu0 0
      %2050 = vmatpush2.bf16.msra.mxu0 0
      %2051 = vmatprep.subr.bf16.mxu0 0
      %2052 = vmatpush2.bf16.msra.mxu0 0
      %2053 = vmatprep.subr.bf16.mxu0 0
      %2054 = vmatpush2.bf16.msra.mxu0 0
      %2055 = vmatprep.subr.bf16.mxu0 0
      %2056 = vmatpush2.bf16.msra.mxu0 0
      %2057 = vmatprep.subr.bf16.mxu0 0
      %2058 = vmatpush2.bf16.msra.mxu0 0
      %2059 = vmatprep.subr.bf16.mxu0 0
      %2060 = vmatpush2.bf16.msra.mxu0 0
      %2061 = vmatprep.subr.bf16.mxu0 0
      %2062 = vmatpush2.bf16.msra.mxu0 0
      %2063 = vmatprep.mubr.bf16.mxu0 0
      %2064 = vmatmul.mubr.bf16.gmra.mxu0 %v2026
      %v2065 = vpop.f32.mrf.mxu0
      %v2066 = vadd.f32 0.0, %v2065
      %v2067 = vpop.f32.mrf.mxu0
      %v2068 = vpop.f32.mrf.mxu0
      %v2069 = vpop.f32.mrf.mxu0
      %2070 = vdwg.mxu0
      %v2072 = vsel %vm1311, %v1469, 0
      %v2075 = vsel %vm1475, %v559, 0
      %2077 = vmatprep.subr.bf16.mxu0 0
      %2078 = vmatpush1.bf16.msra.mxu0 0
      %2079 = vmatprep.subr.bf16.mxu0 0
      %2080 = vmatpush1.bf16.msra.mxu0 0
      %2081 = vmatprep.subr.bf16.mxu0 0
      %2082 = vmatpush1.bf16.msra.mxu0 0
      %2083 = vmatprep.subr.bf16.mxu0 0
      %2084 = vmatpush1.bf16.msra.mxu0 0
      %2085 = vmatprep.subr.bf16.mxu0 0
      %2086 = vmatpush1.bf16.msra.mxu0 0
      %2087 = vmatprep.subr.bf16.mxu0 0
      %2088 = vmatpush1.bf16.msra.mxu0 0
      %2089 = vmatprep.subr.bf16.mxu0 0
      %2090 = vmatpush1.bf16.msra.mxu0 0
      %2091 = vmatprep.subr.bf16.mxu0 0
      %2092 = vmatpush1.bf16.msra.mxu0 %v2075
      %2093 = vmatprep.subr.bf16.mxu0 0
      %2094 = vmatpush2.bf16.msra.mxu0 0
      %2095 = vmatprep.subr.bf16.mxu0 0
      %2096 = vmatpush2.bf16.msra.mxu0 0
      %2097 = vmatprep.subr.bf16.mxu0 0
      %2098 = vmatpush2.bf16.msra.mxu0 0
      %2099 = vmatprep.subr.bf16.mxu0 0
      %2100 = vmatpush2.bf16.msra.mxu0 0
      %2101 = vmatprep.subr.bf16.mxu0 0
      %2102 = vmatpush2.bf16.msra.mxu0 0
      %2103 = vmatprep.subr.bf16.mxu0 0
      %2104 = vmatpush2.bf16.msra.mxu0 0
      %2105 = vmatprep.subr.bf16.mxu0 0
      %2106 = vmatpush2.bf16.msra.mxu0 0
      %2107 = vmatprep.subr.bf16.mxu0 0
      %2108 = vmatpush2.bf16.msra.mxu0 0
      %2109 = vmatprep.mubr.bf16.mxu0 0
      %2110 = vmatmul.mubr.bf16.gmra.mxu0 %v2072
      %v2111 = vpop.f32.mrf.mxu0
      %v2112 = vadd.f32 0.0, %v2111
      %v2113 = vpop.f32.mrf.mxu0
      %v2114 = vpop.f32.mrf.mxu0
      %v2115 = vpop.f32.mrf.mxu0
      %2116 = vdwg.mxu0
      %v2118 = vsel %vm1311, %v1470, 0
      %v2121 = vsel %vm1475, %v560, 0
      %2123 = vmatprep.subr.bf16.mxu0 0
      %2124 = vmatpush1.bf16.msra.mxu0 0
      %2125 = vmatprep.subr.bf16.mxu0 0
      %2126 = vmatpush1.bf16.msra.mxu0 0
      %2127 = vmatprep.subr.bf16.mxu0 0
      %2128 = vmatpush1.bf16.msra.mxu0 0
      %2129 = vmatprep.subr.bf16.mxu0 0
      %2130 = vmatpush1.bf16.msra.mxu0 0
      %2131 = vmatprep.subr.bf16.mxu0 0
      %2132 = vmatpush1.bf16.msra.mxu0 0
      %2133 = vmatprep.subr.bf16.mxu0 0
      %2134 = vmatpush1.bf16.msra.mxu0 0
      %2135 = vmatprep.subr.bf16.mxu0 0
      %2136 = vmatpush1.bf16.msra.mxu0 0
      %2137 = vmatprep.subr.bf16.mxu0 0
      %2138 = vmatpush1.bf16.msra.mxu0 %v2121
      %2139 = vmatprep.subr.bf16.mxu0 0
      %2140 = vmatpush2.bf16.msra.mxu0 0
      %2141 = vmatprep.subr.bf16.mxu0 0
      %2142 = vmatpush2.bf16.msra.mxu0 0
      %2143 = vmatprep.subr.bf16.mxu0 0
      %2144 = vmatpush2.bf16.msra.mxu0 0
      %2145 = vmatprep.subr.bf16.mxu0 0
      %2146 = vmatpush2.bf16.msra.mxu0 0
      %2147 = vmatprep.subr.bf16.mxu0 0
      %2148 = vmatpush2.bf16.msra.mxu0 0
      %2149 = vmatprep.subr.bf16.mxu0 0
      %2150 = vmatpush2.bf16.msra.mxu0 0
      %2151 = vmatprep.subr.bf16.mxu0 0
      %2152 = vmatpush2.bf16.msra.mxu0 0
      %2153 = vmatprep.subr.bf16.mxu0 0
      %2154 = vmatpush2.bf16.msra.mxu0 0
      %2155 = vmatprep.mubr.bf16.mxu0 0
      %2156 = vmatmul.mubr.bf16.gmra.mxu0 %v2118
      %v2157 = vpop.f32.mrf.mxu0
      %v2158 = vadd.f32 0.0, %v2157
      %v2159 = vpop.f32.mrf.mxu0
      %v2160 = vpop.f32.mrf.mxu0
      %v2161 = vpop.f32.mrf.mxu0
      %2162 = vdwg.mxu0
      %v2164 = vsel %vm1311, %v1471, 0
      %v2167 = vsel %vm1475, %v561, 0
      %2169 = vmatprep.subr.bf16.mxu0 0
      %2170 = vmatpush1.bf16.msra.mxu0 0
      %2171 = vmatprep.subr.bf16.mxu0 0
      %2172 = vmatpush1.bf16.msra.mxu0 0
      %2173 = vmatprep.subr.bf16.mxu0 0
      %2174 = vmatpush1.bf16.msra.mxu0 0
      %2175 = vmatprep.subr.bf16.mxu0 0
      %2176 = vmatpush1.bf16.msra.mxu0 0
      %2177 = vmatprep.subr.bf16.mxu0 0
      %2178 = vmatpush1.bf16.msra.mxu0 0
      %2179 = vmatprep.subr.bf16.mxu0 0
      %2180 = vmatpush1.bf16.msra.mxu0 0
      %2181 = vmatprep.subr.bf16.mxu0 0
      %2182 = vmatpush1.bf16.msra.mxu0 0
      %2183 = vmatprep.subr.bf16.mxu0 0
      %2184 = vmatpush1.bf16.msra.mxu0 %v2167
      %2185 = vmatprep.subr.bf16.mxu0 0
      %2186 = vmatpush2.bf16.msra.mxu0 0
      %2187 = vmatprep.subr.bf16.mxu0 0
      %2188 = vmatpush2.bf16.msra.mxu0 0
      %2189 = vmatprep.subr.bf16.mxu0 0
      %2190 = vmatpush2.bf16.msra.mxu0 0
      %2191 = vmatprep.subr.bf16.mxu0 0
      %2192 = vmatpush2.bf16.msra.mxu0 0
      %2193 = vmatprep.subr.bf16.mxu0 0
      %2194 = vmatpush2.bf16.msra.mxu0 0
      %2195 = vmatprep.subr.bf16.mxu0 0
      %2196 = vmatpush2.bf16.msra.mxu0 0
      %2197 = vmatprep.subr.bf16.mxu0 0
      %2198 = vmatpush2.bf16.msra.mxu0 0
      %2199 = vmatprep.subr.bf16.mxu0 0
      %2200 = vmatpush2.bf16.msra.mxu0 0
      %2201 = vmatprep.mubr.bf16.mxu0 0
      %2202 = vmatmul.mubr.bf16.gmra.mxu0 %v2164
      %v2203 = vpop.f32.mrf.mxu0
      %v2204 = vadd.f32 0.0, %v2203
      %v2205 = vpop.f32.mrf.mxu0
      %v2206 = vpop.f32.mrf.mxu0
      %v2207 = vpop.f32.mrf.mxu0
      %2208 = vdwg.mxu0
      %v2209 = vrcp.pop %v1410
      %v2210 = vrcp.pop %v1413
      %v2211 = vrcp.pop %v1416
      %v2212 = vrcp.pop %v1419
      %v2213 = vrcp.pop %v1422
      %v2214 = vrcp.pop %v1425
      %v2215 = vrcp.pop %v1428
      %v2216 = vrcp.pop %v1431
      %v2217 = vrcp.pop %v1434
      %v2218 = vrcp.pop %v1437
      %v2219 = vrcp.pop %v1440
      %v2220 = vrcp.pop %v1443
      %v2221 = vrcp.pop %v1446
      %v2222 = vrcp.pop %v1449
      %v2223 = vrcp.pop %v1452
      %v2224 = vrcp.pop %v1455
      %v2225 = vmul.f32 %v1514, %v2209
      %v2226 = vmul.f32 %v1560, %v2210
      %v2227 = vmul.f32 %v1606, %v2211
      %v2228 = vmul.f32 %v1652, %v2212
      %v2229 = vmul.f32 %v1698, %v2213
      %v2230 = vmul.f32 %v1744, %v2214
      %v2231 = vmul.f32 %v1790, %v2215
      %v2232 = vmul.f32 %v1836, %v2216
      %v2233 = vmul.f32 %v1882, %v2217
      %v2234 = vmul.f32 %v1928, %v2218
      %v2235 = vmul.f32 %v1974, %v2219
      %v2236 = vmul.f32 %v2020, %v2220
      %v2237 = vmul.f32 %v2066, %v2221
      %v2238 = vmul.f32 %v2112, %v2222
      %v2239 = vmul.f32 %v2158, %v2223
      %v2240 = vmul.f32 %v2204, %v2224
      %2243 = vrot.lane.b32.xlu0 %v2227, 16
      %v2244 = vpop.permute.xlu0 %2243
      %2245 = vrot.lane.b32.xlu0 %v2228, 16
      %v2246 = vpop.permute.xlu0 %2245
      %2251 = vrot.lane.b32.xlu0 %v2229, 32
      %v2252 = vpop.permute.xlu0 %2251
      %2253 = vrot.lane.b32.xlu0 %v2230, 32
      %v2254 = vpop.permute.xlu0 %2253
      %2259 = vrot.lane.b32.xlu0 %v2231, 48
      %v2260 = vpop.permute.xlu0 %2259
      %2261 = vrot.lane.b32.xlu0 %v2232, 48
      %v2262 = vpop.permute.xlu0 %2261
      %2267 = vrot.lane.b32.xlu0 %v2233, 64
      %v2268 = vpop.permute.xlu0 %2267
      %2269 = vrot.lane.b32.xlu0 %v2234, 64
      %v2270 = vpop.permute.xlu0 %2269
      %2275 = vrot.lane.b32.xlu0 %v2235, 80
      %v2276 = vpop.permute.xlu0 %2275
      %2277 = vrot.lane.b32.xlu0 %v2236, 80
      %v2278 = vpop.permute.xlu0 %2277
      %2283 = vrot.lane.b32.xlu0 %v2237, 96
      %v2284 = vpop.permute.xlu0 %2283
      %2285 = vrot.lane.b32.xlu0 %v2238, 96
      %v2286 = vpop.permute.xlu0 %2285
      %2291 = vrot.lane.b32.xlu0 %v2239, 112
      %v2292 = vpop.permute.xlu0 %2291
      %2293 = vrot.lane.b32.xlu0 %v2240, 112
      %v2294 = vpop.permute.xlu0 %2293
      %v2297 = vsel %vm574, %v2225, %v2244
      %v2298 = vsel %vm574, %v2226, %v2246
      %vm2299 = vcmask 261120
      %v2300 = vsel %vm2299, %v2297, %v2252
      %v2301 = vsel %vm2299, %v2298, %v2254
      %vm2302 = vcmask 392192
      %v2303 = vsel %vm2302, %v2300, %v2260
      %v2304 = vsel %vm2302, %v2301, %v2262
      %vm2305 = vcmask 523264
      %v2306 = vsel %vm2305, %v2303, %v2268
      %v2307 = vsel %vm2305, %v2304, %v2270
      %vm2308 = vcmask 654336
      %v2309 = vsel %vm2308, %v2306, %v2276
      %v2310 = vsel %vm2308, %v2307, %v2278
      %vm2311 = vcmask 785408
      %v2312 = vsel %vm2311, %v2309, %v2284
      %v2313 = vsel %vm2311, %v2310, %v2286
      %vm2314 = vcmask 916480
      %v2315 = vsel %vm2314, %v2312, %v2292
      %v2316 = vsel %vm2314, %v2313, %v2294
      %v2317 = vpack.c.bf16 %v2316, %v2315
      %s2318 = smul.u32 %s105, 16
      %s2319 = smul.addr %s2318, 4
      %s2320 = scalar_lea.vmem [#allocation4], %s2319
      %v2321 = vld [vmem:[%s2320] sm:$0xf]
      %v2322 = vld [vmem:[%s2320 + $0x4] sm:$0xf]
      %v2323 = vld [vmem:[%s2320 + $0x8] sm:$0xf]
      %v2324 = vld [vmem:[%s2320 + $0xc] sm:$0xf]
      %v2325 = vld [vmem:[%s2320 + $0x10] sm:$0xf]
      %v2326 = vld [vmem:[%s2320 + $0x14] sm:$0xf]
      %v2327 = vld [vmem:[%s2320 + $0x18] sm:$0xf]
      %v2328 = vld [vmem:[%s2320 + $0x1c] sm:$0xf]
      %v2329 = vld [vmem:[%s2320 + $0x20] sm:$0xf]
      %v2330 = vld [vmem:[%s2320 + $0x24] sm:$0xf]
      %v2331 = vld [vmem:[%s2320 + $0x28] sm:$0xf]
      %v2332 = vld [vmem:[%s2320 + $0x2c] sm:$0xf]
      %v2333 = vld [vmem:[%s2320 + $0x30] sm:$0xf]
      %v2334 = vld [vmem:[%s2320 + $0x34] sm:$0xf]
      %v2335 = vld [vmem:[%s2320 + $0x38] sm:$0xf]
      %v2336 = vld [vmem:[%s2320 + $0x3c] sm:$0xf]
      %v2337 = vlaneseq
      %v2338 = vshrl.u32 %v2337, 7
      %v2339 = vsub.s32 0, %v2338
      %v2340 = vrot.slane %v114, %v2339
      %v2357 = vunpack.c.l.b16 %v2321
      %v2358 = vunpack.c.l.b16 %v2322
      %v2359 = vunpack.c.l.b16 %v2323
      %v2360 = vunpack.c.l.b16 %v2324
      %v2361 = vunpack.c.l.b16 %v2325
      %v2362 = vunpack.c.l.b16 %v2326
      %v2363 = vunpack.c.l.b16 %v2327
      %v2364 = vunpack.c.l.b16 %v2328
      %v2365 = vunpack.c.l.b16 %v2329
      %v2366 = vunpack.c.l.b16 %v2330
      %v2367 = vunpack.c.l.b16 %v2331
      %v2368 = vunpack.c.l.b16 %v2332
      %v2369 = vunpack.c.l.b16 %v2333
      %v2370 = vunpack.c.l.b16 %v2334
      %v2371 = vunpack.c.l.b16 %v2335
      %v2372 = vunpack.c.l.b16 %v2336
      %v2373 = vpack.c.b16 %v2358, %v2357
      %v2374 = vpack.c.b16 %v2360, %v2359
      %v2375 = vpack.c.b16 %v2362, %v2361
      %v2376 = vpack.c.b16 %v2364, %v2363
      %v2377 = vpack.c.b16 %v2366, %v2365
      %v2378 = vpack.c.b16 %v2368, %v2367
      %v2379 = vpack.c.b16 %v2370, %v2369
      %v2380 = vpack.c.b16 %v2372, %v2371
      %2389 = vmatprep.subr.bf16.mxu0 0
      %2390 = vmatpush1.bf16.msra.mxu0 %v2380
      %2391 = vmatprep.subr.bf16.mxu0 0
      %2392 = vmatpush1.bf16.msra.mxu0 %v2379
      %2393 = vmatprep.subr.bf16.mxu0 0
      %2394 = vmatpush1.bf16.msra.mxu0 %v2378
      %2395 = vmatprep.subr.bf16.mxu0 0
      %2396 = vmatpush1.bf16.msra.mxu0 %v2377
      %2397 = vmatprep.subr.bf16.mxu0 0
      %2398 = vmatpush1.bf16.msra.mxu0 %v2376
      %2399 = vmatprep.subr.bf16.mxu0 0
      %2400 = vmatpush1.bf16.msra.mxu0 %v2375
      %2401 = vmatprep.subr.bf16.mxu0 0
      %2402 = vmatpush1.bf16.msra.mxu0 %v2374
      %2403 = vmatprep.subr.bf16.mxu0 0
      %2404 = vmatpush1.bf16.msra.mxu0 %v2373
      %2405 = vmatprep.subr.bf16.mxu0 0
      %2406 = vmatpush2.bf16.msra.mxu0 0
      %2407 = vmatprep.subr.bf16.mxu0 0
      %2408 = vmatpush2.bf16.msra.mxu0 0
      %2409 = vmatprep.subr.bf16.mxu0 0
      %2410 = vmatpush2.bf16.msra.mxu0 0
      %2411 = vmatprep.subr.bf16.mxu0 0
      %2412 = vmatpush2.bf16.msra.mxu0 0
      %2413 = vmatprep.subr.bf16.mxu0 0
      %2414 = vmatpush2.bf16.msra.mxu0 0
      %2415 = vmatprep.subr.bf16.mxu0 0
      %2416 = vmatpush2.bf16.msra.mxu0 0
      %2417 = vmatprep.subr.bf16.mxu0 0
      %2418 = vmatpush2.bf16.msra.mxu0 0
      %2419 = vmatprep.subr.bf16.mxu0 0
      %2420 = vmatpush2.bf16.msra.mxu0 0
      %2421 = vmatprep.mubr.bf16.mxu0 0
      %2422 = vmatmul.mubr.bf16.gmra.mxu0 %v2317
      %v2423 = vpop.f32.mrf.mxu0
      %v2424 = vadd.f32 %v2340, %v2423
      %v2425 = vpop.f32.mrf.mxu0
      %v2426 = vpop.f32.mrf.mxu0
      %v2427 = vadd.f32 %v2340, %v2426
      %v2428 = vpop.f32.mrf.mxu0
      %2429 = vdwg.mxu0
      %v2430 = vadd.f32 %v110, %v2424
      %v2431 = vadd.f32 %v111, %v2427
      %2432 = vadd.xlane.f32.xlu0 %v2430
      %v2433 = vpop.xlane.xlu0 %2432
      %2434 = vadd.xlane.f32.xlu0 %v2431
      %v2435 = vpop.xlane.xlu0 %2434
      %v2436 = vrcp.pop 128.0
      %v2437 = vmul.f32 %v2433, %v2436
      %v2438 = vmul.f32 %v2435, %v2436
      %v2439 = vsub.f32 %v2430, %v2437
      %v2440 = vsub.f32 %v2431, %v2438
      %v2441 = vmul.f32 %v2439, %v2439
      %v2442 = vmul.f32 %v2440, %v2440
      %2443 = vadd.xlane.f32.xlu0 %v2441
      %v2444 = vpop.xlane.xlu0 %2443
      %2445 = vadd.xlane.f32.xlu0 %v2442
      %v2446 = vpop.xlane.xlu0 %2445
      %v2447 = vmul.f32 %v2444, %v2436
      %v2448 = vmul.f32 %v2446, %v2436
      %v2449 = vadd.f32 %v2447, 1e-05
      %v2450 = vadd.f32 %v2448, 1e-05
      %v2451 = vrsqrt.pop %v2449
      %v2452 = vrsqrt.pop %v2450
      %v2453 = vmul.f32 %v2439, %v2451
      %v2454 = vmul.f32 %v2440, %v2452
      %v2455 = vlaneseq
      %v2456 = vshrl.u32 %v2455, 7
      %v2457 = vsub.s32 1, %v2456
      %v2458 = vrot.slane %v114, %v2457
      %v2459 = vmul.f32 %v2453, %v2458
      %v2460 = vmul.f32 %v2454, %v2458
      %v2461 = vlaneseq
      %v2462 = vshrl.u32 %v2461, 7
      %v2463 = vsub.s32 2, %v2462
      %v2464 = vrot.slane %v114, %v2463
      %v2465 = vadd.f32 %v2459, %v2464
      %v2466 = vadd.f32 %v2460, %v2464
      %v2467 = vpack.c.bf16 %v2466, %v2465
      %s2468 = smul.u32 %s105, 32
      %s2469 = smul.addr %s2468, 4
      %s2470 = scalar_lea.vmem [#allocation6], %s2469
      %v2471 = vld [vmem:[%s2470] sm:$0xff]
      %v2472 = vld [vmem:[%s2470 + $0x8] sm:$0xff]
      %v2473 = vld [vmem:[%s2470 + $0x10] sm:$0xff]
      %v2474 = vld [vmem:[%s2470 + $0x18] sm:$0xff]
      %v2475 = vld [vmem:[%s2470 + $0x20] sm:$0xff]
      %v2476 = vld [vmem:[%s2470 + $0x28] sm:$0xff]
      %v2477 = vld [vmem:[%s2470 + $0x30] sm:$0xff]
      %v2478 = vld [vmem:[%s2470 + $0x38] sm:$0xff]
      %v2479 = vld [vmem:[%s2470 + $0x40] sm:$0xff]
      %v2480 = vld [vmem:[%s2470 + $0x48] sm:$0xff]
      %v2481 = vld [vmem:[%s2470 + $0x50] sm:$0xff]
      %v2482 = vld [vmem:[%s2470 + $0x58] sm:$0xff]
      %v2483 = vld [vmem:[%s2470 + $0x60] sm:$0xff]
      %v2484 = vld [vmem:[%s2470 + $0x68] sm:$0xff]
      %v2485 = vld [vmem:[%s2470 + $0x70] sm:$0xff]
      %v2486 = vld [vmem:[%s2470 + $0x78] sm:$0xff]
      %s2487 = smul.u32 %s105, 2
      %s2488 = scalar_lea.vmem %s7, %s2487
      %v2489 = vld [vmem:[%s2488] sm:$0x3]
      %v2491 = vlaneseq
      %v2492 = vshrl.u32 %v2491, 7
      %v2493 = vsub.s32 0, %v2492
      %v2494 = vrot.slane %v2489, %v2493
      %v2495 = vlaneseq
      %v2496 = vshrl.u32 %v2495, 7
      %v2497 = vsub.s32 1, %v2496
      %v2498 = vrot.slane %v2489, %v2497
      %v2517 = vunpack.c.l.b16 %v2471
      %v2518 = vunpack.c.h.b16 %v2471
      %v2519 = vunpack.c.l.b16 %v2472
      %v2520 = vunpack.c.h.b16 %v2472
      %v2521 = vunpack.c.l.b16 %v2473
      %v2522 = vunpack.c.h.b16 %v2473
      %v2523 = vunpack.c.l.b16 %v2474
      %v2524 = vunpack.c.h.b16 %v2474
      %v2525 = vunpack.c.l.b16 %v2475
      %v2526 = vunpack.c.h.b16 %v2475
      %v2527 = vunpack.c.l.b16 %v2476
      %v2528 = vunpack.c.h.b16 %v2476
      %v2529 = vunpack.c.l.b16 %v2477
      %v2530 = vunpack.c.h.b16 %v2477
      %v2531 = vunpack.c.l.b16 %v2478
      %v2532 = vunpack.c.h.b16 %v2478
      %v2533 = vunpack.c.l.b16 %v2479
      %v2534 = vunpack.c.h.b16 %v2479
      %v2535 = vunpack.c.l.b16 %v2480
      %v2536 = vunpack.c.h.b16 %v2480
      %v2537 = vunpack.c.l.b16 %v2481
      %v2538 = vunpack.c.h.b16 %v2481
      %v2539 = vunpack.c.l.b16 %v2482
      %v2540 = vunpack.c.h.b16 %v2482
      %v2541 = vunpack.c.l.b16 %v2483
      %v2542 = vunpack.c.h.b16 %v2483
      %v2543 = vunpack.c.l.b16 %v2484
      %v2544 = vunpack.c.h.b16 %v2484
      %v2545 = vunpack.c.l.b16 %v2485
      %v2546 = vunpack.c.h.b16 %v2485
      %v2547 = vunpack.c.l.b16 %v2486
      %v2548 = vunpack.c.h.b16 %v2486
      %v2549 = vpack.c.b16 %v2519, %v2517
      %v2550 = vpack.c.b16 %v2520, %v2518
      %v2551 = vpack.c.b16 %v2523, %v2521
      %v2552 = vpack.c.b16 %v2524, %v2522
      %v2553 = vpack.c.b16 %v2527, %v2525
      %v2554 = vpack.c.b16 %v2528, %v2526
      %v2555 = vpack.c.b16 %v2531, %v2529
      %v2556 = vpack.c.b16 %v2532, %v2530
      %v2557 = vpack.c.b16 %v2535, %v2533
      %v2558 = vpack.c.b16 %v2536, %v2534
      %v2559 = vpack.c.b16 %v2539, %v2537
      %v2560 = vpack.c.b16 %v2540, %v2538
      %v2561 = vpack.c.b16 %v2543, %v2541
      %v2562 = vpack.c.b16 %v2544, %v2542
      %v2563 = vpack.c.b16 %v2547, %v2545
      %v2564 = vpack.c.b16 %v2548, %v2546
      %2581 = vmatprep.subr.bf16.mxu0 %v2564
      %2582 = vmatpush1.bf16.msra.mxu0 %v2563
      %2583 = vmatprep.subr.bf16.mxu0 %v2562
      %2584 = vmatpush1.bf16.msra.mxu0 %v2561
      %2585 = vmatprep.subr.bf16.mxu0 %v2560
      %2586 = vmatpush1.bf16.msra.mxu0 %v2559
      %2587 = vmatprep.subr.bf16.mxu0 %v2558
      %2588 = vmatpush1.bf16.msra.mxu0 %v2557
      %2589 = vmatprep.subr.bf16.mxu0 %v2556
      %2590 = vmatpush1.bf16.msra.mxu0 %v2555
      %2591 = vmatprep.subr.bf16.mxu0 %v2554
      %2592 = vmatpush1.bf16.msra.mxu0 %v2553
      %2593 = vmatprep.subr.bf16.mxu0 %v2552
      %2594 = vmatpush1.bf16.msra.mxu0 %v2551
      %2595 = vmatprep.subr.bf16.mxu0 %v2550
      %2596 = vmatpush1.bf16.msra.mxu0 %v2549
      %2597 = vmatprep.subr.bf16.mxu0 0
      %2598 = vmatpush2.bf16.msra.mxu0 0
      %2599 = vmatprep.subr.bf16.mxu0 0
      %2600 = vmatpush2.bf16.msra.mxu0 0
      %2601 = vmatprep.subr.bf16.mxu0 0
      %2602 = vmatpush2.bf16.msra.mxu0 0
      %2603 = vmatprep.subr.bf16.mxu0 0
      %2604 = vmatpush2.bf16.msra.mxu0 0
      %2605 = vmatprep.subr.bf16.mxu0 0
      %2606 = vmatpush2.bf16.msra.mxu0 0
      %2607 = vmatprep.subr.bf16.mxu0 0
      %2608 = vmatpush2.bf16.msra.mxu0 0
      %2609 = vmatprep.subr.bf16.mxu0 0
      %2610 = vmatpush2.bf16.msra.mxu0 0
      %2611 = vmatprep.subr.bf16.mxu0 0
      %2612 = vmatpush2.bf16.msra.mxu0 0
      %2613 = vmatprep.mubr.bf16.mxu0 0
      %2614 = vmatmul.mubr.bf16.gmra.mxu0 %v2467
      %v2615 = vpop.f32.mrf.mxu0
      %v2616 = vadd.f32 %v2494, %v2615
      %v2617 = vpop.f32.mrf.mxu0
      %v2618 = vadd.f32 %v2498, %v2617
      %v2619 = vpop.f32.mrf.mxu0
      %v2620 = vadd.f32 %v2494, %v2619
      %v2621 = vpop.f32.mrf.mxu0
      %v2622 = vadd.f32 %v2498, %v2621
      %2623 = vdwg.mxu0
      %v2624 = vmax.f32 %v2616, 0.0
      %v2625 = vmax.f32 %v2618, 0.0
      %v2626 = vmax.f32 %v2620, 0.0
      %v2627 = vmax.f32 %v2622, 0.0
      %v2628 = vpack.c.bf16 %v2626, %v2624
      %v2629 = vpack.c.bf16 %v2627, %v2625
      %s2630 = smul.addr %s2468, 4
      %s2631 = scalar_lea.vmem [#allocation7], %s2630
      %v2632 = vld [vmem:[%s2631] sm:$0xf]
      %v2633 = vld [vmem:[%s2631 + $0x4] sm:$0xf]
      %v2634 = vld [vmem:[%s2631 + $0x8] sm:$0xf]
      %v2635 = vld [vmem:[%s2631 + $0xc] sm:$0xf]
      %v2636 = vld [vmem:[%s2631 + $0x10] sm:$0xf]
      %v2637 = vld [vmem:[%s2631 + $0x14] sm:$0xf]
      %v2638 = vld [vmem:[%s2631 + $0x18] sm:$0xf]
      %v2639 = vld [vmem:[%s2631 + $0x1c] sm:$0xf]
      %v2640 = vld [vmem:[%s2631 + $0x20] sm:$0xf]
      %v2641 = vld [vmem:[%s2631 + $0x24] sm:$0xf]
      %v2642 = vld [vmem:[%s2631 + $0x28] sm:$0xf]
      %v2643 = vld [vmem:[%s2631 + $0x2c] sm:$0xf]
      %v2644 = vld [vmem:[%s2631 + $0x30] sm:$0xf]
      %v2645 = vld [vmem:[%s2631 + $0x34] sm:$0xf]
      %v2646 = vld [vmem:[%s2631 + $0x38] sm:$0xf]
      %v2647 = vld [vmem:[%s2631 + $0x3c] sm:$0xf]
      %v2648 = vld [vmem:[%s2631 + $0x40] sm:$0xf]
      %v2649 = vld [vmem:[%s2631 + $0x44] sm:$0xf]
      %v2650 = vld [vmem:[%s2631 + $0x48] sm:$0xf]
      %v2651 = vld [vmem:[%s2631 + $0x4c] sm:$0xf]
      %v2652 = vld [vmem:[%s2631 + $0x50] sm:$0xf]
      %v2653 = vld [vmem:[%s2631 + $0x54] sm:$0xf]
      %v2654 = vld [vmem:[%s2631 + $0x58] sm:$0xf]
      %v2655 = vld [vmem:[%s2631 + $0x5c] sm:$0xf]
      %v2656 = vld [vmem:[%s2631 + $0x60] sm:$0xf]
      %v2657 = vld [vmem:[%s2631 + $0x64] sm:$0xf]
      %v2658 = vld [vmem:[%s2631 + $0x68] sm:$0xf]
      %v2659 = vld [vmem:[%s2631 + $0x6c] sm:$0xf]
      %v2660 = vld [vmem:[%s2631 + $0x70] sm:$0xf]
      %v2661 = vld [vmem:[%s2631 + $0x74] sm:$0xf]
      %v2662 = vld [vmem:[%s2631 + $0x78] sm:$0xf]
      %v2663 = vld [vmem:[%s2631 + $0x7c] sm:$0xf]
      %v2664 = vlaneseq
      %v2665 = vshrl.u32 %v2664, 7
      %v2666 = vsub.s32 3, %v2665
      %v2667 = vrot.slane %v114, %v2666
      %v2700 = vunpack.c.l.b16 %v2632
      %v2701 = vunpack.c.l.b16 %v2633
      %v2702 = vunpack.c.l.b16 %v2634
      %v2703 = vunpack.c.l.b16 %v2635
      %v2704 = vunpack.c.l.b16 %v2636
      %v2705 = vunpack.c.l.b16 %v2637
      %v2706 = vunpack.c.l.b16 %v2638
      %v2707 = vunpack.c.l.b16 %v2639
      %v2708 = vunpack.c.l.b16 %v2640
      %v2709 = vunpack.c.l.b16 %v2641
      %v2710 = vunpack.c.l.b16 %v2642
      %v2711 = vunpack.c.l.b16 %v2643
      %v2712 = vunpack.c.l.b16 %v2644
      %v2713 = vunpack.c.l.b16 %v2645
      %v2714 = vunpack.c.l.b16 %v2646
      %v2715 = vunpack.c.l.b16 %v2647
      %v2716 = vunpack.c.l.b16 %v2648
      %v2717 = vunpack.c.l.b16 %v2649
      %v2718 = vunpack.c.l.b16 %v2650
      %v2719 = vunpack.c.l.b16 %v2651
      %v2720 = vunpack.c.l.b16 %v2652
      %v2721 = vunpack.c.l.b16 %v2653
      %v2722 = vunpack.c.l.b16 %v2654
      %v2723 = vunpack.c.l.b16 %v2655
      %v2724 = vunpack.c.l.b16 %v2656
      %v2725 = vunpack.c.l.b16 %v2657
      %v2726 = vunpack.c.l.b16 %v2658
      %v2727 = vunpack.c.l.b16 %v2659
      %v2728 = vunpack.c.l.b16 %v2660
      %v2729 = vunpack.c.l.b16 %v2661
      %v2730 = vunpack.c.l.b16 %v2662
      %v2731 = vunpack.c.l.b16 %v2663
      %v2732 = vpack.c.b16 %v2701, %v2700
      %v2733 = vpack.c.b16 %v2703, %v2702
      %v2734 = vpack.c.b16 %v2705, %v2704
      %v2735 = vpack.c.b16 %v2707, %v2706
      %v2736 = vpack.c.b16 %v2709, %v2708
      %v2737 = vpack.c.b16 %v2711, %v2710
      %v2738 = vpack.c.b16 %v2713, %v2712
      %v2739 = vpack.c.b16 %v2715, %v2714
      %v2740 = vpack.c.b16 %v2717, %v2716
      %v2741 = vpack.c.b16 %v2719, %v2718
      %v2742 = vpack.c.b16 %v2721, %v2720
      %v2743 = vpack.c.b16 %v2723, %v2722
      %v2744 = vpack.c.b16 %v2725, %v2724
      %v2745 = vpack.c.b16 %v2727, %v2726
      %v2746 = vpack.c.b16 %v2729, %v2728
      %v2747 = vpack.c.b16 %v2731, %v2730
      %2764 = vmatprep.subr.bf16.mxu0 0
      %2765 = vmatpush1.bf16.msra.mxu0 %v2739
      %2766 = vmatprep.subr.bf16.mxu0 0
      %2767 = vmatpush1.bf16.msra.mxu0 %v2738
      %2768 = vmatprep.subr.bf16.mxu0 0
      %2769 = vmatpush1.bf16.msra.mxu0 %v2737
      %2770 = vmatprep.subr.bf16.mxu0 0
      %2771 = vmatpush1.bf16.msra.mxu0 %v2736
      %2772 = vmatprep.subr.bf16.mxu0 0
      %2773 = vmatpush1.bf16.msra.mxu0 %v2735
      %2774 = vmatprep.subr.bf16.mxu0 0
      %2775 = vmatpush1.bf16.msra.mxu0 %v2734
      %2776 = vmatprep.subr.bf16.mxu0 0
      %2777 = vmatpush1.bf16.msra.mxu0 %v2733
      %2778 = vmatprep.subr.bf16.mxu0 0
      %2779 = vmatpush1.bf16.msra.mxu0 %v2732
      %2780 = vmatprep.subr.bf16.mxu0 0
      %2781 = vmatpush2.bf16.msra.mxu0 %v2747
      %2782 = vmatprep.subr.bf16.mxu0 0
      %2783 = vmatpush2.bf16.msra.mxu0 %v2746
      %2784 = vmatprep.subr.bf16.mxu0 0
      %2785 = vmatpush2.bf16.msra.mxu0 %v2745
      %2786 = vmatprep.subr.bf16.mxu0 0
      %2787 = vmatpush2.bf16.msra.mxu0 %v2744
      %2788 = vmatprep.subr.bf16.mxu0 0
      %2789 = vmatpush2.bf16.msra.mxu0 %v2743
      %2790 = vmatprep.subr.bf16.mxu0 0
      %2791 = vmatpush2.bf16.msra.mxu0 %v2742
      %2792 = vmatprep.subr.bf16.mxu0 0
      %2793 = vmatpush2.bf16.msra.mxu0 %v2741
      %2794 = vmatprep.subr.bf16.mxu0 0
      %2795 = vmatpush2.bf16.msra.mxu0 %v2740
      %2796 = vmatprep.mubr.bf16.mxu0 %v2629
      %2797 = vmatmul.mubr.bf16.gmra.mxu0 %v2628
      %v2798 = vpop.f32.mrf.mxu0
      %v2799 = vadd.f32 %v2667, %v2798
      %v2800 = vpop.f32.mrf.mxu0
      %v2801 = vpop.f32.mrf.mxu0
      %v2802 = vadd.f32 %v2667, %v2801
      %v2803 = vpop.f32.mrf.mxu0
      %2804 = vdwg.mxu0
      %v2805 = vadd.f32 %v2465, %v2799
      %v2806 = vadd.f32 %v2466, %v2802
      %2807 = vadd.xlane.f32.xlu0 %v2805
      %v2808 = vpop.xlane.xlu0 %2807
      %2809 = vadd.xlane.f32.xlu0 %v2806
      %v2810 = vpop.xlane.xlu0 %2809
      %v2811 = vmul.f32 %v2808, %v2436
      %v2812 = vmul.f32 %v2810, %v2436
      %v2813 = vsub.f32 %v2805, %v2811
      %v2814 = vsub.f32 %v2806, %v2812
      %v2815 = vmul.f32 %v2813, %v2813
      %v2816 = vmul.f32 %v2814, %v2814
      %2817 = vadd.xlane.f32.xlu0 %v2815
      %v2818 = vpop.xlane.xlu0 %2817
      %2819 = vadd.xlane.f32.xlu0 %v2816
      %v2820 = vpop.xlane.xlu0 %2819
      %v2821 = vmul.f32 %v2818, %v2436
      %v2822 = vmul.f32 %v2820, %v2436
      %v2823 = vadd.f32 %v2821, 1e-05
      %v2824 = vadd.f32 %v2822, 1e-05
      %v2825 = vrsqrt.pop %v2823
      %v2826 = vrsqrt.pop %v2824
      %v2827 = vmul.f32 %v2813, %v2825
      %v2828 = vmul.f32 %v2814, %v2826
      %v2829 = vlaneseq
      %v2830 = vshrl.u32 %v2829, 7
      %v2831 = vsub.s32 4, %v2830
      %v2832 = vrot.slane %v114, %v2831
      %v2833 = vmul.f32 %v2827, %v2832
      %v2834 = vmul.f32 %v2828, %v2832
      %v2835 = vlaneseq
      %v2836 = vshrl.u32 %v2835, 7
      %v2837 = vsub.s32 5, %v2836
      %v2838 = vrot.slane %v114, %v2837
      %v2839 = vadd.f32 %v2833, %v2838
      %v2840 = vadd.f32 %v2834, %v2838
    $region74: #{forward.1} parent=1 // loop_footer
      %s109 = sadd.s32 1, %s105
    $region75: #{forward.1} parent=1 // loop_footer_branch
      %104 = sbr.rel target = $region71
    $region76: #{forward.1} parent=1 // loop_exit
      _
    %v2841 = vld [vmem:[%s10] sm:$0x3]
    %2842 = vadd.xlane.f32.xlu0 %v110
    %v2843 = vpop.xlane.xlu0 %2842
    %2844 = vadd.xlane.f32.xlu0 %v111
    %v2845 = vpop.xlane.xlu0 %2844
    %v2846 = vrcp.pop 128.0
    %v2847 = vmul.f32 %v2843, %v2846
    %v2848 = vmul.f32 %v2845, %v2846
    %v2849 = vsub.f32 %v110, %v2847
    %v2850 = vsub.f32 %v111, %v2848
    %v2851 = vmul.f32 %v2849, %v2849
    %v2852 = vmul.f32 %v2850, %v2850
    %2853 = vadd.xlane.f32.xlu0 %v2851
    %v2854 = vpop.xlane.xlu0 %2853
    %2855 = vadd.xlane.f32.xlu0 %v2852
    %v2856 = vpop.xlane.xlu0 %2855
    %v2857 = vmul.f32 %v2854, %v2846
    %v2858 = vmul.f32 %v2856, %v2846
    %v2859 = vadd.f32 %v2857, 1e-05
    %v2860 = vadd.f32 %v2858, 1e-05
    %v2861 = vrsqrt.pop %v2859
    %v2862 = vrsqrt.pop %v2860
    %v2863 = vmul.f32 %v2849, %v2861
    %v2864 = vmul.f32 %v2850, %v2862
    %v2865 = vlaneseq
    %v2866 = vshrl.u32 %v2865, 7
    %v2867 = vsub.s32 0, %v2866
    %v2868 = vrot.slane %v2841, %v2867
    %v2869 = vmul.f32 %v2863, %v2868
    %v2870 = vmul.f32 %v2864, %v2868
    %v2871 = vlaneseq
    %v2872 = vshrl.u32 %v2871, 7
    %v2873 = vsub.s32 1, %v2872
    %v2874 = vrot.slane %v2841, %v2873
    %v2875 = vadd.f32 %v2869, %v2874
    %v2876 = vadd.f32 %v2870, %v2874
    %v2877 = vld [vmem:[%s2] sm:$0x3]
    %v2878 = vlaneseq
    %v2879 = vshrl.u32 %v2878, 7
    %v2880 = vsub.s32 0, %v2879
    %v2881 = vrot.slane %v2877, %v2880
    %2883 = vbcast.lane.b32.xlu0 %v2881, 256
    %v2884 = vpop.permute.xlu0 %2883
    %v2885 = vlaneseq
    %v2886 = vshrl.u32 %v2885, 7
    %v2887 = vsub.s32 1, %v2886
    %v2888 = vrot.slane %v2877, %v2887
    %2890 = vbcast.lane.b32.xlu0 %v2888, 256
    %v2891 = vpop.permute.xlu0 %2890
    %v2892 = vmul.f32 %v2875, %v2884
    %v2893 = vmul.f32 %v2876, %v2891
    %v2894 = vrot.slane %v2892, 4
    %v2895 = vadd.f32 %v2892, %v2894
    %v2896 = vrot.slane %v2895, 2
    %v2897 = vadd.f32 %v2895, %v2896
    %v2898 = vrot.slane %v2897, 1
    %v2899 = vadd.f32 %v2897, %v2898
    %v2900 = vrot.slane %v2893, 4
    %v2901 = vadd.f32 %v2893, %v2900
    %v2902 = vrot.slane %v2901, 2
    %v2903 = vadd.f32 %v2901, %v2902
    %v2904 = vrot.slane %v2903, 1
    %v2905 = vadd.f32 %v2903, %v2904
    %v2906 = vpack.c.bf16 %v2899, %v2899
    %v2907 = vpack.c.bf16 %v2905, %v2905
    %v2908 = vld [vmem:[%s11] sm:$0xf]
    %v2909 = vld [vmem:[%s11 + $0x4] sm:$0xf]
    %v2910 = vld [vmem:[%s11 + $0x8] sm:$0xf]
    %v2911 = vld [vmem:[%s11 + $0xc] sm:$0xf]
    %v2912 = vld [vmem:[%s11 + $0x10] sm:$0xf]
    %v2913 = vld [vmem:[%s11 + $0x14] sm:$0xf]
    %v2914 = vld [vmem:[%s11 + $0x18] sm:$0xf]
    %v2915 = vld [vmem:[%s11 + $0x1c] sm:$0xf]
    %v2916 = vld [vmem:[%s11 + $0x20] sm:$0xf]
    %v2917 = vld [vmem:[%s11 + $0x24] sm:$0xf]
    %v2918 = vld [vmem:[%s11 + $0x28] sm:$0xf]
    %v2919 = vld [vmem:[%s11 + $0x2c] sm:$0xf]
    %v2920 = vld [vmem:[%s11 + $0x30] sm:$0xf]
    %v2921 = vld [vmem:[%s11 + $0x34] sm:$0xf]
    %v2922 = vld [vmem:[%s11 + $0x38] sm:$0xf]
    %v2923 = vld [vmem:[%s11 + $0x3c] sm:$0xf]
    %v2924 = vld [vmem:[%s12] sm:$0x1]
    %v2926 = vlaneseq
    %v2927 = vshrl.u32 %v2926, 7
    %v2928 = vsub.s32 0, %v2927
    %v2929 = vrot.slane %v2924, %v2928
    %v2933 = vunpack.c.l.b16 %v2906
    %v2934 = vunpack.c.l.b16 %v2907
    %vm2935 = vcmask 1041409
    %v2936 = vsel %vm2935, %v2934, %v2933
    %v2937 = vpack.c.b16 %v2936, %v2936
    %v2955 = vunpack.c.l.b16 %v2908
    %v2956 = vunpack.c.l.b16 %v2909
    %v2957 = vunpack.c.l.b16 %v2910
    %v2958 = vunpack.c.l.b16 %v2911
    %v2959 = vunpack.c.l.b16 %v2912
    %v2960 = vunpack.c.l.b16 %v2913
    %v2961 = vunpack.c.l.b16 %v2914
    %v2962 = vunpack.c.l.b16 %v2915
    %v2963 = vunpack.c.l.b16 %v2916
    %v2964 = vunpack.c.l.b16 %v2917
    %v2965 = vunpack.c.l.b16 %v2918
    %v2966 = vunpack.c.l.b16 %v2919
    %v2967 = vunpack.c.l.b16 %v2920
    %v2968 = vunpack.c.l.b16 %v2921
    %v2969 = vunpack.c.l.b16 %v2922
    %v2970 = vunpack.c.l.b16 %v2923
    %v2971 = vpack.c.b16 %v2956, %v2955
    %v2972 = vpack.c.b16 %v2958, %v2957
    %v2973 = vpack.c.b16 %v2960, %v2959
    %v2974 = vpack.c.b16 %v2962, %v2961
    %v2975 = vpack.c.b16 %v2964, %v2963
    %v2976 = vpack.c.b16 %v2966, %v2965
    %v2977 = vpack.c.b16 %v2968, %v2967
    %v2978 = vpack.c.b16 %v2970, %v2969
    %2987 = vmatprep.subr.bf16.mxu0 0
    %2988 = vmatpush1.bf16.msra.mxu0 %v2978
    %2989 = vmatprep.subr.bf16.mxu0 0
    %2990 = vmatpush1.bf16.msra.mxu0 %v2977
    %2991 = vmatprep.subr.bf16.mxu0 0
    %2992 = vmatpush1.bf16.msra.mxu0 %v2976
    %2993 = vmatprep.subr.bf16.mxu0 0
    %2994 = vmatpush1.bf16.msra.mxu0 %v2975
    %2995 = vmatprep.subr.bf16.mxu0 0
    %2996 = vmatpush1.bf16.msra.mxu0 %v2974
    %2997 = vmatprep.subr.bf16.mxu0 0
    %2998 = vmatpush1.bf16.msra.mxu0 %v2973
    %2999 = vmatprep.subr.bf16.mxu0 0
    %3000 = vmatpush1.bf16.msra.mxu0 %v2972
    %3001 = vmatprep.subr.bf16.mxu0 0
    %3002 = vmatpush1.bf16.msra.mxu0 %v2971
    %3003 = vmatprep.subr.bf16.mxu0 0
    %3004 = vmatpush2.bf16.msra.mxu0 0
    %3005 = vmatprep.subr.bf16.mxu0 0
    %3006 = vmatpush2.bf16.msra.mxu0 0
    %3007 = vmatprep.subr.bf16.mxu0 0
    %3008 = vmatpush2.bf16.msra.mxu0 0
    %3009 = vmatprep.subr.bf16.mxu0 0
    %3010 = vmatpush2.bf16.msra.mxu0 0
    %3011 = vmatprep.subr.bf16.mxu0 0
    %3012 = vmatpush2.bf16.msra.mxu0 0
    %3013 = vmatprep.subr.bf16.mxu0 0
    %3014 = vmatpush2.bf16.msra.mxu0 0
    %3015 = vmatprep.subr.bf16.mxu0 0
    %3016 = vmatpush2.bf16.msra.mxu0 0
    %3017 = vmatprep.subr.bf16.mxu0 0
    %3018 = vmatpush2.bf16.msra.mxu0 0
    %3019 = vmatprep.mubr.bf16.mxu0 0
    %3020 = vmatmul.mubr.bf16.gmra.mxu0 %v2937
    %v3021 = vpop.f32.mrf.mxu0
    %v3022 = vadd.f32 %v2929, %v3021
    %v3023 = vpop.f32.mrf.mxu0
    %v3024 = vpop.f32.mrf.mxu0
    %v3025 = vpop.f32.mrf.mxu0
    %3026 = vdwg.mxu0
    %3027 = vst [vmem:[%s13] sm:$0x3] %v3022
    // Predicated region
    $region77: #{forward.1} parent=1 // pred_check
      _
    $region78: #{forward.1} parent=1 // pred_check_branch
      %3029 = sbr.rel (0) target = $region80
    $region79: #{forward.1} parent=1 // pred_region
      _
    $region80: #{forward.1} parent=1 // pred_fallthru
      _
    // Predicated region
    $region81: #{forward.1} parent=1 // pred_check
      _
    $region82: #{forward.1} parent=1 // pred_check_branch
      %3031 = sbr.rel (0) target = $region84
    $region83: #{forward.1} parent=1 // pred_region
      _
    $region84: #{forward.1} parent=1 // pred_fallthru
      _
    %3032 = vsyncpa [#allocation3], 1
    %3033 = vsyncpa [#allocation5], 1
    %3034 = vsyncpa [#allocation8], 1

</llo_original>
